<compile_context>
chip_gen: v7x
topology: tpu7x:2x2x1
jax: 0.10.0
libtpu: 0.0.40
codegen_flags: <defaults>
</compile_context>

<pallas_src>
import math
import numpy as np

import jax
import jax.numpy as jnp
from jax import lax
from jax.experimental import pallas as pl
from jax.experimental.pallas import tpu as pltpu

# ----------------------------- configuration --------------------------------
FEAT_DIM = 16            # dim == hidden_features == feat_dim
NUM_HEADS = 4            # (module default 64; scaled down so HEAD_DIM >= 1)
HEAD_DIM = FEAT_DIM // NUM_HEADS
HEAD_ROWS = ((3 * HEAD_DIM + 7) // 8) * 8   # per-head sublane block (12 -> 16)
LATENT = 8               # latent_size (module default 64; scaled down)
IN_FEATURES = 1
BIAS_EPS = 1e-6
LEAKY = 0.0
EPS = 1e-6
BN_EPS = 1e-5
NEG_INF = -1e30
OUT_LANES = 128          # lane-dense output width (6*C=96 valid, zero padded)

assert FEAT_DIM % NUM_HEADS == 0 and HEAD_DIM >= 1
assert 3 * HEAD_DIM <= HEAD_ROWS
assert 6 * FEAT_DIM <= OUT_LANES


# ------------------------- host-side weight packing --------------------------
def pack_params(params):
    """Pack every (pre-processed) weight into one [rows, 3*C] f32 slab.

    All reorganizations (kron with I3, head-major restacking, weight fusion,
    attention-scale folding, BN folding) happen here so the kernel only does
    static, sublane-aligned slices and full-width matmuls.
    """
    C, L, H, HD, HR = FEAT_DIM, LATENT, NUM_HEADS, HEAD_DIM, HEAD_ROWS
    C3 = 3 * C
    eye3 = jnp.eye(3, dtype=jnp.float32)

    def kron3(W):                      # per-d block-diagonal channel mixing
        return jnp.kron(eye3, W)

    def bn_ab(bn):                     # fold eval-mode BN stats into a*norm+b
        gamma, beta, mean, var = bn[:, 0], bn[:, 1], bn[:, 2], bn[:, 3]
        a = gamma / jnp.sqrt(var + BN_EPS)
        b = beta - a * mean
        return a[:, None], b[:, None]

    def to_head_major(Wstacked):
        """Re-stack rows of a [3C, ncols] weight head-major, padding each head's
        3*HD rows to HEAD_ROWS with zeros (exact slicing, no matmul rounding)."""
        ncols = Wstacked.shape[1]
        pad = jnp.zeros((HR - 3 * HD, ncols), jnp.float32)
        blocks = []
        for h in range(H):
            rows = [Wstacked[d * C + h * HD:d * C + (h + 1) * HD, :] for d in range(3)]
            rows.append(pad)
            blocks.append(jnp.concatenate(rows, axis=0))
        return jnp.concatenate(blocks, axis=0)          # [H*HR, ncols]

    bn1_a, bn1_b = bn_ab(params["bn1"])
    bn2_a, bn2_b = bn_ab(params["bn2"])

    # query_proj weights, one kron'd [3C,3C] block per latent token
    Wqp = params["Wqp"]                                  # [L*C, C]
    Wqp_lk = jnp.concatenate(
        [kron3(Wqp[l * C:(l + 1) * C, :]) for l in range(L)], axis=0)   # [L*3C, 3C]

    inv_scale = 1.0 / math.sqrt(3.0 * HD)                # folded attention scale
    Wq_hm = inv_scale * to_head_major(kron3(params["Wq"]))              # [H*HR, 3C]
    Wkv_hm = jnp.concatenate([to_head_major(kron3(params["Wk"])),
                              to_head_major(kron3(params["Wv"]))], axis=0)  # [2*H*HR, 3C]
    Wo_hmT = to_head_major(kron3(params["Wo"]).T)                       # [H*HR, 3C]

    # fused VNSimpleLinear heads (v | j | j_) as one stacked weight
    Wheads = jnp.concatenate([kron3(params["Wl1"]), kron3(params["Wl2"]),
                              kron3(params["Wl2b"])], axis=0)           # [9C, 3C]

    regions = [
        ("W1k", kron3(params["W1"])),                                   # [3C, 3]
        ("b1", BIAS_EPS * params["b1"].T.reshape(C3, 1)),
        ("bn1_a", bn1_a), ("bn1_b", bn1_b),
        ("U1", kron3(params["U1"])),
        ("W2", kron3(params["W2"])),
        ("b2", BIAS_EPS * params["b2"].T.reshape(C3, 1)),
        ("bn2_a", bn2_a), ("bn2_b", bn2_b),
        ("U2", kron3(params["U2"])),
        ("Wqp", Wqp_lk),
        ("Wq_hm", Wq_hm),
        ("Wkv_hm", Wkv_hm),
        ("Wo_hmT", Wo_hmT),
        ("Wf1", kron3(params["Wf1"])),
        ("Uf", kron3(params["Uf"])),
        ("Wf2", kron3(params["Wf2"])),
        ("Wheads", Wheads),
        ("Wa3", kron3(params["Wa"])),
    ]

    width = C3
    offsets = {}
    chunks = []
    row = 0
    for name, arr in regions:
        arr = jnp.asarray(arr, jnp.float32)
        r, c = arr.shape
        rp = (-r) % 8                                    # sublane-align each region
        offsets[name] = (row, r, c)
        chunks.append(jnp.pad(arr, ((0, rp), (0, width - c))))
        row += r + rp
    slab = jnp.concatenate(chunks, axis=0)               # ~[1350, 48] f32 (~250 KiB)
    return slab, offsets


# -------------------- host-side pooling / mask constants ---------------------
def make_constants(Bc, N):
    """Per-block pooling matrices and the segment-softmax additive bias.

    Point lanes are ordered (b, n) with n fastest; latent-token lanes are
    ordered (l, b) with b fastest.  Computed once on the host instead of being
    rebuilt from [H*T, M] iotas every grid step.
    """
    L = LATENT
    M, T = Bc * N, L * Bc
    pt_batch = np.arange(M) // N                          # batch id of each point lane
    tok_batch = np.arange(T) % Bc                         # batch id of each latent lane
    pool_pts = (pt_batch[:, None] == np.arange(Bc)[None, :]).astype(np.float32) / N   # [M, Bc]
    pool_lat = (np.arange(Bc)[:, None] == tok_batch[None, :]).astype(np.float32) / L  # [Bc, T]
    mask_bias = np.where(tok_batch[:, None] == pt_batch[None, :],
                         0.0, NEG_INF).astype(np.float32)                              # [T, M]
    return jnp.asarray(pool_pts), jnp.asarray(pool_lat), jnp.asarray(mask_bias)


# --------------------------------- kernel ------------------------------------
def _make_kernel(offs, Bc, N):
    C, C3, L, H, HR = FEAT_DIM, 3 * FEAT_DIM, LATENT, NUM_HEADS, HEAD_ROWS
    T = L * Bc            # latent tokens per grid step, lane order (l, b)
    M = Bc * N            # points per grid step,        lane order (b, n)
    slope = LEAKY
    f32 = jnp.float32

    def w(slab_ref, name):
        r0, nr, nc = offs[name]
        return slab_ref[r0:r0 + nr, 0:nc]

    def split3(X):
        return X[0:C], X[C:2 * C], X[2 * C:3 * C]

    def vn_bn(X, a, b):
        """VN BatchNorm (eval): BN on the per-vector norm, rescale direction."""
        x0, x1, x2 = split3(X)
        norm = jnp.sqrt(x0 * x0 + x1 * x1 + x2 * x2) + EPS
        scale = a + b * pl.reciprocal(norm, approx=True)           # EUP
        return jnp.concatenate([x0 * scale, x1 * scale, x2 * scale], axis=0)

    def vn_lrelu(X, U):
        """VN LeakyReLU on the stacked [3C, *] representation (blockwise)."""
        D = jnp.dot(U, X, preferred_element_type=f32)
        x0, x1, x2 = split3(X)
        d0, d1, d2 = split3(D)
        dotv = x0 * d0 + x1 * d1 + x2 * d2
        dsq = d0 * d0 + d1 * d1 + d2 * d2 + EPS
        coef = dotv * pl.reciprocal(dsq, approx=True)              # EUP
        keep = dotv >= 0.0
        o0 = jnp.where(keep, x0, x0 - coef * d0)
        o1 = jnp.where(keep, x1, x1 - coef * d1)
        o2 = jnp.where(keep, x2, x2 - coef * d2)
        out = jnp.concatenate([o0, o1, o2], axis=0)
        if slope != 0.0:
            out = slope * X + (1.0 - slope) * out
        return out

    def kernel(x_ref, slab_ref, pp_ref, plat_ref, mask_ref, out_ref):
        X0 = x_ref[...]                                  # [3, M]

        # ---- vn_mlp layer 1 (in_features == 1): one kron(I3, w1) matmul ----
        # TODO(synk): exact vn.Linear epsilon-bias form unavailable; an
        # eps-scaled learned per-channel 3-vector bias is used (folded on host).
        X = jnp.dot(w(slab_ref, "W1k"), X0, preferred_element_type=f32)
        X = X + w(slab_ref, "b1")                        # [3C, M]
        X = vn_bn(X, w(slab_ref, "bn1_a"), w(slab_ref, "bn1_b"))
        X = vn_lrelu(X, w(slab_ref, "U1"))

        # ---- vn_mlp layer 2 ----
        X = jnp.dot(w(slab_ref, "W2"), X, preferred_element_type=f32) + w(slab_ref, "b2")
        X = vn_bn(X, w(slab_ref, "bn2_a"), w(slab_ref, "bn2_b"))
        X = vn_lrelu(X, w(slab_ref, "U2"))               # [3C, M]

        # ---- per-batch mean over points: one MXU matmul vs. host pooling matrix ----
        m = jnp.dot(X, pp_ref[...], preferred_element_type=f32)        # [3C, Bc]

        # ---- query_proj = vn.MeanProject(latent_size, C, C) ----
        # TODO(synk): MeanProject reconstructed as one learned [C, C] VN map per
        # latent token applied to the per-batch mean feature.
        wqp_r0 = offs["Wqp"][0]
        qcols = [jnp.dot(slab_ref[wqp_r0 + l * C3:wqp_r0 + (l + 1) * C3, 0:C3], m,
                         preferred_element_type=f32) for l in range(L)]
        Qlat = jnp.concatenate(qcols, axis=1)            # [3C, T], cols (l, b)

        # ---- vn.TransformerBlock: rotation-equivariant cross-attention ----
        # TODO(synk): TransformerBlock internals reconstructed (QKV VN-linears,
        # Frobenius-inner-product attention, output projection + residual,
        # VN-FFN + residual); internal normalization of the original omitted.
        Qp = jnp.dot(w(slab_ref, "Wq_hm"), Qlat, preferred_element_type=f32)   # [H*HR, T]
        KV = jnp.dot(w(slab_ref, "Wkv_hm"), X, preferred_element_type=f32)     # [2*H*HR, M]
        Kh = KV[0:H * HR]
        Vh = KV[H * HR:2 * H * HR]
        mask = mask_ref[...]                             # [T, M] additive 0/-1e30

        o_blocks = []
        for h in range(H):                               # static 16-row head slices
            qh = Qp[h * HR:(h + 1) * HR, :]              # [HR, T]
            kh = Kh[h * HR:(h + 1) * HR, :]              # [HR, M]
            vh = Vh[h * HR:(h + 1) * HR, :]              # [HR, M]
            s = lax.dot_general(qh, kh, (((0,), (0,)), ((), ())),
                                preferred_element_type=f32) + mask     # [T, M]
            s = s - jnp.max(s, axis=-1, keepdims=True)
            p = jnp.exp(s)
            p = p * pl.reciprocal(jnp.sum(p, axis=-1, keepdims=True), approx=True)
            o_blocks.append(lax.dot_general(vh, p, (((1,), (1,)), ((), ())),
                                            preferred_element_type=f32))       # [HR, T]
        O = jnp.concatenate(o_blocks, axis=0)            # [H*HR, T] head-major

        Z = Qlat + lax.dot_general(w(slab_ref, "Wo_hmT"), O,
                                   (((0,), (0,)), ((), ())),
                                   preferred_element_type=f32)          # [3C, T]
        F = jnp.dot(w(slab_ref, "Wf1"), Z, preferred_element_type=f32)
        F = vn_lrelu(F, w(slab_ref, "Uf"))
        F = jnp.dot(w(slab_ref, "Wf2"), F, preferred_element_type=f32)
        Z = Z + F                                        # [3C, T]

        # ---- vn.mean_pool over latent tokens: one fused dot_general ----
        P_all = lax.dot_general(plat_ref[...], Z, (((1,), (1,)), ((), ())),
                                preferred_element_type=f32)             # [Bc, 3C]

        # ---- fused VNSimpleLinear heads (v | j | j_), one matmul ----
        H_all = lax.dot_general(P_all, w(slab_ref, "Wheads"),
                                (((1,), (1,)), ((), ())),
                                preferred_element_type=f32)             # [Bc, 9C]
        v = [H_all[:, d * C:(d + 1) * C] for d in range(3)]
        j = [H_all[:, C3 + d * C:C3 + (d + 1) * C] for d in range(3)]
        jp_ = [H_all[:, 2 * C3 + d * C:2 * C3 + (d + 1) * C] for d in range(3)]

        # ---- Affine_Module_Abla ----
        # TODO(synk): Affine_Module_Abla source unavailable; reconstructed as a
        # per-channel 6D Gram-Schmidt rotation built from (j, j_) applied to v,
        # followed by a channel-mixing VN linear; `ablamode` branching not modeled.
        # Exact division here (review: approx reciprocal error is amplified by
        # the frame construction).
        nj = jnp.sqrt(j[0] ** 2 + j[1] ** 2 + j[2] ** 2) + EPS
        e1 = [j[d] / nj for d in range(3)]
        proj = e1[0] * jp_[0] + e1[1] * jp_[1] + e1[2] * jp_[2]
        u2 = [jp_[d] - proj * e1[d] for d in range(3)]
        nu = jnp.sqrt(u2[0] ** 2 + u2[1] ** 2 + u2[2] ** 2) + EPS
        e2 = [u2[d] / nu for d in range(3)]
        e3 = [e1[1] * e2[2] - e1[2] * e2[1],
              e1[2] * e2[0] - e1[0] * e2[2],
              e1[0] * e2[1] - e1[1] * e2[0]]
        yrot = [v[0] * e1[d] + v[1] * e2[d] + v[2] * e3[d] for d in range(3)]
        Yrot = jnp.concatenate(yrot, axis=1)             # [Bc, 3C], cols (d, c)
        Y_all = lax.dot_general(Yrot, w(slab_ref, "Wa3"),
                                (((1,), (1,)), ((), ())),
                                preferred_element_type=f32)             # [Bc, 3C]

        # lane-dense output slab: [ v(d,c) | y(d,c) | zero pad ] -> [Bc, 128]
        pad = jnp.zeros((Bc, OUT_LANES - 6 * C), f32)
        out_ref[...] = jnp.concatenate([H_all[:, 0:C3], Y_all, pad], axis=1)

    return kernel


# ------------------------------ host wrapper ---------------------------------
@jax.jit
def vn_transformer_forward(params, x):
    B, three, N = x.shape
    assert three == 3
    C = FEAT_DIM

    slab, offs = pack_params(params)

    # pack Bc batches per grid step (fills lanes, fewer grid-step overheads).
    # NOTE: for large B on v7x prefer Bc <= B/2 so grid >= 2 and the "parallel"
    # batch axis actually shards across both TensorCores.
    Bc = B if B <= 8 else 8
    assert B % Bc == 0
    assert Bc == B or (Bc % 8 == 0 and (Bc * N) % 128 == 0)

    pool_pts, pool_lat, mask_bias = make_constants(Bc, N)

    # points flattened lane-wise, batch-major: [3, B*N]
    x2 = jnp.transpose(x, (1, 0, 2)).reshape(3, B * N)

    M, T = Bc * N, LATENT * Bc
    kernel = _make_kernel(offs, Bc, N)
    out = pl.pallas_call(
        kernel,
        out_shape=jax.ShapeDtypeStruct((B, OUT_LANES), jnp.float32),
        grid=(B // Bc,),
        in_specs=[
            pl.BlockSpec((3, M), lambda i: (0, i)),            # point cloud block
            pl.BlockSpec(slab.shape, lambda i: (0, 0)),        # resident weight slab
            pl.BlockSpec((M, Bc), lambda i: (0, 0)),           # point pooling matrix
            pl.BlockSpec((Bc, T), lambda i: (0, 0)),           # latent pooling matrix
            pl.BlockSpec((T, M), lambda i: (0, 0)),            # segment softmax bias
        ],
        out_specs=pl.BlockSpec((Bc, OUT_LANES), lambda i: (i, 0)),
        compiler_params=pltpu.CompilerParams(
            dimension_semantics=("parallel",)),                # megacore over batch
    )(x2, slab, pool_pts, pool_lat, mask_bias)

    # restore the module's output contract: comb.squeeze(3) -> [B, 2C, 3]
    out = out[:, :6 * C]
    vpart = out[:, 0:3 * C].reshape(B, 3, C).transpose(0, 2, 1)   # [B, C, 3]
    ypart = out[:, 3 * C:6 * C].reshape(B, 3, C).transpose(0, 2, 1)
    final = jnp.concatenate([vpart, ypart], axis=1)               # [B, 2C, 3]
    return final, None              # (x, x_inv) — x_inv is None in the module


# ---------------------------- deterministic init ------------------------------
def init_params(key):
    C, L = FEAT_DIM, LATENT

    def take(shape, scale=0.1):
        nonlocal key
        key, k = jax.random.split(key)
        return scale * jax.random.normal(k, shape, jnp.float32)

    def bn_params():
        nonlocal key
        key, k1, k2, k3, k4 = jax.random.split(key, 5)
        gamma = 1.0 + 0.1 * jax.random.normal(k1, (C,), jnp.float32)
        beta = 0.1 * jax.random.normal(k2, (C,), jnp.float32)
        mean = 0.1 * jax.random.normal(k3, (C,), jnp.float32)
        var = 1.0 + 0.1 * jax.random.uniform(k4, (C,), jnp.float32)
        return jnp.stack([gamma, beta, mean, var], axis=1)   # [C, 4]

    params = {
        "W1": take((C, IN_FEATURES), 1.0),
        "b1": take((C, 3)),
        "bn1": bn_params(),
        "U1": take((C, C)),
        "W2": take((C, C)),
        "b2": take((C, 3)),
        "bn2": bn_params(),
        "U2": take((C, C)),
        "Wqp": take((L * C, C)),
        "Wq": take((C, C)),
        "Wk": take((C, C)),
        "Wv": take((C, C)),
        "Wo": take((C, C)),
        "Wf1": take((C, C)),
        "Uf": take((C, C)),
        "Wf2": take((C, C)),
        "Wl1": take((C, C)),
        "Wl2": take((C, C)),
        "Wl2b": take((C, C)),
        "Wa": take((C, C)),
    }
    return params


# ----------------------------------- main -------------------------------------
if __name__ == "__main__":
    B, N = 2, 16
    key = jax.random.PRNGKey(0)
    kx, kp = jax.random.split(key)

    x = jax.random.normal(kx, (B, 3, N), jnp.float32)    # [B, 3, num_points]
    params = init_params(kp)

    out, out_inv = vn_transformer_forward(params, x)
    out = jax.block_until_ready(out)

    assert out.shape == (B, 2 * FEAT_DIM, 3), out.shape
    assert out_inv is None
    assert bool(jnp.all(jnp.isfinite(out)))
    print("KERNEL_OK")
</pallas_src>

<mosaic_0001>
module attributes {stable_mosaic.version = 11 : i64} {
  func.func @kernel(%arg0: i32, %arg1: memref<3x32xf32, #tpu.memory_space<vmem>>, %arg2: memref<1328x48xf32, #tpu.memory_space<vmem>>, %arg3: memref<32x2xf32, #tpu.memory_space<vmem>>, %arg4: memref<2x16xf32, #tpu.memory_space<vmem>>, %arg5: memref<16x32xf32, #tpu.memory_space<vmem>>, %arg6: memref<2x128xf32, #tpu.memory_space<vmem>>) attributes {dimension_semantics = [#tpu.dimension_semantics<parallel>], iteration_bounds = array<i64: 1>, scalar_prefetch = 0 : i64, scratch_operands = 0 : i64, tpu.core_type = #tpu.core_type<tc>, window_params = [{transform_indices = @transform_0, window_bounds = array<i64: 3, 32>}, {pipeline_mode = #tpu.pipeline_mode<synchronous>, transform_indices = @transform_1, window_bounds = array<i64: 1328, 48>}, {pipeline_mode = #tpu.pipeline_mode<synchronous>, transform_indices = @transform_2, window_bounds = array<i64: 32, 2>}, {pipeline_mode = #tpu.pipeline_mode<synchronous>, transform_indices = @transform_3, window_bounds = array<i64: 2, 16>}, {pipeline_mode = #tpu.pipeline_mode<synchronous>, transform_indices = @transform_4, window_bounds = array<i64: 16, 32>}, {transform_indices = @transform_5, window_bounds = array<i64: 2, 128>}]} {
    %c0 = arith.constant 0 : index
    %c0_0 = arith.constant 0 : index
    %0 = vector.load %arg1[%c0, %c0_0] : memref<3x32xf32, #tpu.memory_space<vmem>>, vector<3x32xf32>
    %c0_1 = arith.constant 0 : index
    %c0_2 = arith.constant 0 : index
    %1 = vector.load %arg2[%c0_1, %c0_2] : memref<1328x48xf32, #tpu.memory_space<vmem>>, vector<48x3xf32>
    %cst = arith.constant dense<0.000000e+00> : vector<48x32xf32>
    %2 = tpu.matmul %1, %0, %cst {dimension_numbers = #tpu.dot_dimension_numbers<[1], [0], [0], [1], [0, 0, 1, 1], [], []>} : vector<48x3xf32>, vector<3x32xf32>, vector<48x32xf32> -> vector<48x32xf32>
    %c48 = arith.constant 48 : index
    %c0_3 = arith.constant 0 : index
    %3 = vector.load %arg2[%c48, %c0_3] : memref<1328x48xf32, #tpu.memory_space<vmem>>, vector<48x1xf32>
    %4 = vector.broadcast %3 : vector<48x1xf32> to vector<48x32xf32>
    %5 = arith.addf %2, %4 : vector<48x32xf32>
    %c96 = arith.constant 96 : index
    %c0_4 = arith.constant 0 : index
    %6 = vector.load %arg2[%c96, %c0_4] : memref<1328x48xf32, #tpu.memory_space<vmem>>, vector<16x1xf32>
    %c112 = arith.constant 112 : index
    %c0_5 = arith.constant 0 : index
    %7 = vector.load %arg2[%c112, %c0_5] : memref<1328x48xf32, #tpu.memory_space<vmem>>, vector<16x1xf32>
    %8 = vector.extract_strided_slice %5 {offsets = [0, 0], sizes = [16, 32], strides = [1, 1]} : vector<48x32xf32> to vector<16x32xf32>
    %9 = vector.extract_strided_slice %5 {offsets = [16, 0], sizes = [16, 32], strides = [1, 1]} : vector<48x32xf32> to vector<16x32xf32>
    %10 = vector.extract_strided_slice %5 {offsets = [32, 0], sizes = [16, 32], strides = [1, 1]} : vector<48x32xf32> to vector<16x32xf32>
    %11 = arith.mulf %8, %8 : vector<16x32xf32>
    %12 = arith.mulf %9, %9 : vector<16x32xf32>
    %13 = arith.addf %11, %12 : vector<16x32xf32>
    %14 = arith.mulf %10, %10 : vector<16x32xf32>
    %15 = arith.addf %13, %14 : vector<16x32xf32>
    %16 = math.sqrt %15 : vector<16x32xf32>
    %cst_6 = arith.constant 9.99999997E-7 : f32
    %17 = vector.broadcast %cst_6 : f32 to vector<16x32xf32>
    %18 = arith.addf %16, %17 : vector<16x32xf32>
    %19 = tpu.reciprocal %18 {approx = true} : vector<16x32xf32> -> vector<16x32xf32>
    %20 = vector.broadcast %7 : vector<16x1xf32> to vector<16x32xf32>
    %21 = arith.mulf %20, %19 : vector<16x32xf32>
    %22 = vector.broadcast %6 : vector<16x1xf32> to vector<16x32xf32>
    %23 = arith.addf %22, %21 : vector<16x32xf32>
    %24 = arith.mulf %8, %23 : vector<16x32xf32>
    %25 = arith.mulf %9, %23 : vector<16x32xf32>
    %26 = arith.mulf %10, %23 : vector<16x32xf32>
    %27 = tpu.concatenate %24, %25, %26 in 0 : vector<16x32xf32>, vector<16x32xf32>, vector<16x32xf32> -> vector<48x32xf32>
    %c128 = arith.constant 128 : index
    %c0_7 = arith.constant 0 : index
    %28 = vector.load %arg2[%c128, %c0_7] : memref<1328x48xf32, #tpu.memory_space<vmem>>, vector<48x48xf32>
    %cst_8 = arith.constant dense<0.000000e+00> : vector<48x32xf32>
    %29 = tpu.matmul %28, %27, %cst_8 {dimension_numbers = #tpu.dot_dimension_numbers<[1], [0], [0], [1], [0, 0, 1, 1], [], []>} : vector<48x48xf32>, vector<48x32xf32>, vector<48x32xf32> -> vector<48x32xf32>
    %30 = vector.extract_strided_slice %27 {offsets = [0, 0], sizes = [16, 32], strides = [1, 1]} : vector<48x32xf32> to vector<16x32xf32>
    %31 = vector.extract_strided_slice %27 {offsets = [16, 0], sizes = [16, 32], strides = [1, 1]} : vector<48x32xf32> to vector<16x32xf32>
    %32 = vector.extract_strided_slice %27 {offsets = [32, 0], sizes = [16, 32], strides = [1, 1]} : vector<48x32xf32> to vector<16x32xf32>
    %33 = vector.extract_strided_slice %29 {offsets = [0, 0], sizes = [16, 32], strides = [1, 1]} : vector<48x32xf32> to vector<16x32xf32>
    %34 = vector.extract_strided_slice %29 {offsets = [16, 0], sizes = [16, 32], strides = [1, 1]} : vector<48x32xf32> to vector<16x32xf32>
    %35 = vector.extract_strided_slice %29 {offsets = [32, 0], sizes = [16, 32], strides = [1, 1]} : vector<48x32xf32> to vector<16x32xf32>
    %36 = arith.mulf %30, %33 : vector<16x32xf32>
    %37 = arith.mulf %31, %34 : vector<16x32xf32>
    %38 = arith.addf %36, %37 : vector<16x32xf32>
    %39 = arith.mulf %32, %35 : vector<16x32xf32>
    %40 = arith.addf %38, %39 : vector<16x32xf32>
    %41 = arith.mulf %33, %33 : vector<16x32xf32>
    %42 = arith.mulf %34, %34 : vector<16x32xf32>
    %43 = arith.addf %41, %42 : vector<16x32xf32>
    %44 = arith.mulf %35, %35 : vector<16x32xf32>
    %45 = arith.addf %43, %44 : vector<16x32xf32>
    %cst_9 = arith.constant 9.99999997E-7 : f32
    %46 = vector.broadcast %cst_9 : f32 to vector<16x32xf32>
    %47 = arith.addf %45, %46 : vector<16x32xf32>
    %48 = tpu.reciprocal %47 {approx = true} : vector<16x32xf32> -> vector<16x32xf32>
    %49 = arith.mulf %40, %48 : vector<16x32xf32>
    %cst_10 = arith.constant 0.000000e+00 : f32
    %50 = vector.broadcast %cst_10 : f32 to vector<16x32xf32>
    %51 = arith.cmpf oge, %40, %50 : vector<16x32xf32>
    %52 = arith.mulf %49, %33 : vector<16x32xf32>
    %53 = arith.subf %30, %52 : vector<16x32xf32>
    %54 = arith.select %51, %30, %53 : vector<16x32xi1>, vector<16x32xf32>
    %55 = arith.mulf %49, %34 : vector<16x32xf32>
    %56 = arith.subf %31, %55 : vector<16x32xf32>
    %57 = arith.select %51, %31, %56 : vector<16x32xi1>, vector<16x32xf32>
    %58 = arith.mulf %49, %35 : vector<16x32xf32>
    %59 = arith.subf %32, %58 : vector<16x32xf32>
    %60 = arith.select %51, %32, %59 : vector<16x32xi1>, vector<16x32xf32>
    %61 = tpu.concatenate %54, %57, %60 in 0 : vector<16x32xf32>, vector<16x32xf32>, vector<16x32xf32> -> vector<48x32xf32>
    %c176 = arith.constant 176 : index
    %c0_11 = arith.constant 0 : index
    %62 = vector.load %arg2[%c176, %c0_11] : memref<1328x48xf32, #tpu.memory_space<vmem>>, vector<48x48xf32>
    %cst_12 = arith.constant dense<0.000000e+00> : vector<48x32xf32>
    %63 = tpu.matmul %62, %61, %cst_12 {dimension_numbers = #tpu.dot_dimension_numbers<[1], [0], [0], [1], [0, 0, 1, 1], [], []>} : vector<48x48xf32>, vector<48x32xf32>, vector<48x32xf32> -> vector<48x32xf32>
    %c224 = arith.constant 224 : index
    %c0_13 = arith.constant 0 : index
    %64 = vector.load %arg2[%c224, %c0_13] : memref<1328x48xf32, #tpu.memory_space<vmem>>, vector<48x1xf32>
    %65 = vector.broadcast %64 : vector<48x1xf32> to vector<48x32xf32>
    %66 = arith.addf %63, %65 : vector<48x32xf32>
    %c272 = arith.constant 272 : index
    %c0_14 = arith.constant 0 : index
    %67 = vector.load %arg2[%c272, %c0_14] : memref<1328x48xf32, #tpu.memory_space<vmem>>, vector<16x1xf32>
    %c288 = arith.constant 288 : index
    %c0_15 = arith.constant 0 : index
    %68 = vector.load %arg2[%c288, %c0_15] : memref<1328x48xf32, #tpu.memory_space<vmem>>, vector<16x1xf32>
    %69 = vector.extract_strided_slice %66 {offsets = [0, 0], sizes = [16, 32], strides = [1, 1]} : vector<48x32xf32> to vector<16x32xf32>
    %70 = vector.extract_strided_slice %66 {offsets = [16, 0], sizes = [16, 32], strides = [1, 1]} : vector<48x32xf32> to vector<16x32xf32>
    %71 = vector.extract_strided_slice %66 {offsets = [32, 0], sizes = [16, 32], strides = [1, 1]} : vector<48x32xf32> to vector<16x32xf32>
    %72 = arith.mulf %69, %69 : vector<16x32xf32>
    %73 = arith.mulf %70, %70 : vector<16x32xf32>
    %74 = arith.addf %72, %73 : vector<16x32xf32>
    %75 = arith.mulf %71, %71 : vector<16x32xf32>
    %76 = arith.addf %74, %75 : vector<16x32xf32>
    %77 = math.sqrt %76 : vector<16x32xf32>
    %cst_16 = arith.constant 9.99999997E-7 : f32
    %78 = vector.broadcast %cst_16 : f32 to vector<16x32xf32>
    %79 = arith.addf %77, %78 : vector<16x32xf32>
    %80 = tpu.reciprocal %79 {approx = true} : vector<16x32xf32> -> vector<16x32xf32>
    %81 = vector.broadcast %68 : vector<16x1xf32> to vector<16x32xf32>
    %82 = arith.mulf %81, %80 : vector<16x32xf32>
    %83 = vector.broadcast %67 : vector<16x1xf32> to vector<16x32xf32>
    %84 = arith.addf %83, %82 : vector<16x32xf32>
    %85 = arith.mulf %69, %84 : vector<16x32xf32>
    %86 = arith.mulf %70, %84 : vector<16x32xf32>
    %87 = arith.mulf %71, %84 : vector<16x32xf32>
    %88 = tpu.concatenate %85, %86, %87 in 0 : vector<16x32xf32>, vector<16x32xf32>, vector<16x32xf32> -> vector<48x32xf32>
    %c304 = arith.constant 304 : index
    %c0_17 = arith.constant 0 : index
    %89 = vector.load %arg2[%c304, %c0_17] : memref<1328x48xf32, #tpu.memory_space<vmem>>, vector<48x48xf32>
    %cst_18 = arith.constant dense<0.000000e+00> : vector<48x32xf32>
    %90 = tpu.matmul %89, %88, %cst_18 {dimension_numbers = #tpu.dot_dimension_numbers<[1], [0], [0], [1], [0, 0, 1, 1], [], []>} : vector<48x48xf32>, vector<48x32xf32>, vector<48x32xf32> -> vector<48x32xf32>
    %91 = vector.extract_strided_slice %88 {offsets = [0, 0], sizes = [16, 32], strides = [1, 1]} : vector<48x32xf32> to vector<16x32xf32>
    %92 = vector.extract_strided_slice %88 {offsets = [16, 0], sizes = [16, 32], strides = [1, 1]} : vector<48x32xf32> to vector<16x32xf32>
    %93 = vector.extract_strided_slice %88 {offsets = [32, 0], sizes = [16, 32], strides = [1, 1]} : vector<48x32xf32> to vector<16x32xf32>
    %94 = vector.extract_strided_slice %90 {offsets = [0, 0], sizes = [16, 32], strides = [1, 1]} : vector<48x32xf32> to vector<16x32xf32>
    %95 = vector.extract_strided_slice %90 {offsets = [16, 0], sizes = [16, 32], strides = [1, 1]} : vector<48x32xf32> to vector<16x32xf32>
    %96 = vector.extract_strided_slice %90 {offsets = [32, 0], sizes = [16, 32], strides = [1, 1]} : vector<48x32xf32> to vector<16x32xf32>
    %97 = arith.mulf %91, %94 : vector<16x32xf32>
    %98 = arith.mulf %92, %95 : vector<16x32xf32>
    %99 = arith.addf %97, %98 : vector<16x32xf32>
    %100 = arith.mulf %93, %96 : vector<16x32xf32>
    %101 = arith.addf %99, %100 : vector<16x32xf32>
    %102 = arith.mulf %94, %94 : vector<16x32xf32>
    %103 = arith.mulf %95, %95 : vector<16x32xf32>
    %104 = arith.addf %102, %103 : vector<16x32xf32>
    %105 = arith.mulf %96, %96 : vector<16x32xf32>
    %106 = arith.addf %104, %105 : vector<16x32xf32>
    %cst_19 = arith.constant 9.99999997E-7 : f32
    %107 = vector.broadcast %cst_19 : f32 to vector<16x32xf32>
    %108 = arith.addf %106, %107 : vector<16x32xf32>
    %109 = tpu.reciprocal %108 {approx = true} : vector<16x32xf32> -> vector<16x32xf32>
    %110 = arith.mulf %101, %109 : vector<16x32xf32>
    %cst_20 = arith.constant 0.000000e+00 : f32
    %111 = vector.broadcast %cst_20 : f32 to vector<16x32xf32>
    %112 = arith.cmpf oge, %101, %111 : vector<16x32xf32>
    %113 = arith.mulf %110, %94 : vector<16x32xf32>
    %114 = arith.subf %91, %113 : vector<16x32xf32>
    %115 = arith.select %112, %91, %114 : vector<16x32xi1>, vector<16x32xf32>
    %116 = arith.mulf %110, %95 : vector<16x32xf32>
    %117 = arith.subf %92, %116 : vector<16x32xf32>
    %118 = arith.select %112, %92, %117 : vector<16x32xi1>, vector<16x32xf32>
    %119 = arith.mulf %110, %96 : vector<16x32xf32>
    %120 = arith.subf %93, %119 : vector<16x32xf32>
    %121 = arith.select %112, %93, %120 : vector<16x32xi1>, vector<16x32xf32>
    %122 = tpu.concatenate %115, %118, %121 in 0 : vector<16x32xf32>, vector<16x32xf32>, vector<16x32xf32> -> vector<48x32xf32>
    %c0_21 = arith.constant 0 : index
    %c0_22 = arith.constant 0 : index
    %123 = vector.load %arg3[%c0_21, %c0_22] : memref<32x2xf32, #tpu.memory_space<vmem>>, vector<32x2xf32>
    %cst_23 = arith.constant dense<0.000000e+00> : vector<48x2xf32>
    %124 = tpu.matmul %122, %123, %cst_23 {dimension_numbers = #tpu.dot_dimension_numbers<[1], [0], [0], [1], [0, 0, 1, 1], [], []>} : vector<48x32xf32>, vector<32x2xf32>, vector<48x2xf32> -> vector<48x2xf32>
    %c352 = arith.constant 352 : index
    %c0_24 = arith.constant 0 : index
    %125 = vector.load %arg2[%c352, %c0_24] : memref<1328x48xf32, #tpu.memory_space<vmem>>, vector<48x48xf32>
    %cst_25 = arith.constant dense<0.000000e+00> : vector<48x2xf32>
    %126 = tpu.matmul %125, %124, %cst_25 {dimension_numbers = #tpu.dot_dimension_numbers<[1], [0], [0], [1], [0, 0, 1, 1], [], []>} : vector<48x48xf32>, vector<48x2xf32>, vector<48x2xf32> -> vector<48x2xf32>
    %c400 = arith.constant 400 : index
    %c0_26 = arith.constant 0 : index
    %127 = vector.load %arg2[%c400, %c0_26] : memref<1328x48xf32, #tpu.memory_space<vmem>>, vector<48x48xf32>
    %cst_27 = arith.constant dense<0.000000e+00> : vector<48x2xf32>
    %128 = tpu.matmul %127, %124, %cst_27 {dimension_numbers = #tpu.dot_dimension_numbers<[1], [0], [0], [1], [0, 0, 1, 1], [], []>} : vector<48x48xf32>, vector<48x2xf32>, vector<48x2xf32> -> vector<48x2xf32>
    %c448 = arith.constant 448 : index
    %c0_28 = arith.constant 0 : index
    %129 = vector.load %arg2[%c448, %c0_28] : memref<1328x48xf32, #tpu.memory_space<vmem>>, vector<48x48xf32>
    %cst_29 = arith.constant dense<0.000000e+00> : vector<48x2xf32>
    %130 = tpu.matmul %129, %124, %cst_29 {dimension_numbers = #tpu.dot_dimension_numbers<[1], [0], [0], [1], [0, 0, 1, 1], [], []>} : vector<48x48xf32>, vector<48x2xf32>, vector<48x2xf32> -> vector<48x2xf32>
    %c496 = arith.constant 496 : index
    %c0_30 = arith.constant 0 : index
    %131 = vector.load %arg2[%c496, %c0_30] : memref<1328x48xf32, #tpu.memory_space<vmem>>, vector<48x48xf32>
    %cst_31 = arith.constant dense<0.000000e+00> : vector<48x2xf32>
    %132 = tpu.matmul %131, %124, %cst_31 {dimension_numbers = #tpu.dot_dimension_numbers<[1], [0], [0], [1], [0, 0, 1, 1], [], []>} : vector<48x48xf32>, vector<48x2xf32>, vector<48x2xf32> -> vector<48x2xf32>
    %c544 = arith.constant 544 : index
    %c0_32 = arith.constant 0 : index
    %133 = vector.load %arg2[%c544, %c0_32] : memref<1328x48xf32, #tpu.memory_space<vmem>>, vector<48x48xf32>
    %cst_33 = arith.constant dense<0.000000e+00> : vector<48x2xf32>
    %134 = tpu.matmul %133, %124, %cst_33 {dimension_numbers = #tpu.dot_dimension_numbers<[1], [0], [0], [1], [0, 0, 1, 1], [], []>} : vector<48x48xf32>, vector<48x2xf32>, vector<48x2xf32> -> vector<48x2xf32>
    %c592 = arith.constant 592 : index
    %c0_34 = arith.constant 0 : index
    %135 = vector.load %arg2[%c592, %c0_34] : memref<1328x48xf32, #tpu.memory_space<vmem>>, vector<48x48xf32>
    %cst_35 = arith.constant dense<0.000000e+00> : vector<48x2xf32>
    %136 = tpu.matmul %135, %124, %cst_35 {dimension_numbers = #tpu.dot_dimension_numbers<[1], [0], [0], [1], [0, 0, 1, 1], [], []>} : vector<48x48xf32>, vector<48x2xf32>, vector<48x2xf32> -> vector<48x2xf32>
    %c640 = arith.constant 640 : index
    %c0_36 = arith.constant 0 : index
    %137 = vector.load %arg2[%c640, %c0_36] : memref<1328x48xf32, #tpu.memory_space<vmem>>, vector<48x48xf32>
    %cst_37 = arith.constant dense<0.000000e+00> : vector<48x2xf32>
    %138 = tpu.matmul %137, %124, %cst_37 {dimension_numbers = #tpu.dot_dimension_numbers<[1], [0], [0], [1], [0, 0, 1, 1], [], []>} : vector<48x48xf32>, vector<48x2xf32>, vector<48x2xf32> -> vector<48x2xf32>
    %c688 = arith.constant 688 : index
    %c0_38 = arith.constant 0 : index
    %139 = vector.load %arg2[%c688, %c0_38] : memref<1328x48xf32, #tpu.memory_space<vmem>>, vector<48x48xf32>
    %cst_39 = arith.constant dense<0.000000e+00> : vector<48x2xf32>
    %140 = tpu.matmul %139, %124, %cst_39 {dimension_numbers = #tpu.dot_dimension_numbers<[1], [0], [0], [1], [0, 0, 1, 1], [], []>} : vector<48x48xf32>, vector<48x2xf32>, vector<48x2xf32> -> vector<48x2xf32>
    %141 = tpu.concatenate %126, %128, %130, %132, %134, %136, %138, %140 in 1 : vector<48x2xf32>, vector<48x2xf32>, vector<48x2xf32>, vector<48x2xf32>, vector<48x2xf32>, vector<48x2xf32>, vector<48x2xf32>, vector<48x2xf32> -> vector<48x16xf32>
    %c736 = arith.constant 736 : index
    %c0_40 = arith.constant 0 : index
    %142 = vector.load %arg2[%c736, %c0_40] : memref<1328x48xf32, #tpu.memory_space<vmem>>, vector<64x48xf32>
    %cst_41 = arith.constant dense<0.000000e+00> : vector<64x16xf32>
    %143 = tpu.matmul %142, %141, %cst_41 {dimension_numbers = #tpu.dot_dimension_numbers<[1], [0], [0], [1], [0, 0, 1, 1], [], []>} : vector<64x48xf32>, vector<48x16xf32>, vector<64x16xf32> -> vector<64x16xf32>
    %c800 = arith.constant 800 : index
    %c0_42 = arith.constant 0 : index
    %144 = vector.load %arg2[%c800, %c0_42] : memref<1328x48xf32, #tpu.memory_space<vmem>>, vector<128x48xf32>
    %cst_43 = arith.constant dense<0.000000e+00> : vector<128x32xf32>
    %145 = tpu.matmul %144, %122, %cst_43 {dimension_numbers = #tpu.dot_dimension_numbers<[1], [0], [0], [1], [0, 0, 1, 1], [], []>} : vector<128x48xf32>, vector<48x32xf32>, vector<128x32xf32> -> vector<128x32xf32>
    %146 = vector.extract_strided_slice %145 {offsets = [0, 0], sizes = [64, 32], strides = [1, 1]} : vector<128x32xf32> to vector<64x32xf32>
    %147 = vector.extract_strided_slice %145 {offsets = [64, 0], sizes = [64, 32], strides = [1, 1]} : vector<128x32xf32> to vector<64x32xf32>
    %c0_44 = arith.constant 0 : index
    %c0_45 = arith.constant 0 : index
    %148 = vector.load %arg5[%c0_44, %c0_45] : memref<16x32xf32, #tpu.memory_space<vmem>>, vector<16x32xf32>
    %149 = vector.extract_strided_slice %143 {offsets = [0, 0], sizes = [16, 16], strides = [1, 1]} : vector<64x16xf32> to vector<16x16xf32>
    %150 = vector.extract_strided_slice %146 {offsets = [0, 0], sizes = [16, 32], strides = [1, 1]} : vector<64x32xf32> to vector<16x32xf32>
    %151 = vector.extract_strided_slice %147 {offsets = [0, 0], sizes = [16, 32], strides = [1, 1]} : vector<64x32xf32> to vector<16x32xf32>
    %cst_46 = arith.constant dense<0.000000e+00> : vector<16x32xf32>
    %152 = tpu.matmul %149, %150, %cst_46 {dimension_numbers = #tpu.dot_dimension_numbers<[0], [0], [1], [1], [0, 1, 1, 1], [], []>} : vector<16x16xf32>, vector<16x32xf32>, vector<16x32xf32> -> vector<16x32xf32>
    %153 = arith.addf %152, %148 : vector<16x32xf32>
    %cst_47 = arith.constant dense<0xFF800000> : vector<16xf32>
    %154 = vector.multi_reduction <maximumf>, %153, %cst_47 [1] : vector<16x32xf32> to vector<16xf32>
    %155 = vector.shape_cast %154 : vector<16xf32> to vector<16x1xf32>
    %156 = vector.broadcast %155 : vector<16x1xf32> to vector<16x32xf32>
    %157 = arith.subf %153, %156 : vector<16x32xf32>
    %158 = math.exp %157 : vector<16x32xf32>
    %cst_48 = arith.constant dense<0.000000e+00> : vector<16xf32>
    %159 = vector.multi_reduction <add>, %158, %cst_48 [1] : vector<16x32xf32> to vector<16xf32>
    %160 = vector.shape_cast %159 : vector<16xf32> to vector<16x1xf32>
    %161 = tpu.reciprocal %160 {approx = true} : vector<16x1xf32> -> vector<16x1xf32>
    %162 = vector.broadcast %161 : vector<16x1xf32> to vector<16x32xf32>
    %163 = arith.mulf %158, %162 : vector<16x32xf32>
    %cst_49 = arith.constant dense<0.000000e+00> : vector<16x16xf32>
    %164 = tpu.matmul %151, %163, %cst_49 {dimension_numbers = #tpu.dot_dimension_numbers<[1], [1], [0], [0], [0, 0, 1, 0], [], []>} : vector<16x32xf32>, vector<16x32xf32>, vector<16x16xf32> -> vector<16x16xf32>
    %165 = vector.extract_strided_slice %143 {offsets = [16, 0], sizes = [16, 16], strides = [1, 1]} : vector<64x16xf32> to vector<16x16xf32>
    %166 = vector.extract_strided_slice %146 {offsets = [16, 0], sizes = [16, 32], strides = [1, 1]} : vector<64x32xf32> to vector<16x32xf32>
    %167 = vector.extract_strided_slice %147 {offsets = [16, 0], sizes = [16, 32], strides = [1, 1]} : vector<64x32xf32> to vector<16x32xf32>
    %cst_50 = arith.constant dense<0.000000e+00> : vector<16x32xf32>
    %168 = tpu.matmul %165, %166, %cst_50 {dimension_numbers = #tpu.dot_dimension_numbers<[0], [0], [1], [1], [0, 1, 1, 1], [], []>} : vector<16x16xf32>, vector<16x32xf32>, vector<16x32xf32> -> vector<16x32xf32>
    %169 = arith.addf %168, %148 : vector<16x32xf32>
    %cst_51 = arith.constant dense<0xFF800000> : vector<16xf32>
    %170 = vector.multi_reduction <maximumf>, %169, %cst_51 [1] : vector<16x32xf32> to vector<16xf32>
    %171 = vector.shape_cast %170 : vector<16xf32> to vector<16x1xf32>
    %172 = vector.broadcast %171 : vector<16x1xf32> to vector<16x32xf32>
    %173 = arith.subf %169, %172 : vector<16x32xf32>
    %174 = math.exp %173 : vector<16x32xf32>
    %cst_52 = arith.constant dense<0.000000e+00> : vector<16xf32>
    %175 = vector.multi_reduction <add>, %174, %cst_52 [1] : vector<16x32xf32> to vector<16xf32>
    %176 = vector.shape_cast %175 : vector<16xf32> to vector<16x1xf32>
    %177 = tpu.reciprocal %176 {approx = true} : vector<16x1xf32> -> vector<16x1xf32>
    %178 = vector.broadcast %177 : vector<16x1xf32> to vector<16x32xf32>
    %179 = arith.mulf %174, %178 : vector<16x32xf32>
    %cst_53 = arith.constant dense<0.000000e+00> : vector<16x16xf32>
    %180 = tpu.matmul %167, %179, %cst_53 {dimension_numbers = #tpu.dot_dimension_numbers<[1], [1], [0], [0], [0, 0, 1, 0], [], []>} : vector<16x32xf32>, vector<16x32xf32>, vector<16x16xf32> -> vector<16x16xf32>
    %181 = vector.extract_strided_slice %143 {offsets = [32, 0], sizes = [16, 16], strides = [1, 1]} : vector<64x16xf32> to vector<16x16xf32>
    %182 = vector.extract_strided_slice %146 {offsets = [32, 0], sizes = [16, 32], strides = [1, 1]} : vector<64x32xf32> to vector<16x32xf32>
    %183 = vector.extract_strided_slice %147 {offsets = [32, 0], sizes = [16, 32], strides = [1, 1]} : vector<64x32xf32> to vector<16x32xf32>
    %cst_54 = arith.constant dense<0.000000e+00> : vector<16x32xf32>
    %184 = tpu.matmul %181, %182, %cst_54 {dimension_numbers = #tpu.dot_dimension_numbers<[0], [0], [1], [1], [0, 1, 1, 1], [], []>} : vector<16x16xf32>, vector<16x32xf32>, vector<16x32xf32> -> vector<16x32xf32>
    %185 = arith.addf %184, %148 : vector<16x32xf32>
    %cst_55 = arith.constant dense<0xFF800000> : vector<16xf32>
    %186 = vector.multi_reduction <maximumf>, %185, %cst_55 [1] : vector<16x32xf32> to vector<16xf32>
    %187 = vector.shape_cast %186 : vector<16xf32> to vector<16x1xf32>
    %188 = vector.broadcast %187 : vector<16x1xf32> to vector<16x32xf32>
    %189 = arith.subf %185, %188 : vector<16x32xf32>
    %190 = math.exp %189 : vector<16x32xf32>
    %cst_56 = arith.constant dense<0.000000e+00> : vector<16xf32>
    %191 = vector.multi_reduction <add>, %190, %cst_56 [1] : vector<16x32xf32> to vector<16xf32>
    %192 = vector.shape_cast %191 : vector<16xf32> to vector<16x1xf32>
    %193 = tpu.reciprocal %192 {approx = true} : vector<16x1xf32> -> vector<16x1xf32>
    %194 = vector.broadcast %193 : vector<16x1xf32> to vector<16x32xf32>
    %195 = arith.mulf %190, %194 : vector<16x32xf32>
    %cst_57 = arith.constant dense<0.000000e+00> : vector<16x16xf32>
    %196 = tpu.matmul %183, %195, %cst_57 {dimension_numbers = #tpu.dot_dimension_numbers<[1], [1], [0], [0], [0, 0, 1, 0], [], []>} : vector<16x32xf32>, vector<16x32xf32>, vector<16x16xf32> -> vector<16x16xf32>
    %197 = vector.extract_strided_slice %143 {offsets = [48, 0], sizes = [16, 16], strides = [1, 1]} : vector<64x16xf32> to vector<16x16xf32>
    %198 = vector.extract_strided_slice %146 {offsets = [48, 0], sizes = [16, 32], strides = [1, 1]} : vector<64x32xf32> to vector<16x32xf32>
    %199 = vector.extract_strided_slice %147 {offsets = [48, 0], sizes = [16, 32], strides = [1, 1]} : vector<64x32xf32> to vector<16x32xf32>
    %cst_58 = arith.constant dense<0.000000e+00> : vector<16x32xf32>
    %200 = tpu.matmul %197, %198, %cst_58 {dimension_numbers = #tpu.dot_dimension_numbers<[0], [0], [1], [1], [0, 1, 1, 1], [], []>} : vector<16x16xf32>, vector<16x32xf32>, vector<16x32xf32> -> vector<16x32xf32>
    %201 = arith.addf %200, %148 : vector<16x32xf32>
    %cst_59 = arith.constant dense<0xFF800000> : vector<16xf32>
    %202 = vector.multi_reduction <maximumf>, %201, %cst_59 [1] : vector<16x32xf32> to vector<16xf32>
    %203 = vector.shape_cast %202 : vector<16xf32> to vector<16x1xf32>
    %204 = vector.broadcast %203 : vector<16x1xf32> to vector<16x32xf32>
    %205 = arith.subf %201, %204 : vector<16x32xf32>
    %206 = math.exp %205 : vector<16x32xf32>
    %cst_60 = arith.constant dense<0.000000e+00> : vector<16xf32>
    %207 = vector.multi_reduction <add>, %206, %cst_60 [1] : vector<16x32xf32> to vector<16xf32>
    %208 = vector.shape_cast %207 : vector<16xf32> to vector<16x1xf32>
    %209 = tpu.reciprocal %208 {approx = true} : vector<16x1xf32> -> vector<16x1xf32>
    %210 = vector.broadcast %209 : vector<16x1xf32> to vector<16x32xf32>
    %211 = arith.mulf %206, %210 : vector<16x32xf32>
    %cst_61 = arith.constant dense<0.000000e+00> : vector<16x16xf32>
    %212 = tpu.matmul %199, %211, %cst_61 {dimension_numbers = #tpu.dot_dimension_numbers<[1], [1], [0], [0], [0, 0, 1, 0], [], []>} : vector<16x32xf32>, vector<16x32xf32>, vector<16x16xf32> -> vector<16x16xf32>
    %213 = tpu.concatenate %164, %180, %196, %212 in 0 : vector<16x16xf32>, vector<16x16xf32>, vector<16x16xf32>, vector<16x16xf32> -> vector<64x16xf32>
    %c928 = arith.constant 928 : index
    %c0_62 = arith.constant 0 : index
    %214 = vector.load %arg2[%c928, %c0_62] : memref<1328x48xf32, #tpu.memory_space<vmem>>, vector<64x48xf32>
    %cst_63 = arith.constant dense<0.000000e+00> : vector<48x16xf32>
    %215 = tpu.matmul %214, %213, %cst_63 {dimension_numbers = #tpu.dot_dimension_numbers<[0], [0], [1], [1], [0, 1, 1, 1], [], []>} : vector<64x48xf32>, vector<64x16xf32>, vector<48x16xf32> -> vector<48x16xf32>
    %216 = arith.addf %141, %215 : vector<48x16xf32>
    %c992 = arith.constant 992 : index
    %c0_64 = arith.constant 0 : index
    %217 = vector.load %arg2[%c992, %c0_64] : memref<1328x48xf32, #tpu.memory_space<vmem>>, vector<48x48xf32>
    %cst_65 = arith.constant dense<0.000000e+00> : vector<48x16xf32>
    %218 = tpu.matmul %217, %216, %cst_65 {dimension_numbers = #tpu.dot_dimension_numbers<[1], [0], [0], [1], [0, 0, 1, 1], [], []>} : vector<48x48xf32>, vector<48x16xf32>, vector<48x16xf32> -> vector<48x16xf32>
    %c1040 = arith.constant 1040 : index
    %c0_66 = arith.constant 0 : index
    %219 = vector.load %arg2[%c1040, %c0_66] : memref<1328x48xf32, #tpu.memory_space<vmem>>, vector<48x48xf32>
    %cst_67 = arith.constant dense<0.000000e+00> : vector<48x16xf32>
    %220 = tpu.matmul %219, %218, %cst_67 {dimension_numbers = #tpu.dot_dimension_numbers<[1], [0], [0], [1], [0, 0, 1, 1], [], []>} : vector<48x48xf32>, vector<48x16xf32>, vector<48x16xf32> -> vector<48x16xf32>
    %221 = vector.extract_strided_slice %218 {offsets = [0, 0], sizes = [16, 16], strides = [1, 1]} : vector<48x16xf32> to vector<16x16xf32>
    %222 = vector.extract_strided_slice %218 {offsets = [16, 0], sizes = [16, 16], strides = [1, 1]} : vector<48x16xf32> to vector<16x16xf32>
    %223 = vector.extract_strided_slice %218 {offsets = [32, 0], sizes = [16, 16], strides = [1, 1]} : vector<48x16xf32> to vector<16x16xf32>
    %224 = vector.extract_strided_slice %220 {offsets = [0, 0], sizes = [16, 16], strides = [1, 1]} : vector<48x16xf32> to vector<16x16xf32>
    %225 = vector.extract_strided_slice %220 {offsets = [16, 0], sizes = [16, 16], strides = [1, 1]} : vector<48x16xf32> to vector<16x16xf32>
    %226 = vector.extract_strided_slice %220 {offsets = [32, 0], sizes = [16, 16], strides = [1, 1]} : vector<48x16xf32> to vector<16x16xf32>
    %227 = arith.mulf %221, %224 : vector<16x16xf32>
    %228 = arith.mulf %222, %225 : vector<16x16xf32>
    %229 = arith.addf %227, %228 : vector<16x16xf32>
    %230 = arith.mulf %223, %226 : vector<16x16xf32>
    %231 = arith.addf %229, %230 : vector<16x16xf32>
    %232 = arith.mulf %224, %224 : vector<16x16xf32>
    %233 = arith.mulf %225, %225 : vector<16x16xf32>
    %234 = arith.addf %232, %233 : vector<16x16xf32>
    %235 = arith.mulf %226, %226 : vector<16x16xf32>
    %236 = arith.addf %234, %235 : vector<16x16xf32>
    %cst_68 = arith.constant 9.99999997E-7 : f32
    %237 = vector.broadcast %cst_68 : f32 to vector<16x16xf32>
    %238 = arith.addf %236, %237 : vector<16x16xf32>
    %239 = tpu.reciprocal %238 {approx = true} : vector<16x16xf32> -> vector<16x16xf32>
    %240 = arith.mulf %231, %239 : vector<16x16xf32>
    %cst_69 = arith.constant 0.000000e+00 : f32
    %241 = vector.broadcast %cst_69 : f32 to vector<16x16xf32>
    %242 = arith.cmpf oge, %231, %241 : vector<16x16xf32>
    %243 = arith.mulf %240, %224 : vector<16x16xf32>
    %244 = arith.subf %221, %243 : vector<16x16xf32>
    %245 = arith.select %242, %221, %244 : vector<16x16xi1>, vector<16x16xf32>
    %246 = arith.mulf %240, %225 : vector<16x16xf32>
    %247 = arith.subf %222, %246 : vector<16x16xf32>
    %248 = arith.select %242, %222, %247 : vector<16x16xi1>, vector<16x16xf32>
    %249 = arith.mulf %240, %226 : vector<16x16xf32>
    %250 = arith.subf %223, %249 : vector<16x16xf32>
    %251 = arith.select %242, %223, %250 : vector<16x16xi1>, vector<16x16xf32>
    %252 = tpu.concatenate %245, %248, %251 in 0 : vector<16x16xf32>, vector<16x16xf32>, vector<16x16xf32> -> vector<48x16xf32>
    %c1088 = arith.constant 1088 : index
    %c0_70 = arith.constant 0 : index
    %253 = vector.load %arg2[%c1088, %c0_70] : memref<1328x48xf32, #tpu.memory_space<vmem>>, vector<48x48xf32>
    %cst_71 = arith.constant dense<0.000000e+00> : vector<48x16xf32>
    %254 = tpu.matmul %253, %252, %cst_71 {dimension_numbers = #tpu.dot_dimension_numbers<[1], [0], [0], [1], [0, 0, 1, 1], [], []>} : vector<48x48xf32>, vector<48x16xf32>, vector<48x16xf32> -> vector<48x16xf32>
    %255 = arith.addf %216, %254 : vector<48x16xf32>
    %c0_72 = arith.constant 0 : index
    %c0_73 = arith.constant 0 : index
    %256 = vector.load %arg4[%c0_72, %c0_73] : memref<2x16xf32, #tpu.memory_space<vmem>>, vector<2x16xf32>
    %cst_74 = arith.constant dense<0.000000e+00> : vector<2x48xf32>
    %257 = tpu.matmul %256, %255, %cst_74 {dimension_numbers = #tpu.dot_dimension_numbers<[1], [1], [0], [0], [0, 0, 1, 0], [], []>} : vector<2x16xf32>, vector<48x16xf32>, vector<2x48xf32> -> vector<2x48xf32>
    %c1136 = arith.constant 1136 : index
    %c0_75 = arith.constant 0 : index
    %258 = vector.load %arg2[%c1136, %c0_75] : memref<1328x48xf32, #tpu.memory_space<vmem>>, vector<144x48xf32>
    %cst_76 = arith.constant dense<0.000000e+00> : vector<2x144xf32>
    %259 = tpu.matmul %257, %258, %cst_76 {dimension_numbers = #tpu.dot_dimension_numbers<[1], [1], [0], [0], [0, 0, 1, 0], [], []>} : vector<2x48xf32>, vector<144x48xf32>, vector<2x144xf32> -> vector<2x144xf32>
    %260 = vector.extract_strided_slice %259 {offsets = [0, 0], sizes = [2, 16], strides = [1, 1]} : vector<2x144xf32> to vector<2x16xf32>
    %261 = vector.extract_strided_slice %259 {offsets = [0, 16], sizes = [2, 16], strides = [1, 1]} : vector<2x144xf32> to vector<2x16xf32>
    %262 = vector.extract_strided_slice %259 {offsets = [0, 32], sizes = [2, 16], strides = [1, 1]} : vector<2x144xf32> to vector<2x16xf32>
    %263 = vector.extract_strided_slice %259 {offsets = [0, 48], sizes = [2, 16], strides = [1, 1]} : vector<2x144xf32> to vector<2x16xf32>
    %264 = vector.extract_strided_slice %259 {offsets = [0, 64], sizes = [2, 16], strides = [1, 1]} : vector<2x144xf32> to vector<2x16xf32>
    %265 = vector.extract_strided_slice %259 {offsets = [0, 80], sizes = [2, 16], strides = [1, 1]} : vector<2x144xf32> to vector<2x16xf32>
    %266 = vector.extract_strided_slice %259 {offsets = [0, 96], sizes = [2, 16], strides = [1, 1]} : vector<2x144xf32> to vector<2x16xf32>
    %267 = vector.extract_strided_slice %259 {offsets = [0, 112], sizes = [2, 16], strides = [1, 1]} : vector<2x144xf32> to vector<2x16xf32>
    %268 = vector.extract_strided_slice %259 {offsets = [0, 128], sizes = [2, 16], strides = [1, 1]} : vector<2x144xf32> to vector<2x16xf32>
    %269 = arith.mulf %263, %263 : vector<2x16xf32>
    %270 = arith.mulf %264, %264 : vector<2x16xf32>
    %271 = arith.addf %269, %270 : vector<2x16xf32>
    %272 = arith.mulf %265, %265 : vector<2x16xf32>
    %273 = arith.addf %271, %272 : vector<2x16xf32>
    %274 = math.sqrt %273 : vector<2x16xf32>
    %cst_77 = arith.constant 9.99999997E-7 : f32
    %275 = vector.broadcast %cst_77 : f32 to vector<2x16xf32>
    %276 = arith.addf %274, %275 : vector<2x16xf32>
    %277 = arith.divf %263, %276 : vector<2x16xf32>
    %278 = arith.divf %264, %276 : vector<2x16xf32>
    %279 = arith.divf %265, %276 : vector<2x16xf32>
    %280 = arith.mulf %277, %266 : vector<2x16xf32>
    %281 = arith.mulf %278, %267 : vector<2x16xf32>
    %282 = arith.addf %280, %281 : vector<2x16xf32>
    %283 = arith.mulf %279, %268 : vector<2x16xf32>
    %284 = arith.addf %282, %283 : vector<2x16xf32>
    %285 = arith.mulf %284, %277 : vector<2x16xf32>
    %286 = arith.subf %266, %285 : vector<2x16xf32>
    %287 = arith.mulf %284, %278 : vector<2x16xf32>
    %288 = arith.subf %267, %287 : vector<2x16xf32>
    %289 = arith.mulf %284, %279 : vector<2x16xf32>
    %290 = arith.subf %268, %289 : vector<2x16xf32>
    %291 = arith.mulf %286, %286 : vector<2x16xf32>
    %292 = arith.mulf %288, %288 : vector<2x16xf32>
    %293 = arith.addf %291, %292 : vector<2x16xf32>
    %294 = arith.mulf %290, %290 : vector<2x16xf32>
    %295 = arith.addf %293, %294 : vector<2x16xf32>
    %296 = math.sqrt %295 : vector<2x16xf32>
    %cst_78 = arith.constant 9.99999997E-7 : f32
    %297 = vector.broadcast %cst_78 : f32 to vector<2x16xf32>
    %298 = arith.addf %296, %297 : vector<2x16xf32>
    %299 = arith.divf %286, %298 : vector<2x16xf32>
    %300 = arith.divf %288, %298 : vector<2x16xf32>
    %301 = arith.divf %290, %298 : vector<2x16xf32>
    %302 = arith.mulf %278, %301 : vector<2x16xf32>
    %303 = arith.mulf %279, %300 : vector<2x16xf32>
    %304 = arith.subf %302, %303 : vector<2x16xf32>
    %305 = arith.mulf %279, %299 : vector<2x16xf32>
    %306 = arith.mulf %277, %301 : vector<2x16xf32>
    %307 = arith.subf %305, %306 : vector<2x16xf32>
    %308 = arith.mulf %277, %300 : vector<2x16xf32>
    %309 = arith.mulf %278, %299 : vector<2x16xf32>
    %310 = arith.subf %308, %309 : vector<2x16xf32>
    %311 = arith.mulf %260, %277 : vector<2x16xf32>
    %312 = arith.mulf %261, %299 : vector<2x16xf32>
    %313 = arith.addf %311, %312 : vector<2x16xf32>
    %314 = arith.mulf %262, %304 : vector<2x16xf32>
    %315 = arith.addf %313, %314 : vector<2x16xf32>
    %316 = arith.mulf %260, %278 : vector<2x16xf32>
    %317 = arith.mulf %261, %300 : vector<2x16xf32>
    %318 = arith.addf %316, %317 : vector<2x16xf32>
    %319 = arith.mulf %262, %307 : vector<2x16xf32>
    %320 = arith.addf %318, %319 : vector<2x16xf32>
    %321 = arith.mulf %260, %279 : vector<2x16xf32>
    %322 = arith.mulf %261, %301 : vector<2x16xf32>
    %323 = arith.addf %321, %322 : vector<2x16xf32>
    %324 = arith.mulf %262, %310 : vector<2x16xf32>
    %325 = arith.addf %323, %324 : vector<2x16xf32>
    %326 = tpu.concatenate %315, %320, %325 in 1 : vector<2x16xf32>, vector<2x16xf32>, vector<2x16xf32> -> vector<2x48xf32>
    %c1280 = arith.constant 1280 : index
    %c0_79 = arith.constant 0 : index
    %327 = vector.load %arg2[%c1280, %c0_79] : memref<1328x48xf32, #tpu.memory_space<vmem>>, vector<48x48xf32>
    %cst_80 = arith.constant dense<0.000000e+00> : vector<2x48xf32>
    %328 = tpu.matmul %326, %327, %cst_80 {dimension_numbers = #tpu.dot_dimension_numbers<[1], [1], [0], [0], [0, 0, 1, 0], [], []>} : vector<2x48xf32>, vector<48x48xf32>, vector<2x48xf32> -> vector<2x48xf32>
    %cst_81 = arith.constant 0.000000e+00 : f32
    %329 = vector.broadcast %cst_81 : f32 to vector<2x32xf32>
    %330 = vector.extract_strided_slice %259 {offsets = [0, 0], sizes = [2, 48], strides = [1, 1]} : vector<2x144xf32> to vector<2x48xf32>
    %331 = tpu.concatenate %330, %328, %329 in 1 : vector<2x48xf32>, vector<2x48xf32>, vector<2x32xf32> -> vector<2x128xf32>
    %c0_82 = arith.constant 0 : index
    %c0_83 = arith.constant 0 : index
    %332 = vector.load %arg6[%c0_82, %c0_83] : memref<2x128xf32, #tpu.memory_space<vmem>>, vector<2x128xf32>
    tpu.vector_store %arg6[%c0_82, %c0_83], %331 {strides = array<i32>} : memref<2x128xf32, #tpu.memory_space<vmem>>, vector<2x128xf32>,
    return
  }
  func.func @transform_0(%arg0: i32) -> (i32, i32) {
    %c0_i32 = arith.constant 0 : i32
    %c0_i32_0 = arith.constant 0 : i32
    return %c0_i32, %arg0 : i32, i32
  }
  func.func @transform_1(%arg0: i32) -> (i32, i32) {
    %c0_i32 = arith.constant 0 : i32
    %c0_i32_0 = arith.constant 0 : i32
    %c0_i32_1 = arith.constant 0 : i32
    return %c0_i32, %c0_i32_0 : i32, i32
  }
  func.func @transform_2(%arg0: i32) -> (i32, i32) {
    %c0_i32 = arith.constant 0 : i32
    %c0_i32_0 = arith.constant 0 : i32
    %c0_i32_1 = arith.constant 0 : i32
    return %c0_i32, %c0_i32_0 : i32, i32
  }
  func.func @transform_3(%arg0: i32) -> (i32, i32) {
    %c0_i32 = arith.constant 0 : i32
    %c0_i32_0 = arith.constant 0 : i32
    %c0_i32_1 = arith.constant 0 : i32
    return %c0_i32, %c0_i32_0 : i32, i32
  }
  func.func @transform_4(%arg0: i32) -> (i32, i32) {
    %c0_i32 = arith.constant 0 : i32
    %c0_i32_0 = arith.constant 0 : i32
    %c0_i32_1 = arith.constant 0 : i32
    return %c0_i32, %c0_i32_0 : i32, i32
  }
  func.func @transform_5(%arg0: i32) -> (i32, i32) {
    %c0_i32 = arith.constant 0 : i32
    %c0_i32_0 = arith.constant 0 : i32
    return %arg0, %c0_i32 : i32, i32
  }
}

</mosaic_0001>

<llo_original>
// kernel: vn_transformer_forward.1
$region0: #{vn_transformer_forward.1}
  #allocation0 [shape = 'u32[]', space=smem, size = 0x4, offset = 0x4, fixed_abs, tag = 'smem constant byte address 0x4 - core index']
  #allocation1 [shape = 'u32[144,128]{1,0:T(1,128)}', space=vmem, size = 0x12000, scoped, tag = 'internal scratch']
  %s0 = inlined_call_operand.vmem [shape: f32[3,32], index: 0, kind: input, shape index: {}]
  %s1 = inlined_call_operand.vmem [shape: f32[1328,48], index: 1, kind: input, shape index: {}]
  %s2 = inlined_call_operand.vmem [shape: f32[32,2], index: 2, kind: input, shape index: {}]
  %s3 = inlined_call_operand.vmem [shape: f32[2,16], index: 3, kind: input, shape index: {}]
  %s4 = inlined_call_operand.vmem [shape: f32[16,32], index: 4, kind: input, shape index: {}]
  %s5 = inlined_call_operand.vmem [shape: f32[2,128], index: 5, kind: output, shape index: {}]
  %s6 = sld [smem:[#allocation0]]
  $region30: #{vn_transformer_forward.1} parent=0
    _
  %s8 = ssub.s32 1, %s6
  %s9 = scalar_select 0, %s8, %s6
  // Predicated region
  $region2: #{vn_transformer_forward.1} parent=0 // pred_check
    _
  $region3: #{vn_transformer_forward.1} parent=0 // pred_check_branch
    %11 = sbr.rel (0) target = $region5
  $region4: #{vn_transformer_forward.1} parent=0 // pred_region
    _
  $region5: #{vn_transformer_forward.1} parent=0 // pred_fallthru
    _
  // Predicated region
  $region6: #{vn_transformer_forward.1} parent=0 // pred_check
    _
  $region7: #{vn_transformer_forward.1} parent=0 // pred_check_branch
    %13 = sbr.rel (0) target = $region9
  $region8: #{vn_transformer_forward.1} parent=0 // pred_region
    _
  $region9: #{vn_transformer_forward.1} parent=0 // pred_fallthru
    _
  // Predicated region
  $region10: #{vn_transformer_forward.1} parent=0 // pred_check
    _
  $region11: #{vn_transformer_forward.1} parent=0 // pred_check_branch
    %15 = sbr.rel (0) target = $region13
  $region12: #{vn_transformer_forward.1} parent=0 // pred_region
    _
  $region13: #{vn_transformer_forward.1} parent=0 // pred_fallthru
    _
  // Predicated region
  $region14: #{vn_transformer_forward.1} parent=0 // pred_check
    _
  $region15: #{vn_transformer_forward.1} parent=0 // pred_check_branch
    %17 = sbr.rel (0) target = $region17
  $region16: #{vn_transformer_forward.1} parent=0 // pred_region
    _
  $region17: #{vn_transformer_forward.1} parent=0 // pred_fallthru
    _
  // Predicated region
  $region18: #{vn_transformer_forward.1} parent=0 // pred_check
    _
  $region19: #{vn_transformer_forward.1} parent=0 // pred_check_branch
    %19 = sbr.rel (0) target = $region21
  $region20: #{vn_transformer_forward.1} parent=0 // pred_region
    _
  $region21: #{vn_transformer_forward.1} parent=0 // pred_fallthru
    _
  %v20 = vld [vmem:[%s0] sm:$0x7]
  %v21 = vld [vmem:[%s1] sm:$0xff]
  %v22 = vld [vmem:[%s1 + $0x8] sm:$0xff]
  %v23 = vld [vmem:[%s1 + $0x10] sm:$0xff]
  %v24 = vld [vmem:[%s1 + $0x18] sm:$0xff]
  %v25 = vld [vmem:[%s1 + $0x20] sm:$0xff]
  %v26 = vld [vmem:[%s1 + $0x28] sm:$0xff]
  %v27 = vld [vmem:[%s1 + $0x30] sm:$0xff]
  %v28 = vld [vmem:[%s1 + $0x38] sm:$0xff]
  %v29 = vld [vmem:[%s1 + $0x40] sm:$0xff]
  %v30 = vld [vmem:[%s1 + $0x48] sm:$0xff]
  %v31 = vld [vmem:[%s1 + $0x50] sm:$0xff]
  %v32 = vld [vmem:[%s1 + $0x58] sm:$0xff]
  %34 = vset.pattern.permute.xlu0 0
  %35 = vperm.xlu0 %34, %v27
  %v36 = vpop.permute.xlu0 %35
  %39 = vset.pattern.permute.xlu0 0
  %40 = vperm.xlu0 %39, %v28
  %v41 = vpop.permute.xlu0 %40
  %44 = vset.pattern.permute.xlu0 0
  %45 = vperm.xlu0 %44, %v29
  %v46 = vpop.permute.xlu0 %45
  %49 = vset.pattern.permute.xlu0 0
  %50 = vperm.xlu0 %49, %v30
  %v51 = vpop.permute.xlu0 %50
  %54 = vset.pattern.permute.xlu0 0
  %55 = vperm.xlu0 %54, %v31
  %v56 = vpop.permute.xlu0 %55
  %59 = vset.pattern.permute.xlu0 0
  %60 = vperm.xlu0 %59, %v32
  %v61 = vpop.permute.xlu0 %60
  %vm63 = vcmask 23552
  %v65 = vsel %vm63, %v21, 0
  %v68 = vsel %vm63, %v22, 0
  %v71 = vsel %vm63, %v23, 0
  %v74 = vsel %vm63, %v24, 0
  %v77 = vsel %vm63, %v25, 0
  %v80 = vsel %vm63, %v26, 0
  %vm82 = vcmask 1042432
  %v84 = vsel %vm82, %v20, 0
  %86 = vmatprep.subr.mxu0 0.0
  %87 = vmatpush1.msra.mxu0 %v84
  %88 = vmatprep.subr.mxu0 0.0
  %89 = vmatpush1.msra.mxu0 0.0
  %90 = vmatprep.subr.mxu0 0.0
  %91 = vmatpush1.msra.mxu0 0.0
  %92 = vmatprep.subr.mxu0 0.0
  %93 = vmatpush1.msra.mxu0 0.0
  %94 = vmatprep.subr.mxu0 0.0
  %95 = vmatpush1.msra.mxu0 0.0
  %96 = vmatprep.subr.mxu0 0.0
  %97 = vmatpush1.msra.mxu0 0.0
  %98 = vmatprep.subr.mxu0 0.0
  %99 = vmatpush1.msra.mxu0 0.0
  %100 = vmatprep.subr.mxu0 0.0
  %101 = vmatpush1.msra.mxu0 0.0
  %102 = vmatprep.subr.mxu0 0.0
  %103 = vmatpush1.msra.mxu0 0.0
  %104 = vmatprep.subr.mxu0 0.0
  %105 = vmatpush1.msra.mxu0 0.0
  %106 = vmatprep.subr.mxu0 0.0
  %107 = vmatpush1.msra.mxu0 0.0
  %108 = vmatprep.subr.mxu0 0.0
  %109 = vmatpush1.msra.mxu0 0.0
  %110 = vmatprep.subr.mxu0 0.0
  %111 = vmatpush1.msra.mxu0 0.0
  %112 = vmatprep.subr.mxu0 0.0
  %113 = vmatpush1.msra.mxu0 0.0
  %114 = vmatprep.subr.mxu0 0.0
  %115 = vmatpush1.msra.mxu0 0.0
  %116 = vmatprep.subr.mxu0 0.0
  %117 = vmatpush1.msra.mxu0 0.0
  %118 = vmatprep.subr.mxu0 0.0
  %119 = vmatpush1.msra.mxu0 0.0
  %120 = vmatprep.subr.mxu0 0.0
  %121 = vmatpush1.msra.mxu0 0.0
  %122 = vmatprep.subr.mxu0 0.0
  %123 = vmatpush1.msra.mxu0 0.0
  %124 = vmatprep.subr.mxu0 0.0
  %125 = vmatpush1.msra.mxu0 0.0
  %126 = vmatprep.subr.mxu0 0.0
  %127 = vmatpush1.msra.mxu0 0.0
  %128 = vmatprep.subr.mxu0 0.0
  %129 = vmatpush1.msra.mxu0 0.0
  %130 = vmatprep.subr.mxu0 0.0
  %131 = vmatpush1.msra.mxu0 0.0
  %132 = vmatprep.subr.mxu0 0.0
  %133 = vmatpush1.msra.mxu0 0.0
  %134 = vmatprep.subr.mxu0 0.0
  %135 = vmatpush1.msra.mxu0 0.0
  %136 = vmatprep.subr.mxu0 0.0
  %137 = vmatpush1.msra.mxu0 0.0
  %138 = vmatprep.subr.mxu0 0.0
  %139 = vmatpush1.msra.mxu0 0.0
  %140 = vmatprep.subr.mxu0 0.0
  %141 = vmatpush1.msra.mxu0 0.0
  %142 = vmatprep.subr.mxu0 0.0
  %143 = vmatpush1.msra.mxu0 0.0
  %144 = vmatprep.subr.mxu0 0.0
  %145 = vmatpush1.msra.mxu0 0.0
  %146 = vmatprep.subr.mxu0 0.0
  %147 = vmatpush1.msra.mxu0 0.0
  %148 = vmatprep.subr.mxu0 0.0
  %149 = vmatpush1.msra.mxu0 0.0
  %150 = vmatprep.mubr.f32.mxu0 0.0
  %151 = vmatmul.mubr.f32.gmra.mrb[0].mxu0 %v65
  %v152 = vpop.f32.mrb[0].mxu0
  %v153 = vadd.f32 %v36, %v152
  %v154 = vpop.f32.mrb[0].mxu0
  %155 = vmatprep.mubr.f32.mxu0 0.0
  %156 = vmatmul.mubr.f32.gmra.mrb[0].mxu0 %v68
  %v157 = vpop.f32.mrb[0].mxu0
  %v158 = vadd.f32 %v41, %v157
  %v159 = vpop.f32.mrb[0].mxu0
  %160 = vmatprep.mubr.f32.mxu0 0.0
  %161 = vmatmul.mubr.f32.gmra.mrb[0].mxu0 %v71
  %v162 = vpop.f32.mrb[0].mxu0
  %v163 = vadd.f32 %v46, %v162
  %v164 = vpop.f32.mrb[0].mxu0
  %165 = vmatprep.mubr.f32.mxu0 0.0
  %166 = vmatmul.mubr.f32.gmra.mrb[0].mxu0 %v74
  %v167 = vpop.f32.mrb[0].mxu0
  %v168 = vadd.f32 %v51, %v167
  %v169 = vpop.f32.mrb[0].mxu0
  %170 = vmatprep.mubr.f32.mxu0 0.0
  %171 = vmatmul.mubr.f32.gmra.mrb[0].mxu0 %v77
  %v172 = vpop.f32.mrb[0].mxu0
  %v173 = vadd.f32 %v56, %v172
  %v174 = vpop.f32.mrb[0].mxu0
  %175 = vmatprep.mubr.f32.mxu0 0.0
  %176 = vmatmul.mubr.f32.gmra.mrb[0].mxu0 %v80
  %v177 = vpop.f32.mrb[0].mxu0
  %v178 = vadd.f32 %v61, %v177
  %v179 = vpop.f32.mrb[0].mxu0
  %180 = vdwg.mxu0
  %v181 = vld [vmem:[%s1 + $0x60] sm:$0xff]
  %v182 = vld [vmem:[%s1 + $0x68] sm:$0xff]
  %v183 = vld [vmem:[%s1 + $0x70] sm:$0xff]
  %v184 = vld [vmem:[%s1 + $0x78] sm:$0xff]
  %v185 = vmul.f32 %v153, %v153
  %v186 = vmul.f32 %v158, %v158
  %v187 = vmul.f32 %v163, %v163
  %v188 = vmul.f32 %v168, %v168
  %v189 = vadd.f32 %v185, %v187
  %v190 = vadd.f32 %v186, %v188
  %v191 = vmul.f32 %v173, %v173
  %v192 = vmul.f32 %v178, %v178
  %v193 = vadd.f32 %v189, %v191
  %v194 = vadd.f32 %v190, %v192
  %v195 = vrsqrt.pop %v193
  %v196 = vmul.f32 %v193, %v195
  %vm197 = vcmp.eq.f32.partialorder %v193, inf
  %v198 = vsel %vm197, %v193, %v196
  %vm199 = vcmp.eq.f32.partialorder %v193, 0.0
  %v200 = vand.u32 %v193, 2147483648
  %v201 = vsel %vm199, %v200, %v198
  %v202 = vrsqrt.pop %v194
  %v203 = vmul.f32 %v194, %v202
  %vm204 = vcmp.eq.f32.partialorder %v194, inf
  %v205 = vsel %vm204, %v194, %v203
  %vm206 = vcmp.eq.f32.partialorder %v194, 0.0
  %v207 = vand.u32 %v194, 2147483648
  %v208 = vsel %vm206, %v207, %v205
  %v209 = vadd.f32 %v201, 1e-06
  %v210 = vadd.f32 %v208, 1e-06
  %v211 = vrcp.pop %v209
  %v212 = vrcp.pop %v210
  %214 = vset.pattern.permute.xlu0 0
  %215 = vperm.xlu0 %214, %v183
  %v216 = vpop.permute.xlu0 %215
  %219 = vset.pattern.permute.xlu0 0
  %220 = vperm.xlu0 %219, %v184
  %v221 = vpop.permute.xlu0 %220
  %v223 = vmul.f32 %v216, %v211
  %v224 = vmul.f32 %v221, %v212
  %226 = vset.pattern.permute.xlu0 0
  %227 = vperm.xlu0 %226, %v181
  %v228 = vpop.permute.xlu0 %227
  %231 = vset.pattern.permute.xlu0 0
  %232 = vperm.xlu0 %231, %v182
  %v233 = vpop.permute.xlu0 %232
  %v235 = vadd.f32 %v228, %v223
  %v236 = vadd.f32 %v233, %v224
  %v237 = vmul.f32 %v153, %v235
  %v238 = vmul.f32 %v158, %v236
  %v239 = vmul.f32 %v163, %v235
  %v240 = vmul.f32 %v168, %v236
  %v241 = vmul.f32 %v173, %v235
  %v242 = vmul.f32 %v178, %v236
  %v243 = vld [vmem:[%s1 + $0x80] sm:$0xff]
  %v244 = vld [vmem:[%s1 + $0x88] sm:$0xff]
  %v245 = vld [vmem:[%s1 + $0x90] sm:$0xff]
  %v246 = vld [vmem:[%s1 + $0x98] sm:$0xff]
  %v247 = vld [vmem:[%s1 + $0xa0] sm:$0xff]
  %v248 = vld [vmem:[%s1 + $0xa8] sm:$0xff]
  %vm249 = vcmask 392192
  %v251 = vsel %vm249, %v243, 0
  %v254 = vsel %vm249, %v244, 0
  %v257 = vsel %vm249, %v245, 0
  %v260 = vsel %vm249, %v246, 0
  %v263 = vsel %vm249, %v247, 0
  %v266 = vsel %vm249, %v248, 0
  %268 = vmatprep.subr.mxu0 0.0
  %269 = vmatpush1.msra.mxu0 %v237
  %270 = vmatprep.subr.mxu0 0.0
  %271 = vmatpush1.msra.mxu0 %v238
  %272 = vmatprep.subr.mxu0 0.0
  %273 = vmatpush1.msra.mxu0 %v239
  %274 = vmatprep.subr.mxu0 0.0
  %275 = vmatpush1.msra.mxu0 %v240
  %276 = vmatprep.subr.mxu0 0.0
  %277 = vmatpush1.msra.mxu0 %v241
  %278 = vmatprep.subr.mxu0 0.0
  %279 = vmatpush1.msra.mxu0 %v242
  %280 = vmatprep.subr.mxu0 0.0
  %281 = vmatpush1.msra.mxu0 0.0
  %282 = vmatprep.subr.mxu0 0.0
  %283 = vmatpush1.msra.mxu0 0.0
  %284 = vmatprep.subr.mxu0 0.0
  %285 = vmatpush1.msra.mxu0 0.0
  %286 = vmatprep.subr.mxu0 0.0
  %287 = vmatpush1.msra.mxu0 0.0
  %288 = vmatprep.subr.mxu0 0.0
  %289 = vmatpush1.msra.mxu0 0.0
  %290 = vmatprep.subr.mxu0 0.0
  %291 = vmatpush1.msra.mxu0 0.0
  %292 = vmatprep.subr.mxu0 0.0
  %293 = vmatpush1.msra.mxu0 0.0
  %294 = vmatprep.subr.mxu0 0.0
  %295 = vmatpush1.msra.mxu0 0.0
  %296 = vmatprep.subr.mxu0 0.0
  %297 = vmatpush1.msra.mxu0 0.0
  %298 = vmatprep.subr.mxu0 0.0
  %299 = vmatpush1.msra.mxu0 0.0
  %300 = vmatprep.subr.mxu0 0.0
  %301 = vmatpush1.msra.mxu0 0.0
  %302 = vmatprep.subr.mxu0 0.0
  %303 = vmatpush1.msra.mxu0 0.0
  %304 = vmatprep.subr.mxu0 0.0
  %305 = vmatpush1.msra.mxu0 0.0
  %306 = vmatprep.subr.mxu0 0.0
  %307 = vmatpush1.msra.mxu0 0.0
  %308 = vmatprep.subr.mxu0 0.0
  %309 = vmatpush1.msra.mxu0 0.0
  %310 = vmatprep.subr.mxu0 0.0
  %311 = vmatpush1.msra.mxu0 0.0
  %312 = vmatprep.subr.mxu0 0.0
  %313 = vmatpush1.msra.mxu0 0.0
  %314 = vmatprep.subr.mxu0 0.0
  %315 = vmatpush1.msra.mxu0 0.0
  %316 = vmatprep.subr.mxu0 0.0
  %317 = vmatpush1.msra.mxu0 0.0
  %318 = vmatprep.subr.mxu0 0.0
  %319 = vmatpush1.msra.mxu0 0.0
  %320 = vmatprep.subr.mxu0 0.0
  %321 = vmatpush1.msra.mxu0 0.0
  %322 = vmatprep.subr.mxu0 0.0
  %323 = vmatpush1.msra.mxu0 0.0
  %324 = vmatprep.subr.mxu0 0.0
  %325 = vmatpush1.msra.mxu0 0.0
  %326 = vmatprep.subr.mxu0 0.0
  %327 = vmatpush1.msra.mxu0 0.0
  %328 = vmatprep.subr.mxu0 0.0
  %329 = vmatpush1.msra.mxu0 0.0
  %330 = vmatprep.subr.mxu0 0.0
  %331 = vmatpush1.msra.mxu0 0.0
  %332 = vmatprep.mubr.f32.mxu0 0.0
  %333 = vmatmul.mubr.f32.gmra.mrb[0].mxu0 %v251
  %v334 = vpop.f32.mrb[0].mxu0
  %v335 = vadd.f32 0.0, %v334
  %v336 = vpop.f32.mrb[0].mxu0
  %337 = vmatprep.mubr.f32.mxu0 0.0
  %338 = vmatmul.mubr.f32.gmra.mrb[0].mxu0 %v254
  %v339 = vpop.f32.mrb[0].mxu0
  %v340 = vadd.f32 0.0, %v339
  %v341 = vpop.f32.mrb[0].mxu0
  %342 = vmatprep.mubr.f32.mxu0 0.0
  %343 = vmatmul.mubr.f32.gmra.mrb[0].mxu0 %v257
  %v344 = vpop.f32.mrb[0].mxu0
  %v345 = vadd.f32 0.0, %v344
  %v346 = vpop.f32.mrb[0].mxu0
  %347 = vmatprep.mubr.f32.mxu0 0.0
  %348 = vmatmul.mubr.f32.gmra.mrb[0].mxu0 %v260
  %v349 = vpop.f32.mrb[0].mxu0
  %v350 = vadd.f32 0.0, %v349
  %v351 = vpop.f32.mrb[0].mxu0
  %352 = vmatprep.mubr.f32.mxu0 0.0
  %353 = vmatmul.mubr.f32.gmra.mrb[0].mxu0 %v263
  %v354 = vpop.f32.mrb[0].mxu0
  %v355 = vadd.f32 0.0, %v354
  %v356 = vpop.f32.mrb[0].mxu0
  %357 = vmatprep.mubr.f32.mxu0 0.0
  %358 = vmatmul.mubr.f32.gmra.mrb[0].mxu0 %v266
  %v359 = vpop.f32.mrb[0].mxu0
  %v360 = vadd.f32 0.0, %v359
  %v361 = vpop.f32.mrb[0].mxu0
  %362 = vdwg.mxu0
  %v363 = vmul.f32 %v237, %v335
  %v364 = vmul.f32 %v238, %v340
  %v365 = vmul.f32 %v239, %v345
  %v366 = vmul.f32 %v240, %v350
  %v367 = vadd.f32 %v363, %v365
  %v368 = vadd.f32 %v364, %v366
  %v369 = vmul.f32 %v241, %v355
  %v370 = vmul.f32 %v242, %v360
  %v371 = vadd.f32 %v367, %v369
  %v372 = vadd.f32 %v368, %v370
  %v373 = vmul.f32 %v335, %v335
  %v374 = vmul.f32 %v340, %v340
  %v375 = vmul.f32 %v345, %v345
  %v376 = vmul.f32 %v350, %v350
  %v377 = vadd.f32 %v373, %v375
  %v378 = vadd.f32 %v374, %v376
  %v379 = vmul.f32 %v355, %v355
  %v380 = vmul.f32 %v360, %v360
  %v381 = vadd.f32 %v377, %v379
  %v382 = vadd.f32 %v378, %v380
  %v383 = vadd.f32 %v381, 1e-06
  %v384 = vadd.f32 %v382, 1e-06
  %v385 = vrcp.pop %v383
  %v386 = vrcp.pop %v384
  %v387 = vmul.f32 %v371, %v385
  %v388 = vmul.f32 %v372, %v386
  %vm389 = vcmp.ge.f32.partialorder %v371, 0.0
  %vm390 = vcmp.ge.f32.partialorder %v372, 0.0
  %v391 = vmul.f32 %v387, %v335
  %v392 = vmul.f32 %v388, %v340
  %v393 = vsub.f32 %v237, %v391
  %v394 = vsub.f32 %v238, %v392
  %v395 = vsel %vm389, %v237, %v393
  %v396 = vsel %vm390, %v238, %v394
  %v397 = vmul.f32 %v387, %v345
  %v398 = vmul.f32 %v388, %v350
  %v399 = vsub.f32 %v239, %v397
  %v400 = vsub.f32 %v240, %v398
  %v401 = vsel %vm389, %v239, %v399
  %v402 = vsel %vm390, %v240, %v400
  %v403 = vmul.f32 %v387, %v355
  %v404 = vmul.f32 %v388, %v360
  %v405 = vsub.f32 %v241, %v403
  %v406 = vsub.f32 %v242, %v404
  %v407 = vsel %vm389, %v241, %v405
  %v408 = vsel %vm390, %v242, %v406
  %v409 = vld [vmem:[%s1 + $0xb0] sm:$0xff]
  %v410 = vld [vmem:[%s1 + $0xb8] sm:$0xff]
  %v411 = vld [vmem:[%s1 + $0xc0] sm:$0xff]
  %v412 = vld [vmem:[%s1 + $0xc8] sm:$0xff]
  %v413 = vld [vmem:[%s1 + $0xd0] sm:$0xff]
  %v414 = vld [vmem:[%s1 + $0xd8] sm:$0xff]
  %v415 = vld [vmem:[%s1 + $0xe0] sm:$0xff]
  %v416 = vld [vmem:[%s1 + $0xe8] sm:$0xff]
  %v417 = vld [vmem:[%s1 + $0xf0] sm:$0xff]
  %v418 = vld [vmem:[%s1 + $0xf8] sm:$0xff]
  %v419 = vld [vmem:[%s1 + $0x100] sm:$0xff]
  %v420 = vld [vmem:[%s1 + $0x108] sm:$0xff]
  %422 = vset.pattern.permute.xlu0 0
  %423 = vperm.xlu0 %422, %v415
  %v424 = vpop.permute.xlu0 %423
  %427 = vset.pattern.permute.xlu0 0
  %428 = vperm.xlu0 %427, %v416
  %v429 = vpop.permute.xlu0 %428
  %432 = vset.pattern.permute.xlu0 0
  %433 = vperm.xlu0 %432, %v417
  %v434 = vpop.permute.xlu0 %433
  %437 = vset.pattern.permute.xlu0 0
  %438 = vperm.xlu0 %437, %v418
  %v439 = vpop.permute.xlu0 %438
  %442 = vset.pattern.permute.xlu0 0
  %443 = vperm.xlu0 %442, %v419
  %v444 = vpop.permute.xlu0 %443
  %447 = vset.pattern.permute.xlu0 0
  %448 = vperm.xlu0 %447, %v420
  %v449 = vpop.permute.xlu0 %448
  %v452 = vsel %vm249, %v409, 0
  %v455 = vsel %vm249, %v410, 0
  %v458 = vsel %vm249, %v411, 0
  %v461 = vsel %vm249, %v412, 0
  %v464 = vsel %vm249, %v413, 0
  %v467 = vsel %vm249, %v414, 0
  %469 = vmatprep.subr.mxu0 0.0
  %470 = vmatpush1.msra.mxu0 %v395
  %471 = vmatprep.subr.mxu0 0.0
  %472 = vmatpush1.msra.mxu0 %v396
  %473 = vmatprep.subr.mxu0 0.0
  %474 = vmatpush1.msra.mxu0 %v401
  %475 = vmatprep.subr.mxu0 0.0
  %476 = vmatpush1.msra.mxu0 %v402
  %477 = vmatprep.subr.mxu0 0.0
  %478 = vmatpush1.msra.mxu0 %v407
  %479 = vmatprep.subr.mxu0 0.0
  %480 = vmatpush1.msra.mxu0 %v408
  %481 = vmatprep.subr.mxu0 0.0
  %482 = vmatpush1.msra.mxu0 0.0
  %483 = vmatprep.subr.mxu0 0.0
  %484 = vmatpush1.msra.mxu0 0.0
  %485 = vmatprep.subr.mxu0 0.0
  %486 = vmatpush1.msra.mxu0 0.0
  %487 = vmatprep.subr.mxu0 0.0
  %488 = vmatpush1.msra.mxu0 0.0
  %489 = vmatprep.subr.mxu0 0.0
  %490 = vmatpush1.msra.mxu0 0.0
  %491 = vmatprep.subr.mxu0 0.0
  %492 = vmatpush1.msra.mxu0 0.0
  %493 = vmatprep.subr.mxu0 0.0
  %494 = vmatpush1.msra.mxu0 0.0
  %495 = vmatprep.subr.mxu0 0.0
  %496 = vmatpush1.msra.mxu0 0.0
  %497 = vmatprep.subr.mxu0 0.0
  %498 = vmatpush1.msra.mxu0 0.0
  %499 = vmatprep.subr.mxu0 0.0
  %500 = vmatpush1.msra.mxu0 0.0
  %501 = vmatprep.subr.mxu0 0.0
  %502 = vmatpush1.msra.mxu0 0.0
  %503 = vmatprep.subr.mxu0 0.0
  %504 = vmatpush1.msra.mxu0 0.0
  %505 = vmatprep.subr.mxu0 0.0
  %506 = vmatpush1.msra.mxu0 0.0
  %507 = vmatprep.subr.mxu0 0.0
  %508 = vmatpush1.msra.mxu0 0.0
  %509 = vmatprep.subr.mxu0 0.0
  %510 = vmatpush1.msra.mxu0 0.0
  %511 = vmatprep.subr.mxu0 0.0
  %512 = vmatpush1.msra.mxu0 0.0
  %513 = vmatprep.subr.mxu0 0.0
  %514 = vmatpush1.msra.mxu0 0.0
  %515 = vmatprep.subr.mxu0 0.0
  %516 = vmatpush1.msra.mxu0 0.0
  %517 = vmatprep.subr.mxu0 0.0
  %518 = vmatpush1.msra.mxu0 0.0
  %519 = vmatprep.subr.mxu0 0.0
  %520 = vmatpush1.msra.mxu0 0.0
  %521 = vmatprep.subr.mxu0 0.0
  %522 = vmatpush1.msra.mxu0 0.0
  %523 = vmatprep.subr.mxu0 0.0
  %524 = vmatpush1.msra.mxu0 0.0
  %525 = vmatprep.subr.mxu0 0.0
  %526 = vmatpush1.msra.mxu0 0.0
  %527 = vmatprep.subr.mxu0 0.0
  %528 = vmatpush1.msra.mxu0 0.0
  %529 = vmatprep.subr.mxu0 0.0
  %530 = vmatpush1.msra.mxu0 0.0
  %531 = vmatprep.subr.mxu0 0.0
  %532 = vmatpush1.msra.mxu0 0.0
  %533 = vmatprep.mubr.f32.mxu0 0.0
  %534 = vmatmul.mubr.f32.gmra.mrb[0].mxu0 %v452
  %v535 = vpop.f32.mrb[0].mxu0
  %v536 = vadd.f32 %v424, %v535
  %v537 = vpop.f32.mrb[0].mxu0
  %538 = vmatprep.mubr.f32.mxu0 0.0
  %539 = vmatmul.mubr.f32.gmra.mrb[0].mxu0 %v455
  %v540 = vpop.f32.mrb[0].mxu0
  %v541 = vadd.f32 %v429, %v540
  %v542 = vpop.f32.mrb[0].mxu0
  %543 = vmatprep.mubr.f32.mxu0 0.0
  %544 = vmatmul.mubr.f32.gmra.mrb[0].mxu0 %v458
  %v545 = vpop.f32.mrb[0].mxu0
  %v546 = vadd.f32 %v434, %v545
  %v547 = vpop.f32.mrb[0].mxu0
  %548 = vmatprep.mubr.f32.mxu0 0.0
  %549 = vmatmul.mubr.f32.gmra.mrb[0].mxu0 %v461
  %v550 = vpop.f32.mrb[0].mxu0
  %v551 = vadd.f32 %v439, %v550
  %v552 = vpop.f32.mrb[0].mxu0
  %553 = vmatprep.mubr.f32.mxu0 0.0
  %554 = vmatmul.mubr.f32.gmra.mrb[0].mxu0 %v464
  %v555 = vpop.f32.mrb[0].mxu0
  %v556 = vadd.f32 %v444, %v555
  %v557 = vpop.f32.mrb[0].mxu0
  %558 = vmatprep.mubr.f32.mxu0 0.0
  %559 = vmatmul.mubr.f32.gmra.mrb[0].mxu0 %v467
  %v560 = vpop.f32.mrb[0].mxu0
  %v561 = vadd.f32 %v449, %v560
  %v562 = vpop.f32.mrb[0].mxu0
  %563 = vdwg.mxu0
  %v564 = vld [vmem:[%s1 + $0x110] sm:$0xff]
  %v565 = vld [vmem:[%s1 + $0x118] sm:$0xff]
  %v566 = vld [vmem:[%s1 + $0x120] sm:$0xff]
  %v567 = vld [vmem:[%s1 + $0x128] sm:$0xff]
  %v568 = vmul.f32 %v536, %v536
  %v569 = vmul.f32 %v541, %v541
  %v570 = vmul.f32 %v546, %v546
  %v571 = vmul.f32 %v551, %v551
  %v572 = vadd.f32 %v568, %v570
  %v573 = vadd.f32 %v569, %v571
  %v574 = vmul.f32 %v556, %v556
  %v575 = vmul.f32 %v561, %v561
  %v576 = vadd.f32 %v572, %v574
  %v577 = vadd.f32 %v573, %v575
  %v578 = vrsqrt.pop %v576
  %v579 = vmul.f32 %v576, %v578
  %vm580 = vcmp.eq.f32.partialorder %v576, inf
  %v581 = vsel %vm580, %v576, %v579
  %vm582 = vcmp.eq.f32.partialorder %v576, 0.0
  %v583 = vand.u32 %v576, 2147483648
  %v584 = vsel %vm582, %v583, %v581
  %v585 = vrsqrt.pop %v577
  %v586 = vmul.f32 %v577, %v585
  %vm587 = vcmp.eq.f32.partialorder %v577, inf
  %v588 = vsel %vm587, %v577, %v586
  %vm589 = vcmp.eq.f32.partialorder %v577, 0.0
  %v590 = vand.u32 %v577, 2147483648
  %v591 = vsel %vm589, %v590, %v588
  %v592 = vadd.f32 %v584, 1e-06
  %v593 = vadd.f32 %v591, 1e-06
  %v594 = vrcp.pop %v592
  %v595 = vrcp.pop %v593
  %597 = vset.pattern.permute.xlu0 0
  %598 = vperm.xlu0 %597, %v566
  %v599 = vpop.permute.xlu0 %598
  %602 = vset.pattern.permute.xlu0 0
  %603 = vperm.xlu0 %602, %v567
  %v604 = vpop.permute.xlu0 %603
  %v606 = vmul.f32 %v599, %v594
  %v607 = vmul.f32 %v604, %v595
  %609 = vset.pattern.permute.xlu0 0
  %610 = vperm.xlu0 %609, %v564
  %v611 = vpop.permute.xlu0 %610
  %614 = vset.pattern.permute.xlu0 0
  %615 = vperm.xlu0 %614, %v565
  %v616 = vpop.permute.xlu0 %615
  %v618 = vadd.f32 %v611, %v606
  %v619 = vadd.f32 %v616, %v607
  %v620 = vmul.f32 %v536, %v618
  %v621 = vmul.f32 %v541, %v619
  %v622 = vmul.f32 %v546, %v618
  %v623 = vmul.f32 %v551, %v619
  %v624 = vmul.f32 %v556, %v618
  %v625 = vmul.f32 %v561, %v619
  %v626 = vld [vmem:[%s1 + $0x130] sm:$0xff]
  %v627 = vld [vmem:[%s1 + $0x138] sm:$0xff]
  %v628 = vld [vmem:[%s1 + $0x140] sm:$0xff]
  %v629 = vld [vmem:[%s1 + $0x148] sm:$0xff]
  %v630 = vld [vmem:[%s1 + $0x150] sm:$0xff]
  %v631 = vld [vmem:[%s1 + $0x158] sm:$0xff]
  %v633 = vsel %vm249, %v626, 0
  %v636 = vsel %vm249, %v627, 0
  %v639 = vsel %vm249, %v628, 0
  %v642 = vsel %vm249, %v629, 0
  %v645 = vsel %vm249, %v630, 0
  %v648 = vsel %vm249, %v631, 0
  %650 = vmatprep.subr.mxu0 0.0
  %651 = vmatpush1.msra.mxu0 %v620
  %652 = vmatprep.subr.mxu0 0.0
  %653 = vmatpush1.msra.mxu0 %v621
  %654 = vmatprep.subr.mxu0 0.0
  %655 = vmatpush1.msra.mxu0 %v622
  %656 = vmatprep.subr.mxu0 0.0
  %657 = vmatpush1.msra.mxu0 %v623
  %658 = vmatprep.subr.mxu0 0.0
  %659 = vmatpush1.msra.mxu0 %v624
  %660 = vmatprep.subr.mxu0 0.0
  %661 = vmatpush1.msra.mxu0 %v625
  %662 = vmatprep.subr.mxu0 0.0
  %663 = vmatpush1.msra.mxu0 0.0
  %664 = vmatprep.subr.mxu0 0.0
  %665 = vmatpush1.msra.mxu0 0.0
  %666 = vmatprep.subr.mxu0 0.0
  %667 = vmatpush1.msra.mxu0 0.0
  %668 = vmatprep.subr.mxu0 0.0
  %669 = vmatpush1.msra.mxu0 0.0
  %670 = vmatprep.subr.mxu0 0.0
  %671 = vmatpush1.msra.mxu0 0.0
  %672 = vmatprep.subr.mxu0 0.0
  %673 = vmatpush1.msra.mxu0 0.0
  %674 = vmatprep.subr.mxu0 0.0
  %675 = vmatpush1.msra.mxu0 0.0
  %676 = vmatprep.subr.mxu0 0.0
  %677 = vmatpush1.msra.mxu0 0.0
  %678 = vmatprep.subr.mxu0 0.0
  %679 = vmatpush1.msra.mxu0 0.0
  %680 = vmatprep.subr.mxu0 0.0
  %681 = vmatpush1.msra.mxu0 0.0
  %682 = vmatprep.subr.mxu0 0.0
  %683 = vmatpush1.msra.mxu0 0.0
  %684 = vmatprep.subr.mxu0 0.0
  %685 = vmatpush1.msra.mxu0 0.0
  %686 = vmatprep.subr.mxu0 0.0
  %687 = vmatpush1.msra.mxu0 0.0
  %688 = vmatprep.subr.mxu0 0.0
  %689 = vmatpush1.msra.mxu0 0.0
  %690 = vmatprep.subr.mxu0 0.0
  %691 = vmatpush1.msra.mxu0 0.0
  %692 = vmatprep.subr.mxu0 0.0
  %693 = vmatpush1.msra.mxu0 0.0
  %694 = vmatprep.subr.mxu0 0.0
  %695 = vmatpush1.msra.mxu0 0.0
  %696 = vmatprep.subr.mxu0 0.0
  %697 = vmatpush1.msra.mxu0 0.0
  %698 = vmatprep.subr.mxu0 0.0
  %699 = vmatpush1.msra.mxu0 0.0
  %700 = vmatprep.subr.mxu0 0.0
  %701 = vmatpush1.msra.mxu0 0.0
  %702 = vmatprep.subr.mxu0 0.0
  %703 = vmatpush1.msra.mxu0 0.0
  %704 = vmatprep.subr.mxu0 0.0
  %705 = vmatpush1.msra.mxu0 0.0
  %706 = vmatprep.subr.mxu0 0.0
  %707 = vmatpush1.msra.mxu0 0.0
  %708 = vmatprep.subr.mxu0 0.0
  %709 = vmatpush1.msra.mxu0 0.0
  %710 = vmatprep.subr.mxu0 0.0
  %711 = vmatpush1.msra.mxu0 0.0
  %712 = vmatprep.subr.mxu0 0.0
  %713 = vmatpush1.msra.mxu0 0.0
  %714 = vmatprep.mubr.f32.mxu0 0.0
  %715 = vmatmul.mubr.f32.gmra.mrb[0].mxu0 %v633
  %v716 = vpop.f32.mrb[0].mxu0
  %v717 = vadd.f32 0.0, %v716
  %v718 = vpop.f32.mrb[0].mxu0
  %719 = vmatprep.mubr.f32.mxu0 0.0
  %720 = vmatmul.mubr.f32.gmra.mrb[0].mxu0 %v636
  %v721 = vpop.f32.mrb[0].mxu0
  %v722 = vadd.f32 0.0, %v721
  %v723 = vpop.f32.mrb[0].mxu0
  %724 = vmatprep.mubr.f32.mxu0 0.0
  %725 = vmatmul.mubr.f32.gmra.mrb[0].mxu0 %v639
  %v726 = vpop.f32.mrb[0].mxu0
  %v727 = vadd.f32 0.0, %v726
  %v728 = vpop.f32.mrb[0].mxu0
  %729 = vmatprep.mubr.f32.mxu0 0.0
  %730 = vmatmul.mubr.f32.gmra.mrb[0].mxu0 %v642
  %v731 = vpop.f32.mrb[0].mxu0
  %v732 = vadd.f32 0.0, %v731
  %v733 = vpop.f32.mrb[0].mxu0
  %734 = vmatprep.mubr.f32.mxu0 0.0
  %735 = vmatmul.mubr.f32.gmra.mrb[0].mxu0 %v645
  %v736 = vpop.f32.mrb[0].mxu0
  %v737 = vadd.f32 0.0, %v736
  %v738 = vpop.f32.mrb[0].mxu0
  %739 = vmatprep.mubr.f32.mxu0 0.0
  %740 = vmatmul.mubr.f32.gmra.mrb[0].mxu0 %v648
  %v741 = vpop.f32.mrb[0].mxu0
  %v742 = vadd.f32 0.0, %v741
  %v743 = vpop.f32.mrb[0].mxu0
  %744 = vdwg.mxu0
  %v745 = vmul.f32 %v620, %v717
  %v746 = vmul.f32 %v621, %v722
  %v747 = vmul.f32 %v622, %v727
  %v748 = vmul.f32 %v623, %v732
  %v749 = vadd.f32 %v745, %v747
  %v750 = vadd.f32 %v746, %v748
  %v751 = vmul.f32 %v624, %v737
  %v752 = vmul.f32 %v625, %v742
  %v753 = vadd.f32 %v749, %v751
  %v754 = vadd.f32 %v750, %v752
  %v755 = vmul.f32 %v717, %v717
  %v756 = vmul.f32 %v722, %v722
  %v757 = vmul.f32 %v727, %v727
  %v758 = vmul.f32 %v732, %v732
  %v759 = vadd.f32 %v755, %v757
  %v760 = vadd.f32 %v756, %v758
  %v761 = vmul.f32 %v737, %v737
  %v762 = vmul.f32 %v742, %v742
  %v763 = vadd.f32 %v759, %v761
  %v764 = vadd.f32 %v760, %v762
  %v765 = vadd.f32 %v763, 1e-06
  %v766 = vadd.f32 %v764, 1e-06
  %v767 = vrcp.pop %v765
  %v768 = vrcp.pop %v766
  %v769 = vmul.f32 %v753, %v767
  %v770 = vmul.f32 %v754, %v768
  %vm771 = vcmp.ge.f32.partialorder %v753, 0.0
  %vm772 = vcmp.ge.f32.partialorder %v754, 0.0
  %v773 = vmul.f32 %v769, %v717
  %v774 = vmul.f32 %v770, %v722
  %v775 = vsub.f32 %v620, %v773
  %v776 = vsub.f32 %v621, %v774
  %v777 = vsel %vm771, %v620, %v775
  %v778 = vsel %vm772, %v621, %v776
  %v779 = vmul.f32 %v769, %v727
  %v780 = vmul.f32 %v770, %v732
  %v781 = vsub.f32 %v622, %v779
  %v782 = vsub.f32 %v623, %v780
  %v783 = vsel %vm771, %v622, %v781
  %v784 = vsel %vm772, %v623, %v782
  %v785 = vmul.f32 %v769, %v737
  %v786 = vmul.f32 %v770, %v742
  %v787 = vsub.f32 %v624, %v785
  %v788 = vsub.f32 %v625, %v786
  %v789 = vsel %vm771, %v624, %v787
  %v790 = vsel %vm772, %v625, %v788
  %v791 = vld [vmem:[%s2] sm:$0xff]
  %v792 = vld [vmem:[%s2 + $0x8] sm:$0xff]
  %v793 = vld [vmem:[%s2 + $0x10] sm:$0xff]
  %v794 = vld [vmem:[%s2 + $0x18] sm:$0xff]
  %vm795 = vcmask 261120
  %v797 = vsel %vm795, %v777, 0
  %v800 = vsel %vm795, %v778, 0
  %v803 = vsel %vm795, %v783, 0
  %v806 = vsel %vm795, %v784, 0
  %v809 = vsel %vm795, %v789, 0
  %v812 = vsel %vm795, %v790, 0
  %814 = vmatprep.subr.mxu0 0.0
  %815 = vmatpush1.msra.mxu0 %v791
  %816 = vmatprep.subr.mxu0 0.0
  %817 = vmatpush1.msra.mxu0 %v792
  %818 = vmatprep.subr.mxu0 0.0
  %819 = vmatpush1.msra.mxu0 %v793
  %820 = vmatprep.subr.mxu0 0.0
  %821 = vmatpush1.msra.mxu0 %v794
  %822 = vmatprep.subr.mxu0 0.0
  %823 = vmatpush1.msra.mxu0 0.0
  %824 = vmatprep.subr.mxu0 0.0
  %825 = vmatpush1.msra.mxu0 0.0
  %826 = vmatprep.subr.mxu0 0.0
  %827 = vmatpush1.msra.mxu0 0.0
  %828 = vmatprep.subr.mxu0 0.0
  %829 = vmatpush1.msra.mxu0 0.0
  %830 = vmatprep.subr.mxu0 0.0
  %831 = vmatpush1.msra.mxu0 0.0
  %832 = vmatprep.subr.mxu0 0.0
  %833 = vmatpush1.msra.mxu0 0.0
  %834 = vmatprep.subr.mxu0 0.0
  %835 = vmatpush1.msra.mxu0 0.0
  %836 = vmatprep.subr.mxu0 0.0
  %837 = vmatpush1.msra.mxu0 0.0
  %838 = vmatprep.subr.mxu0 0.0
  %839 = vmatpush1.msra.mxu0 0.0
  %840 = vmatprep.subr.mxu0 0.0
  %841 = vmatpush1.msra.mxu0 0.0
  %842 = vmatprep.subr.mxu0 0.0
  %843 = vmatpush1.msra.mxu0 0.0
  %844 = vmatprep.subr.mxu0 0.0
  %845 = vmatpush1.msra.mxu0 0.0
  %846 = vmatprep.subr.mxu0 0.0
  %847 = vmatpush1.msra.mxu0 0.0
  %848 = vmatprep.subr.mxu0 0.0
  %849 = vmatpush1.msra.mxu0 0.0
  %850 = vmatprep.subr.mxu0 0.0
  %851 = vmatpush1.msra.mxu0 0.0
  %852 = vmatprep.subr.mxu0 0.0
  %853 = vmatpush1.msra.mxu0 0.0
  %854 = vmatprep.subr.mxu0 0.0
  %855 = vmatpush1.msra.mxu0 0.0
  %856 = vmatprep.subr.mxu0 0.0
  %857 = vmatpush1.msra.mxu0 0.0
  %858 = vmatprep.subr.mxu0 0.0
  %859 = vmatpush1.msra.mxu0 0.0
  %860 = vmatprep.subr.mxu0 0.0
  %861 = vmatpush1.msra.mxu0 0.0
  %862 = vmatprep.subr.mxu0 0.0
  %863 = vmatpush1.msra.mxu0 0.0
  %864 = vmatprep.subr.mxu0 0.0
  %865 = vmatpush1.msra.mxu0 0.0
  %866 = vmatprep.subr.mxu0 0.0
  %867 = vmatpush1.msra.mxu0 0.0
  %868 = vmatprep.subr.mxu0 0.0
  %869 = vmatpush1.msra.mxu0 0.0
  %870 = vmatprep.subr.mxu0 0.0
  %871 = vmatpush1.msra.mxu0 0.0
  %872 = vmatprep.subr.mxu0 0.0
  %873 = vmatpush1.msra.mxu0 0.0
  %874 = vmatprep.subr.mxu0 0.0
  %875 = vmatpush1.msra.mxu0 0.0
  %876 = vmatprep.subr.mxu0 0.0
  %877 = vmatpush1.msra.mxu0 0.0
  %878 = vmatprep.mubr.f32.mxu0 0.0
  %879 = vmatmul.mubr.f32.gmra.mrb[0].mxu0 %v797
  %v880 = vpop.f32.mrb[0].mxu0
  %v881 = vadd.f32 0.0, %v880
  %v882 = vpop.f32.mrb[0].mxu0
  %883 = vmatprep.mubr.f32.mxu0 0.0
  %884 = vmatmul.mubr.f32.gmra.mrb[0].mxu0 %v800
  %v885 = vpop.f32.mrb[0].mxu0
  %v886 = vadd.f32 0.0, %v885
  %v887 = vpop.f32.mrb[0].mxu0
  %888 = vmatprep.mubr.f32.mxu0 0.0
  %889 = vmatmul.mubr.f32.gmra.mrb[0].mxu0 %v803
  %v890 = vpop.f32.mrb[0].mxu0
  %v891 = vadd.f32 0.0, %v890
  %v892 = vpop.f32.mrb[0].mxu0
  %893 = vmatprep.mubr.f32.mxu0 0.0
  %894 = vmatmul.mubr.f32.gmra.mrb[0].mxu0 %v806
  %v895 = vpop.f32.mrb[0].mxu0
  %v896 = vadd.f32 0.0, %v895
  %v897 = vpop.f32.mrb[0].mxu0
  %898 = vmatprep.mubr.f32.mxu0 0.0
  %899 = vmatmul.mubr.f32.gmra.mrb[0].mxu0 %v809
  %v900 = vpop.f32.mrb[0].mxu0
  %v901 = vadd.f32 0.0, %v900
  %v902 = vpop.f32.mrb[0].mxu0
  %903 = vmatprep.mubr.f32.mxu0 0.0
  %904 = vmatmul.mubr.f32.gmra.mrb[0].mxu0 %v812
  %v905 = vpop.f32.mrb[0].mxu0
  %v906 = vadd.f32 0.0, %v905
  %v907 = vpop.f32.mrb[0].mxu0
  %908 = vdwg.mxu0
  %v909 = vld [vmem:[%s1 + $0x160] sm:$0xff]
  %v910 = vld [vmem:[%s1 + $0x168] sm:$0xff]
  %v911 = vld [vmem:[%s1 + $0x170] sm:$0xff]
  %v912 = vld [vmem:[%s1 + $0x178] sm:$0xff]
  %v913 = vld [vmem:[%s1 + $0x180] sm:$0xff]
  %v914 = vld [vmem:[%s1 + $0x188] sm:$0xff]
  %v916 = vsel %vm249, %v909, 0
  %v919 = vsel %vm249, %v910, 0
  %v922 = vsel %vm249, %v911, 0
  %v925 = vsel %vm249, %v912, 0
  %v928 = vsel %vm249, %v913, 0
  %v931 = vsel %vm249, %v914, 0
  %933 = vmatprep.subr.mxu0 0.0
  %934 = vmatpush1.msra.mxu0 %v881
  %935 = vmatprep.subr.mxu0 0.0
  %936 = vmatpush1.msra.mxu0 %v886
  %937 = vmatprep.subr.mxu0 0.0
  %938 = vmatpush1.msra.mxu0 %v891
  %939 = vmatprep.subr.mxu0 0.0
  %940 = vmatpush1.msra.mxu0 %v896
  %941 = vmatprep.subr.mxu0 0.0
  %942 = vmatpush1.msra.mxu0 %v901
  %943 = vmatprep.subr.mxu0 0.0
  %944 = vmatpush1.msra.mxu0 %v906
  %945 = vmatprep.subr.mxu0 0.0
  %946 = vmatpush1.msra.mxu0 0.0
  %947 = vmatprep.subr.mxu0 0.0
  %948 = vmatpush1.msra.mxu0 0.0
  %949 = vmatprep.subr.mxu0 0.0
  %950 = vmatpush1.msra.mxu0 0.0
  %951 = vmatprep.subr.mxu0 0.0
  %952 = vmatpush1.msra.mxu0 0.0
  %953 = vmatprep.subr.mxu0 0.0
  %954 = vmatpush1.msra.mxu0 0.0
  %955 = vmatprep.subr.mxu0 0.0
  %956 = vmatpush1.msra.mxu0 0.0
  %957 = vmatprep.subr.mxu0 0.0
  %958 = vmatpush1.msra.mxu0 0.0
  %959 = vmatprep.subr.mxu0 0.0
  %960 = vmatpush1.msra.mxu0 0.0
  %961 = vmatprep.subr.mxu0 0.0
  %962 = vmatpush1.msra.mxu0 0.0
  %963 = vmatprep.subr.mxu0 0.0
  %964 = vmatpush1.msra.mxu0 0.0
  %965 = vmatprep.subr.mxu0 0.0
  %966 = vmatpush1.msra.mxu0 0.0
  %967 = vmatprep.subr.mxu0 0.0
  %968 = vmatpush1.msra.mxu0 0.0
  %969 = vmatprep.subr.mxu0 0.0
  %970 = vmatpush1.msra.mxu0 0.0
  %971 = vmatprep.subr.mxu0 0.0
  %972 = vmatpush1.msra.mxu0 0.0
  %973 = vmatprep.subr.mxu0 0.0
  %974 = vmatpush1.msra.mxu0 0.0
  %975 = vmatprep.subr.mxu0 0.0
  %976 = vmatpush1.msra.mxu0 0.0
  %977 = vmatprep.subr.mxu0 0.0
  %978 = vmatpush1.msra.mxu0 0.0
  %979 = vmatprep.subr.mxu0 0.0
  %980 = vmatpush1.msra.mxu0 0.0
  %981 = vmatprep.subr.mxu0 0.0
  %982 = vmatpush1.msra.mxu0 0.0
  %983 = vmatprep.subr.mxu0 0.0
  %984 = vmatpush1.msra.mxu0 0.0
  %985 = vmatprep.subr.mxu0 0.0
  %986 = vmatpush1.msra.mxu0 0.0
  %987 = vmatprep.subr.mxu0 0.0
  %988 = vmatpush1.msra.mxu0 0.0
  %989 = vmatprep.subr.mxu0 0.0
  %990 = vmatpush1.msra.mxu0 0.0
  %991 = vmatprep.subr.mxu0 0.0
  %992 = vmatpush1.msra.mxu0 0.0
  %993 = vmatprep.subr.mxu0 0.0
  %994 = vmatpush1.msra.mxu0 0.0
  %995 = vmatprep.subr.mxu0 0.0
  %996 = vmatpush1.msra.mxu0 0.0
  %997 = vmatprep.mubr.f32.mxu0 0.0
  %998 = vmatmul.mubr.f32.gmra.mrb[0].mxu0 %v916
  %v999 = vpop.f32.mrb[0].mxu0
  %v1000 = vadd.f32 0.0, %v999
  %v1001 = vpop.f32.mrb[0].mxu0
  %1002 = vmatprep.mubr.f32.mxu0 0.0
  %1003 = vmatmul.mubr.f32.gmra.mrb[0].mxu0 %v919
  %v1004 = vpop.f32.mrb[0].mxu0
  %v1005 = vadd.f32 0.0, %v1004
  %v1006 = vpop.f32.mrb[0].mxu0
  %1007 = vmatprep.mubr.f32.mxu0 0.0
  %1008 = vmatmul.mubr.f32.gmra.mrb[0].mxu0 %v922
  %v1009 = vpop.f32.mrb[0].mxu0
  %v1010 = vadd.f32 0.0, %v1009
  %v1011 = vpop.f32.mrb[0].mxu0
  %1012 = vmatprep.mubr.f32.mxu0 0.0
  %1013 = vmatmul.mubr.f32.gmra.mrb[0].mxu0 %v925
  %v1014 = vpop.f32.mrb[0].mxu0
  %v1015 = vadd.f32 0.0, %v1014
  %v1016 = vpop.f32.mrb[0].mxu0
  %1017 = vmatprep.mubr.f32.mxu0 0.0
  %1018 = vmatmul.mubr.f32.gmra.mrb[0].mxu0 %v928
  %v1019 = vpop.f32.mrb[0].mxu0
  %v1020 = vadd.f32 0.0, %v1019
  %v1021 = vpop.f32.mrb[0].mxu0
  %1022 = vmatprep.mubr.f32.mxu0 0.0
  %1023 = vmatmul.mubr.f32.gmra.mrb[0].mxu0 %v931
  %v1024 = vpop.f32.mrb[0].mxu0
  %v1025 = vadd.f32 0.0, %v1024
  %v1026 = vpop.f32.mrb[0].mxu0
  %1027 = vdwg.mxu0
  %v1028 = vld [vmem:[%s1 + $0x190] sm:$0xff]
  %v1029 = vld [vmem:[%s1 + $0x198] sm:$0xff]
  %v1030 = vld [vmem:[%s1 + $0x1a0] sm:$0xff]
  %v1031 = vld [vmem:[%s1 + $0x1a8] sm:$0xff]
  %v1032 = vld [vmem:[%s1 + $0x1b0] sm:$0xff]
  %v1033 = vld [vmem:[%s1 + $0x1b8] sm:$0xff]
  %v1035 = vsel %vm249, %v1028, 0
  %v1038 = vsel %vm249, %v1029, 0
  %v1041 = vsel %vm249, %v1030, 0
  %v1044 = vsel %vm249, %v1031, 0
  %v1047 = vsel %vm249, %v1032, 0
  %v1050 = vsel %vm249, %v1033, 0
  %1052 = vmatprep.subr.mxu0 0.0
  %1053 = vmatpush1.msra.mxu0 %v881
  %1054 = vmatprep.subr.mxu0 0.0
  %1055 = vmatpush1.msra.mxu0 %v886
  %1056 = vmatprep.subr.mxu0 0.0
  %1057 = vmatpush1.msra.mxu0 %v891
  %1058 = vmatprep.subr.mxu0 0.0
  %1059 = vmatpush1.msra.mxu0 %v896
  %1060 = vmatprep.subr.mxu0 0.0
  %1061 = vmatpush1.msra.mxu0 %v901
  %1062 = vmatprep.subr.mxu0 0.0
  %1063 = vmatpush1.msra.mxu0 %v906
  %1064 = vmatprep.subr.mxu0 0.0
  %1065 = vmatpush1.msra.mxu0 0.0
  %1066 = vmatprep.subr.mxu0 0.0
  %1067 = vmatpush1.msra.mxu0 0.0
  %1068 = vmatprep.subr.mxu0 0.0
  %1069 = vmatpush1.msra.mxu0 0.0
  %1070 = vmatprep.subr.mxu0 0.0
  %1071 = vmatpush1.msra.mxu0 0.0
  %1072 = vmatprep.subr.mxu0 0.0
  %1073 = vmatpush1.msra.mxu0 0.0
  %1074 = vmatprep.subr.mxu0 0.0
  %1075 = vmatpush1.msra.mxu0 0.0
  %1076 = vmatprep.subr.mxu0 0.0
  %1077 = vmatpush1.msra.mxu0 0.0
  %1078 = vmatprep.subr.mxu0 0.0
  %1079 = vmatpush1.msra.mxu0 0.0
  %1080 = vmatprep.subr.mxu0 0.0
  %1081 = vmatpush1.msra.mxu0 0.0
  %1082 = vmatprep.subr.mxu0 0.0
  %1083 = vmatpush1.msra.mxu0 0.0
  %1084 = vmatprep.subr.mxu0 0.0
  %1085 = vmatpush1.msra.mxu0 0.0
  %1086 = vmatprep.subr.mxu0 0.0
  %1087 = vmatpush1.msra.mxu0 0.0
  %1088 = vmatprep.subr.mxu0 0.0
  %1089 = vmatpush1.msra.mxu0 0.0
  %1090 = vmatprep.subr.mxu0 0.0
  %1091 = vmatpush1.msra.mxu0 0.0
  %1092 = vmatprep.subr.mxu0 0.0
  %1093 = vmatpush1.msra.mxu0 0.0
  %1094 = vmatprep.subr.mxu0 0.0
  %1095 = vmatpush1.msra.mxu0 0.0
  %1096 = vmatprep.subr.mxu0 0.0
  %1097 = vmatpush1.msra.mxu0 0.0
  %1098 = vmatprep.subr.mxu0 0.0
  %1099 = vmatpush1.msra.mxu0 0.0
  %1100 = vmatprep.subr.mxu0 0.0
  %1101 = vmatpush1.msra.mxu0 0.0
  %1102 = vmatprep.subr.mxu0 0.0
  %1103 = vmatpush1.msra.mxu0 0.0
  %1104 = vmatprep.subr.mxu0 0.0
  %1105 = vmatpush1.msra.mxu0 0.0
  %1106 = vmatprep.subr.mxu0 0.0
  %1107 = vmatpush1.msra.mxu0 0.0
  %1108 = vmatprep.subr.mxu0 0.0
  %1109 = vmatpush1.msra.mxu0 0.0
  %1110 = vmatprep.subr.mxu0 0.0
  %1111 = vmatpush1.msra.mxu0 0.0
  %1112 = vmatprep.subr.mxu0 0.0
  %1113 = vmatpush1.msra.mxu0 0.0
  %1114 = vmatprep.subr.mxu0 0.0
  %1115 = vmatpush1.msra.mxu0 0.0
  %1116 = vmatprep.mubr.f32.mxu0 0.0
  %1117 = vmatmul.mubr.f32.gmra.mrb[0].mxu0 %v1035
  %v1118 = vpop.f32.mrb[0].mxu0
  %v1119 = vadd.f32 0.0, %v1118
  %v1120 = vpop.f32.mrb[0].mxu0
  %1121 = vmatprep.mubr.f32.mxu0 0.0
  %1122 = vmatmul.mubr.f32.gmra.mrb[0].mxu0 %v1038
  %v1123 = vpop.f32.mrb[0].mxu0
  %v1124 = vadd.f32 0.0, %v1123
  %v1125 = vpop.f32.mrb[0].mxu0
  %1126 = vmatprep.mubr.f32.mxu0 0.0
  %1127 = vmatmul.mubr.f32.gmra.mrb[0].mxu0 %v1041
  %v1128 = vpop.f32.mrb[0].mxu0
  %v1129 = vadd.f32 0.0, %v1128
  %v1130 = vpop.f32.mrb[0].mxu0
  %1131 = vmatprep.mubr.f32.mxu0 0.0
  %1132 = vmatmul.mubr.f32.gmra.mrb[0].mxu0 %v1044
  %v1133 = vpop.f32.mrb[0].mxu0
  %v1134 = vadd.f32 0.0, %v1133
  %v1135 = vpop.f32.mrb[0].mxu0
  %1136 = vmatprep.mubr.f32.mxu0 0.0
  %1137 = vmatmul.mubr.f32.gmra.mrb[0].mxu0 %v1047
  %v1138 = vpop.f32.mrb[0].mxu0
  %v1139 = vadd.f32 0.0, %v1138
  %v1140 = vpop.f32.mrb[0].mxu0
  %1141 = vmatprep.mubr.f32.mxu0 0.0
  %1142 = vmatmul.mubr.f32.gmra.mrb[0].mxu0 %v1050
  %v1143 = vpop.f32.mrb[0].mxu0
  %v1144 = vadd.f32 0.0, %v1143
  %v1145 = vpop.f32.mrb[0].mxu0
  %1146 = vdwg.mxu0
  %v1147 = vld [vmem:[%s1 + $0x1c0] sm:$0xff]
  %v1148 = vld [vmem:[%s1 + $0x1c8] sm:$0xff]
  %v1149 = vld [vmem:[%s1 + $0x1d0] sm:$0xff]
  %v1150 = vld [vmem:[%s1 + $0x1d8] sm:$0xff]
  %v1151 = vld [vmem:[%s1 + $0x1e0] sm:$0xff]
  %v1152 = vld [vmem:[%s1 + $0x1e8] sm:$0xff]
  %v1154 = vsel %vm249, %v1147, 0
  %v1157 = vsel %vm249, %v1148, 0
  %v1160 = vsel %vm249, %v1149, 0
  %v1163 = vsel %vm249, %v1150, 0
  %v1166 = vsel %vm249, %v1151, 0
  %v1169 = vsel %vm249, %v1152, 0
  %1171 = vmatprep.subr.mxu0 0.0
  %1172 = vmatpush1.msra.mxu0 %v881
  %1173 = vmatprep.subr.mxu0 0.0
  %1174 = vmatpush1.msra.mxu0 %v886
  %1175 = vmatprep.subr.mxu0 0.0
  %1176 = vmatpush1.msra.mxu0 %v891
  %1177 = vmatprep.subr.mxu0 0.0
  %1178 = vmatpush1.msra.mxu0 %v896
  %1179 = vmatprep.subr.mxu0 0.0
  %1180 = vmatpush1.msra.mxu0 %v901
  %1181 = vmatprep.subr.mxu0 0.0
  %1182 = vmatpush1.msra.mxu0 %v906
  %1183 = vmatprep.subr.mxu0 0.0
  %1184 = vmatpush1.msra.mxu0 0.0
  %1185 = vmatprep.subr.mxu0 0.0
  %1186 = vmatpush1.msra.mxu0 0.0
  %1187 = vmatprep.subr.mxu0 0.0
  %1188 = vmatpush1.msra.mxu0 0.0
  %1189 = vmatprep.subr.mxu0 0.0
  %1190 = vmatpush1.msra.mxu0 0.0
  %1191 = vmatprep.subr.mxu0 0.0
  %1192 = vmatpush1.msra.mxu0 0.0
  %1193 = vmatprep.subr.mxu0 0.0
  %1194 = vmatpush1.msra.mxu0 0.0
  %1195 = vmatprep.subr.mxu0 0.0
  %1196 = vmatpush1.msra.mxu0 0.0
  %1197 = vmatprep.subr.mxu0 0.0
  %1198 = vmatpush1.msra.mxu0 0.0
  %1199 = vmatprep.subr.mxu0 0.0
  %1200 = vmatpush1.msra.mxu0 0.0
  %1201 = vmatprep.subr.mxu0 0.0
  %1202 = vmatpush1.msra.mxu0 0.0
  %1203 = vmatprep.subr.mxu0 0.0
  %1204 = vmatpush1.msra.mxu0 0.0
  %1205 = vmatprep.subr.mxu0 0.0
  %1206 = vmatpush1.msra.mxu0 0.0
  %1207 = vmatprep.subr.mxu0 0.0
  %1208 = vmatpush1.msra.mxu0 0.0
  %1209 = vmatprep.subr.mxu0 0.0
  %1210 = vmatpush1.msra.mxu0 0.0
  %1211 = vmatprep.subr.mxu0 0.0
  %1212 = vmatpush1.msra.mxu0 0.0
  %1213 = vmatprep.subr.mxu0 0.0
  %1214 = vmatpush1.msra.mxu0 0.0
  %1215 = vmatprep.subr.mxu0 0.0
  %1216 = vmatpush1.msra.mxu0 0.0
  %1217 = vmatprep.subr.mxu0 0.0
  %1218 = vmatpush1.msra.mxu0 0.0
  %1219 = vmatprep.subr.mxu0 0.0
  %1220 = vmatpush1.msra.mxu0 0.0
  %1221 = vmatprep.subr.mxu0 0.0
  %1222 = vmatpush1.msra.mxu0 0.0
  %1223 = vmatprep.subr.mxu0 0.0
  %1224 = vmatpush1.msra.mxu0 0.0
  %1225 = vmatprep.subr.mxu0 0.0
  %1226 = vmatpush1.msra.mxu0 0.0
  %1227 = vmatprep.subr.mxu0 0.0
  %1228 = vmatpush1.msra.mxu0 0.0
  %1229 = vmatprep.subr.mxu0 0.0
  %1230 = vmatpush1.msra.mxu0 0.0
  %1231 = vmatprep.subr.mxu0 0.0
  %1232 = vmatpush1.msra.mxu0 0.0
  %1233 = vmatprep.subr.mxu0 0.0
  %1234 = vmatpush1.msra.mxu0 0.0
  %1235 = vmatprep.mubr.f32.mxu0 0.0
  %1236 = vmatmul.mubr.f32.gmra.mrb[0].mxu0 %v1154
  %v1237 = vpop.f32.mrb[0].mxu0
  %v1238 = vadd.f32 0.0, %v1237
  %v1239 = vpop.f32.mrb[0].mxu0
  %1240 = vmatprep.mubr.f32.mxu0 0.0
  %1241 = vmatmul.mubr.f32.gmra.mrb[0].mxu0 %v1157
  %v1242 = vpop.f32.mrb[0].mxu0
  %v1243 = vadd.f32 0.0, %v1242
  %v1244 = vpop.f32.mrb[0].mxu0
  %1245 = vmatprep.mubr.f32.mxu0 0.0
  %1246 = vmatmul.mubr.f32.gmra.mrb[0].mxu0 %v1160
  %v1247 = vpop.f32.mrb[0].mxu0
  %v1248 = vadd.f32 0.0, %v1247
  %v1249 = vpop.f32.mrb[0].mxu0
  %1250 = vmatprep.mubr.f32.mxu0 0.0
  %1251 = vmatmul.mubr.f32.gmra.mrb[0].mxu0 %v1163
  %v1252 = vpop.f32.mrb[0].mxu0
  %v1253 = vadd.f32 0.0, %v1252
  %v1254 = vpop.f32.mrb[0].mxu0
  %1255 = vmatprep.mubr.f32.mxu0 0.0
  %1256 = vmatmul.mubr.f32.gmra.mrb[0].mxu0 %v1166
  %v1257 = vpop.f32.mrb[0].mxu0
  %v1258 = vadd.f32 0.0, %v1257
  %v1259 = vpop.f32.mrb[0].mxu0
  %1260 = vmatprep.mubr.f32.mxu0 0.0
  %1261 = vmatmul.mubr.f32.gmra.mrb[0].mxu0 %v1169
  %v1262 = vpop.f32.mrb[0].mxu0
  %v1263 = vadd.f32 0.0, %v1262
  %v1264 = vpop.f32.mrb[0].mxu0
  %1265 = vdwg.mxu0
  %v1266 = vld [vmem:[%s1 + $0x1f0] sm:$0xff]
  %v1267 = vld [vmem:[%s1 + $0x1f8] sm:$0xff]
  %v1268 = vld [vmem:[%s1 + $0x200] sm:$0xff]
  %v1269 = vld [vmem:[%s1 + $0x208] sm:$0xff]
  %v1270 = vld [vmem:[%s1 + $0x210] sm:$0xff]
  %v1271 = vld [vmem:[%s1 + $0x218] sm:$0xff]
  %v1273 = vsel %vm249, %v1266, 0
  %v1276 = vsel %vm249, %v1267, 0
  %v1279 = vsel %vm249, %v1268, 0
  %v1282 = vsel %vm249, %v1269, 0
  %v1285 = vsel %vm249, %v1270, 0
  %v1288 = vsel %vm249, %v1271, 0
  %1290 = vmatprep.subr.mxu0 0.0
  %1291 = vmatpush1.msra.mxu0 %v881
  %1292 = vmatprep.subr.mxu0 0.0
  %1293 = vmatpush1.msra.mxu0 %v886
  %1294 = vmatprep.subr.mxu0 0.0
  %1295 = vmatpush1.msra.mxu0 %v891
  %1296 = vmatprep.subr.mxu0 0.0
  %1297 = vmatpush1.msra.mxu0 %v896
  %1298 = vmatprep.subr.mxu0 0.0
  %1299 = vmatpush1.msra.mxu0 %v901
  %1300 = vmatprep.subr.mxu0 0.0
  %1301 = vmatpush1.msra.mxu0 %v906
  %1302 = vmatprep.subr.mxu0 0.0
  %1303 = vmatpush1.msra.mxu0 0.0
  %1304 = vmatprep.subr.mxu0 0.0
  %1305 = vmatpush1.msra.mxu0 0.0
  %1306 = vmatprep.subr.mxu0 0.0
  %1307 = vmatpush1.msra.mxu0 0.0
  %1308 = vmatprep.subr.mxu0 0.0
  %1309 = vmatpush1.msra.mxu0 0.0
  %1310 = vmatprep.subr.mxu0 0.0
  %1311 = vmatpush1.msra.mxu0 0.0
  %1312 = vmatprep.subr.mxu0 0.0
  %1313 = vmatpush1.msra.mxu0 0.0
  %1314 = vmatprep.subr.mxu0 0.0
  %1315 = vmatpush1.msra.mxu0 0.0
  %1316 = vmatprep.subr.mxu0 0.0
  %1317 = vmatpush1.msra.mxu0 0.0
  %1318 = vmatprep.subr.mxu0 0.0
  %1319 = vmatpush1.msra.mxu0 0.0
  %1320 = vmatprep.subr.mxu0 0.0
  %1321 = vmatpush1.msra.mxu0 0.0
  %1322 = vmatprep.subr.mxu0 0.0
  %1323 = vmatpush1.msra.mxu0 0.0
  %1324 = vmatprep.subr.mxu0 0.0
  %1325 = vmatpush1.msra.mxu0 0.0
  %1326 = vmatprep.subr.mxu0 0.0
  %1327 = vmatpush1.msra.mxu0 0.0
  %1328 = vmatprep.subr.mxu0 0.0
  %1329 = vmatpush1.msra.mxu0 0.0
  %1330 = vmatprep.subr.mxu0 0.0
  %1331 = vmatpush1.msra.mxu0 0.0
  %1332 = vmatprep.subr.mxu0 0.0
  %1333 = vmatpush1.msra.mxu0 0.0
  %1334 = vmatprep.subr.mxu0 0.0
  %1335 = vmatpush1.msra.mxu0 0.0
  %1336 = vmatprep.subr.mxu0 0.0
  %1337 = vmatpush1.msra.mxu0 0.0
  %1338 = vmatprep.subr.mxu0 0.0
  %1339 = vmatpush1.msra.mxu0 0.0
  %1340 = vmatprep.subr.mxu0 0.0
  %1341 = vmatpush1.msra.mxu0 0.0
  %1342 = vmatprep.subr.mxu0 0.0
  %1343 = vmatpush1.msra.mxu0 0.0
  %1344 = vmatprep.subr.mxu0 0.0
  %1345 = vmatpush1.msra.mxu0 0.0
  %1346 = vmatprep.subr.mxu0 0.0
  %1347 = vmatpush1.msra.mxu0 0.0
  %1348 = vmatprep.subr.mxu0 0.0
  %1349 = vmatpush1.msra.mxu0 0.0
  %1350 = vmatprep.subr.mxu0 0.0
  %1351 = vmatpush1.msra.mxu0 0.0
  %1352 = vmatprep.subr.mxu0 0.0
  %1353 = vmatpush1.msra.mxu0 0.0
  %1354 = vmatprep.mubr.f32.mxu0 0.0
  %1355 = vmatmul.mubr.f32.gmra.mrb[0].mxu0 %v1273
  %v1356 = vpop.f32.mrb[0].mxu0
  %v1357 = vadd.f32 0.0, %v1356
  %v1358 = vpop.f32.mrb[0].mxu0
  %1359 = vmatprep.mubr.f32.mxu0 0.0
  %1360 = vmatmul.mubr.f32.gmra.mrb[0].mxu0 %v1276
  %v1361 = vpop.f32.mrb[0].mxu0
  %v1362 = vadd.f32 0.0, %v1361
  %v1363 = vpop.f32.mrb[0].mxu0
  %1364 = vmatprep.mubr.f32.mxu0 0.0
  %1365 = vmatmul.mubr.f32.gmra.mrb[0].mxu0 %v1279
  %v1366 = vpop.f32.mrb[0].mxu0
  %v1367 = vadd.f32 0.0, %v1366
  %v1368 = vpop.f32.mrb[0].mxu0
  %1369 = vmatprep.mubr.f32.mxu0 0.0
  %1370 = vmatmul.mubr.f32.gmra.mrb[0].mxu0 %v1282
  %v1371 = vpop.f32.mrb[0].mxu0
  %v1372 = vadd.f32 0.0, %v1371
  %v1373 = vpop.f32.mrb[0].mxu0
  %1374 = vmatprep.mubr.f32.mxu0 0.0
  %1375 = vmatmul.mubr.f32.gmra.mrb[0].mxu0 %v1285
  %v1376 = vpop.f32.mrb[0].mxu0
  %v1377 = vadd.f32 0.0, %v1376
  %v1378 = vpop.f32.mrb[0].mxu0
  %1379 = vmatprep.mubr.f32.mxu0 0.0
  %1380 = vmatmul.mubr.f32.gmra.mrb[0].mxu0 %v1288
  %v1381 = vpop.f32.mrb[0].mxu0
  %v1382 = vadd.f32 0.0, %v1381
  %v1383 = vpop.f32.mrb[0].mxu0
  %1384 = vdwg.mxu0
  %v1385 = vld [vmem:[%s1 + $0x220] sm:$0xff]
  %v1386 = vld [vmem:[%s1 + $0x228] sm:$0xff]
  %v1387 = vld [vmem:[%s1 + $0x230] sm:$0xff]
  %v1388 = vld [vmem:[%s1 + $0x238] sm:$0xff]
  %v1389 = vld [vmem:[%s1 + $0x240] sm:$0xff]
  %v1390 = vld [vmem:[%s1 + $0x248] sm:$0xff]
  %v1392 = vsel %vm249, %v1385, 0
  %v1395 = vsel %vm249, %v1386, 0
  %v1398 = vsel %vm249, %v1387, 0
  %v1401 = vsel %vm249, %v1388, 0
  %v1404 = vsel %vm249, %v1389, 0
  %v1407 = vsel %vm249, %v1390, 0
  %1409 = vmatprep.subr.mxu0 0.0
  %1410 = vmatpush1.msra.mxu0 %v881
  %1411 = vmatprep.subr.mxu0 0.0
  %1412 = vmatpush1.msra.mxu0 %v886
  %1413 = vmatprep.subr.mxu0 0.0
  %1414 = vmatpush1.msra.mxu0 %v891
  %1415 = vmatprep.subr.mxu0 0.0
  %1416 = vmatpush1.msra.mxu0 %v896
  %1417 = vmatprep.subr.mxu0 0.0
  %1418 = vmatpush1.msra.mxu0 %v901
  %1419 = vmatprep.subr.mxu0 0.0
  %1420 = vmatpush1.msra.mxu0 %v906
  %1421 = vmatprep.subr.mxu0 0.0
  %1422 = vmatpush1.msra.mxu0 0.0
  %1423 = vmatprep.subr.mxu0 0.0
  %1424 = vmatpush1.msra.mxu0 0.0
  %1425 = vmatprep.subr.mxu0 0.0
  %1426 = vmatpush1.msra.mxu0 0.0
  %1427 = vmatprep.subr.mxu0 0.0
  %1428 = vmatpush1.msra.mxu0 0.0
  %1429 = vmatprep.subr.mxu0 0.0
  %1430 = vmatpush1.msra.mxu0 0.0
  %1431 = vmatprep.subr.mxu0 0.0
  %1432 = vmatpush1.msra.mxu0 0.0
  %1433 = vmatprep.subr.mxu0 0.0
  %1434 = vmatpush1.msra.mxu0 0.0
  %1435 = vmatprep.subr.mxu0 0.0
  %1436 = vmatpush1.msra.mxu0 0.0
  %1437 = vmatprep.subr.mxu0 0.0
  %1438 = vmatpush1.msra.mxu0 0.0
  %1439 = vmatprep.subr.mxu0 0.0
  %1440 = vmatpush1.msra.mxu0 0.0
  %1441 = vmatprep.subr.mxu0 0.0
  %1442 = vmatpush1.msra.mxu0 0.0
  %1443 = vmatprep.subr.mxu0 0.0
  %1444 = vmatpush1.msra.mxu0 0.0
  %1445 = vmatprep.subr.mxu0 0.0
  %1446 = vmatpush1.msra.mxu0 0.0
  %1447 = vmatprep.subr.mxu0 0.0
  %1448 = vmatpush1.msra.mxu0 0.0
  %1449 = vmatprep.subr.mxu0 0.0
  %1450 = vmatpush1.msra.mxu0 0.0
  %1451 = vmatprep.subr.mxu0 0.0
  %1452 = vmatpush1.msra.mxu0 0.0
  %1453 = vmatprep.subr.mxu0 0.0
  %1454 = vmatpush1.msra.mxu0 0.0
  %1455 = vmatprep.subr.mxu0 0.0
  %1456 = vmatpush1.msra.mxu0 0.0
  %1457 = vmatprep.subr.mxu0 0.0
  %1458 = vmatpush1.msra.mxu0 0.0
  %1459 = vmatprep.subr.mxu0 0.0
  %1460 = vmatpush1.msra.mxu0 0.0
  %1461 = vmatprep.subr.mxu0 0.0
  %1462 = vmatpush1.msra.mxu0 0.0
  %1463 = vmatprep.subr.mxu0 0.0
  %1464 = vmatpush1.msra.mxu0 0.0
  %1465 = vmatprep.subr.mxu0 0.0
  %1466 = vmatpush1.msra.mxu0 0.0
  %1467 = vmatprep.subr.mxu0 0.0
  %1468 = vmatpush1.msra.mxu0 0.0
  %1469 = vmatprep.subr.mxu0 0.0
  %1470 = vmatpush1.msra.mxu0 0.0
  %1471 = vmatprep.subr.mxu0 0.0
  %1472 = vmatpush1.msra.mxu0 0.0
  %1473 = vmatprep.mubr.f32.mxu0 0.0
  %1474 = vmatmul.mubr.f32.gmra.mrb[0].mxu0 %v1392
  %v1475 = vpop.f32.mrb[0].mxu0
  %v1476 = vadd.f32 0.0, %v1475
  %v1477 = vpop.f32.mrb[0].mxu0
  %1478 = vmatprep.mubr.f32.mxu0 0.0
  %1479 = vmatmul.mubr.f32.gmra.mrb[0].mxu0 %v1395
  %v1480 = vpop.f32.mrb[0].mxu0
  %v1481 = vadd.f32 0.0, %v1480
  %v1482 = vpop.f32.mrb[0].mxu0
  %1483 = vmatprep.mubr.f32.mxu0 0.0
  %1484 = vmatmul.mubr.f32.gmra.mrb[0].mxu0 %v1398
  %v1485 = vpop.f32.mrb[0].mxu0
  %v1486 = vadd.f32 0.0, %v1485
  %v1487 = vpop.f32.mrb[0].mxu0
  %1488 = vmatprep.mubr.f32.mxu0 0.0
  %1489 = vmatmul.mubr.f32.gmra.mrb[0].mxu0 %v1401
  %v1490 = vpop.f32.mrb[0].mxu0
  %v1491 = vadd.f32 0.0, %v1490
  %v1492 = vpop.f32.mrb[0].mxu0
  %1493 = vmatprep.mubr.f32.mxu0 0.0
  %1494 = vmatmul.mubr.f32.gmra.mrb[0].mxu0 %v1404
  %v1495 = vpop.f32.mrb[0].mxu0
  %v1496 = vadd.f32 0.0, %v1495
  %v1497 = vpop.f32.mrb[0].mxu0
  %1498 = vmatprep.mubr.f32.mxu0 0.0
  %1499 = vmatmul.mubr.f32.gmra.mrb[0].mxu0 %v1407
  %v1500 = vpop.f32.mrb[0].mxu0
  %v1501 = vadd.f32 0.0, %v1500
  %v1502 = vpop.f32.mrb[0].mxu0
  %1503 = vdwg.mxu0
  %v1504 = vld [vmem:[%s1 + $0x250] sm:$0xff]
  %v1505 = vld [vmem:[%s1 + $0x258] sm:$0xff]
  %v1506 = vld [vmem:[%s1 + $0x260] sm:$0xff]
  %v1507 = vld [vmem:[%s1 + $0x268] sm:$0xff]
  %v1508 = vld [vmem:[%s1 + $0x270] sm:$0xff]
  %v1509 = vld [vmem:[%s1 + $0x278] sm:$0xff]
  %v1511 = vsel %vm249, %v1504, 0
  %v1514 = vsel %vm249, %v1505, 0
  %v1517 = vsel %vm249, %v1506, 0
  %v1520 = vsel %vm249, %v1507, 0
  %v1523 = vsel %vm249, %v1508, 0
  %v1526 = vsel %vm249, %v1509, 0
  %1528 = vmatprep.subr.mxu0 0.0
  %1529 = vmatpush1.msra.mxu0 %v881
  %1530 = vmatprep.subr.mxu0 0.0
  %1531 = vmatpush1.msra.mxu0 %v886
  %1532 = vmatprep.subr.mxu0 0.0
  %1533 = vmatpush1.msra.mxu0 %v891
  %1534 = vmatprep.subr.mxu0 0.0
  %1535 = vmatpush1.msra.mxu0 %v896
  %1536 = vmatprep.subr.mxu0 0.0
  %1537 = vmatpush1.msra.mxu0 %v901
  %1538 = vmatprep.subr.mxu0 0.0
  %1539 = vmatpush1.msra.mxu0 %v906
  %1540 = vmatprep.subr.mxu0 0.0
  %1541 = vmatpush1.msra.mxu0 0.0
  %1542 = vmatprep.subr.mxu0 0.0
  %1543 = vmatpush1.msra.mxu0 0.0
  %1544 = vmatprep.subr.mxu0 0.0
  %1545 = vmatpush1.msra.mxu0 0.0
  %1546 = vmatprep.subr.mxu0 0.0
  %1547 = vmatpush1.msra.mxu0 0.0
  %1548 = vmatprep.subr.mxu0 0.0
  %1549 = vmatpush1.msra.mxu0 0.0
  %1550 = vmatprep.subr.mxu0 0.0
  %1551 = vmatpush1.msra.mxu0 0.0
  %1552 = vmatprep.subr.mxu0 0.0
  %1553 = vmatpush1.msra.mxu0 0.0
  %1554 = vmatprep.subr.mxu0 0.0
  %1555 = vmatpush1.msra.mxu0 0.0
  %1556 = vmatprep.subr.mxu0 0.0
  %1557 = vmatpush1.msra.mxu0 0.0
  %1558 = vmatprep.subr.mxu0 0.0
  %1559 = vmatpush1.msra.mxu0 0.0
  %1560 = vmatprep.subr.mxu0 0.0
  %1561 = vmatpush1.msra.mxu0 0.0
  %1562 = vmatprep.subr.mxu0 0.0
  %1563 = vmatpush1.msra.mxu0 0.0
  %1564 = vmatprep.subr.mxu0 0.0
  %1565 = vmatpush1.msra.mxu0 0.0
  %1566 = vmatprep.subr.mxu0 0.0
  %1567 = vmatpush1.msra.mxu0 0.0
  %1568 = vmatprep.subr.mxu0 0.0
  %1569 = vmatpush1.msra.mxu0 0.0
  %1570 = vmatprep.subr.mxu0 0.0
  %1571 = vmatpush1.msra.mxu0 0.0
  %1572 = vmatprep.subr.mxu0 0.0
  %1573 = vmatpush1.msra.mxu0 0.0
  %1574 = vmatprep.subr.mxu0 0.0
  %1575 = vmatpush1.msra.mxu0 0.0
  %1576 = vmatprep.subr.mxu0 0.0
  %1577 = vmatpush1.msra.mxu0 0.0
  %1578 = vmatprep.subr.mxu0 0.0
  %1579 = vmatpush1.msra.mxu0 0.0
  %1580 = vmatprep.subr.mxu0 0.0
  %1581 = vmatpush1.msra.mxu0 0.0
  %1582 = vmatprep.subr.mxu0 0.0
  %1583 = vmatpush1.msra.mxu0 0.0
  %1584 = vmatprep.subr.mxu0 0.0
  %1585 = vmatpush1.msra.mxu0 0.0
  %1586 = vmatprep.subr.mxu0 0.0
  %1587 = vmatpush1.msra.mxu0 0.0
  %1588 = vmatprep.subr.mxu0 0.0
  %1589 = vmatpush1.msra.mxu0 0.0
  %1590 = vmatprep.subr.mxu0 0.0
  %1591 = vmatpush1.msra.mxu0 0.0
  %1592 = vmatprep.mubr.f32.mxu0 0.0
  %1593 = vmatmul.mubr.f32.gmra.mrb[0].mxu0 %v1511
  %v1594 = vpop.f32.mrb[0].mxu0
  %v1595 = vadd.f32 0.0, %v1594
  %v1596 = vpop.f32.mrb[0].mxu0
  %1597 = vmatprep.mubr.f32.mxu0 0.0
  %1598 = vmatmul.mubr.f32.gmra.mrb[0].mxu0 %v1514
  %v1599 = vpop.f32.mrb[0].mxu0
  %v1600 = vadd.f32 0.0, %v1599
  %v1601 = vpop.f32.mrb[0].mxu0
  %1602 = vmatprep.mubr.f32.mxu0 0.0
  %1603 = vmatmul.mubr.f32.gmra.mrb[0].mxu0 %v1517
  %v1604 = vpop.f32.mrb[0].mxu0
  %v1605 = vadd.f32 0.0, %v1604
  %v1606 = vpop.f32.mrb[0].mxu0
  %1607 = vmatprep.mubr.f32.mxu0 0.0
  %1608 = vmatmul.mubr.f32.gmra.mrb[0].mxu0 %v1520
  %v1609 = vpop.f32.mrb[0].mxu0
  %v1610 = vadd.f32 0.0, %v1609
  %v1611 = vpop.f32.mrb[0].mxu0
  %1612 = vmatprep.mubr.f32.mxu0 0.0
  %1613 = vmatmul.mubr.f32.gmra.mrb[0].mxu0 %v1523
  %v1614 = vpop.f32.mrb[0].mxu0
  %v1615 = vadd.f32 0.0, %v1614
  %v1616 = vpop.f32.mrb[0].mxu0
  %1617 = vmatprep.mubr.f32.mxu0 0.0
  %1618 = vmatmul.mubr.f32.gmra.mrb[0].mxu0 %v1526
  %v1619 = vpop.f32.mrb[0].mxu0
  %v1620 = vadd.f32 0.0, %v1619
  %v1621 = vpop.f32.mrb[0].mxu0
  %1622 = vdwg.mxu0
  %v1623 = vld [vmem:[%s1 + $0x280] sm:$0xff]
  %v1624 = vld [vmem:[%s1 + $0x288] sm:$0xff]
  %v1625 = vld [vmem:[%s1 + $0x290] sm:$0xff]
  %v1626 = vld [vmem:[%s1 + $0x298] sm:$0xff]
  %v1627 = vld [vmem:[%s1 + $0x2a0] sm:$0xff]
  %v1628 = vld [vmem:[%s1 + $0x2a8] sm:$0xff]
  %v1630 = vsel %vm249, %v1623, 0
  %v1633 = vsel %vm249, %v1624, 0
  %v1636 = vsel %vm249, %v1625, 0
  %v1639 = vsel %vm249, %v1626, 0
  %v1642 = vsel %vm249, %v1627, 0
  %v1645 = vsel %vm249, %v1628, 0
  %1647 = vmatprep.subr.mxu0 0.0
  %1648 = vmatpush1.msra.mxu0 %v881
  %1649 = vmatprep.subr.mxu0 0.0
  %1650 = vmatpush1.msra.mxu0 %v886
  %1651 = vmatprep.subr.mxu0 0.0
  %1652 = vmatpush1.msra.mxu0 %v891
  %1653 = vmatprep.subr.mxu0 0.0
  %1654 = vmatpush1.msra.mxu0 %v896
  %1655 = vmatprep.subr.mxu0 0.0
  %1656 = vmatpush1.msra.mxu0 %v901
  %1657 = vmatprep.subr.mxu0 0.0
  %1658 = vmatpush1.msra.mxu0 %v906
  %1659 = vmatprep.subr.mxu0 0.0
  %1660 = vmatpush1.msra.mxu0 0.0
  %1661 = vmatprep.subr.mxu0 0.0
  %1662 = vmatpush1.msra.mxu0 0.0
  %1663 = vmatprep.subr.mxu0 0.0
  %1664 = vmatpush1.msra.mxu0 0.0
  %1665 = vmatprep.subr.mxu0 0.0
  %1666 = vmatpush1.msra.mxu0 0.0
  %1667 = vmatprep.subr.mxu0 0.0
  %1668 = vmatpush1.msra.mxu0 0.0
  %1669 = vmatprep.subr.mxu0 0.0
  %1670 = vmatpush1.msra.mxu0 0.0
  %1671 = vmatprep.subr.mxu0 0.0
  %1672 = vmatpush1.msra.mxu0 0.0
  %1673 = vmatprep.subr.mxu0 0.0
  %1674 = vmatpush1.msra.mxu0 0.0
  %1675 = vmatprep.subr.mxu0 0.0
  %1676 = vmatpush1.msra.mxu0 0.0
  %1677 = vmatprep.subr.mxu0 0.0
  %1678 = vmatpush1.msra.mxu0 0.0
  %1679 = vmatprep.subr.mxu0 0.0
  %1680 = vmatpush1.msra.mxu0 0.0
  %1681 = vmatprep.subr.mxu0 0.0
  %1682 = vmatpush1.msra.mxu0 0.0
  %1683 = vmatprep.subr.mxu0 0.0
  %1684 = vmatpush1.msra.mxu0 0.0
  %1685 = vmatprep.subr.mxu0 0.0
  %1686 = vmatpush1.msra.mxu0 0.0
  %1687 = vmatprep.subr.mxu0 0.0
  %1688 = vmatpush1.msra.mxu0 0.0
  %1689 = vmatprep.subr.mxu0 0.0
  %1690 = vmatpush1.msra.mxu0 0.0
  %1691 = vmatprep.subr.mxu0 0.0
  %1692 = vmatpush1.msra.mxu0 0.0
  %1693 = vmatprep.subr.mxu0 0.0
  %1694 = vmatpush1.msra.mxu0 0.0
  %1695 = vmatprep.subr.mxu0 0.0
  %1696 = vmatpush1.msra.mxu0 0.0
  %1697 = vmatprep.subr.mxu0 0.0
  %1698 = vmatpush1.msra.mxu0 0.0
  %1699 = vmatprep.subr.mxu0 0.0
  %1700 = vmatpush1.msra.mxu0 0.0
  %1701 = vmatprep.subr.mxu0 0.0
  %1702 = vmatpush1.msra.mxu0 0.0
  %1703 = vmatprep.subr.mxu0 0.0
  %1704 = vmatpush1.msra.mxu0 0.0
  %1705 = vmatprep.subr.mxu0 0.0
  %1706 = vmatpush1.msra.mxu0 0.0
  %1707 = vmatprep.subr.mxu0 0.0
  %1708 = vmatpush1.msra.mxu0 0.0
  %1709 = vmatprep.subr.mxu0 0.0
  %1710 = vmatpush1.msra.mxu0 0.0
  %1711 = vmatprep.mubr.f32.mxu0 0.0
  %1712 = vmatmul.mubr.f32.gmra.mrb[0].mxu0 %v1630
  %v1713 = vpop.f32.mrb[0].mxu0
  %v1714 = vadd.f32 0.0, %v1713
  %v1715 = vpop.f32.mrb[0].mxu0
  %1716 = vmatprep.mubr.f32.mxu0 0.0
  %1717 = vmatmul.mubr.f32.gmra.mrb[0].mxu0 %v1633
  %v1718 = vpop.f32.mrb[0].mxu0
  %v1719 = vadd.f32 0.0, %v1718
  %v1720 = vpop.f32.mrb[0].mxu0
  %1721 = vmatprep.mubr.f32.mxu0 0.0
  %1722 = vmatmul.mubr.f32.gmra.mrb[0].mxu0 %v1636
  %v1723 = vpop.f32.mrb[0].mxu0
  %v1724 = vadd.f32 0.0, %v1723
  %v1725 = vpop.f32.mrb[0].mxu0
  %1726 = vmatprep.mubr.f32.mxu0 0.0
  %1727 = vmatmul.mubr.f32.gmra.mrb[0].mxu0 %v1639
  %v1728 = vpop.f32.mrb[0].mxu0
  %v1729 = vadd.f32 0.0, %v1728
  %v1730 = vpop.f32.mrb[0].mxu0
  %1731 = vmatprep.mubr.f32.mxu0 0.0
  %1732 = vmatmul.mubr.f32.gmra.mrb[0].mxu0 %v1642
  %v1733 = vpop.f32.mrb[0].mxu0
  %v1734 = vadd.f32 0.0, %v1733
  %v1735 = vpop.f32.mrb[0].mxu0
  %1736 = vmatprep.mubr.f32.mxu0 0.0
  %1737 = vmatmul.mubr.f32.gmra.mrb[0].mxu0 %v1645
  %v1738 = vpop.f32.mrb[0].mxu0
  %v1739 = vadd.f32 0.0, %v1738
  %v1740 = vpop.f32.mrb[0].mxu0
  %1741 = vdwg.mxu0
  %v1742 = vld [vmem:[%s1 + $0x2b0] sm:$0xff]
  %v1743 = vld [vmem:[%s1 + $0x2b8] sm:$0xff]
  %v1744 = vld [vmem:[%s1 + $0x2c0] sm:$0xff]
  %v1745 = vld [vmem:[%s1 + $0x2c8] sm:$0xff]
  %v1746 = vld [vmem:[%s1 + $0x2d0] sm:$0xff]
  %v1747 = vld [vmem:[%s1 + $0x2d8] sm:$0xff]
  %v1749 = vsel %vm249, %v1742, 0
  %v1752 = vsel %vm249, %v1743, 0
  %v1755 = vsel %vm249, %v1744, 0
  %v1758 = vsel %vm249, %v1745, 0
  %v1761 = vsel %vm249, %v1746, 0
  %v1764 = vsel %vm249, %v1747, 0
  %1766 = vmatprep.subr.mxu0 0.0
  %1767 = vmatpush1.msra.mxu0 %v881
  %1768 = vmatprep.subr.mxu0 0.0
  %1769 = vmatpush1.msra.mxu0 %v886
  %1770 = vmatprep.subr.mxu0 0.0
  %1771 = vmatpush1.msra.mxu0 %v891
  %1772 = vmatprep.subr.mxu0 0.0
  %1773 = vmatpush1.msra.mxu0 %v896
  %1774 = vmatprep.subr.mxu0 0.0
  %1775 = vmatpush1.msra.mxu0 %v901
  %1776 = vmatprep.subr.mxu0 0.0
  %1777 = vmatpush1.msra.mxu0 %v906
  %1778 = vmatprep.subr.mxu0 0.0
  %1779 = vmatpush1.msra.mxu0 0.0
  %1780 = vmatprep.subr.mxu0 0.0
  %1781 = vmatpush1.msra.mxu0 0.0
  %1782 = vmatprep.subr.mxu0 0.0
  %1783 = vmatpush1.msra.mxu0 0.0
  %1784 = vmatprep.subr.mxu0 0.0
  %1785 = vmatpush1.msra.mxu0 0.0
  %1786 = vmatprep.subr.mxu0 0.0
  %1787 = vmatpush1.msra.mxu0 0.0
  %1788 = vmatprep.subr.mxu0 0.0
  %1789 = vmatpush1.msra.mxu0 0.0
  %1790 = vmatprep.subr.mxu0 0.0
  %1791 = vmatpush1.msra.mxu0 0.0
  %1792 = vmatprep.subr.mxu0 0.0
  %1793 = vmatpush1.msra.mxu0 0.0
  %1794 = vmatprep.subr.mxu0 0.0
  %1795 = vmatpush1.msra.mxu0 0.0
  %1796 = vmatprep.subr.mxu0 0.0
  %1797 = vmatpush1.msra.mxu0 0.0
  %1798 = vmatprep.subr.mxu0 0.0
  %1799 = vmatpush1.msra.mxu0 0.0
  %1800 = vmatprep.subr.mxu0 0.0
  %1801 = vmatpush1.msra.mxu0 0.0
  %1802 = vmatprep.subr.mxu0 0.0
  %1803 = vmatpush1.msra.mxu0 0.0
  %1804 = vmatprep.subr.mxu0 0.0
  %1805 = vmatpush1.msra.mxu0 0.0
  %1806 = vmatprep.subr.mxu0 0.0
  %1807 = vmatpush1.msra.mxu0 0.0
  %1808 = vmatprep.subr.mxu0 0.0
  %1809 = vmatpush1.msra.mxu0 0.0
  %1810 = vmatprep.subr.mxu0 0.0
  %1811 = vmatpush1.msra.mxu0 0.0
  %1812 = vmatprep.subr.mxu0 0.0
  %1813 = vmatpush1.msra.mxu0 0.0
  %1814 = vmatprep.subr.mxu0 0.0
  %1815 = vmatpush1.msra.mxu0 0.0
  %1816 = vmatprep.subr.mxu0 0.0
  %1817 = vmatpush1.msra.mxu0 0.0
  %1818 = vmatprep.subr.mxu0 0.0
  %1819 = vmatpush1.msra.mxu0 0.0
  %1820 = vmatprep.subr.mxu0 0.0
  %1821 = vmatpush1.msra.mxu0 0.0
  %1822 = vmatprep.subr.mxu0 0.0
  %1823 = vmatpush1.msra.mxu0 0.0
  %1824 = vmatprep.subr.mxu0 0.0
  %1825 = vmatpush1.msra.mxu0 0.0
  %1826 = vmatprep.subr.mxu0 0.0
  %1827 = vmatpush1.msra.mxu0 0.0
  %1828 = vmatprep.subr.mxu0 0.0
  %1829 = vmatpush1.msra.mxu0 0.0
  %1830 = vmatprep.mubr.f32.mxu0 0.0
  %1831 = vmatmul.mubr.f32.gmra.mrb[0].mxu0 %v1749
  %v1832 = vpop.f32.mrb[0].mxu0
  %v1833 = vadd.f32 0.0, %v1832
  %v1834 = vpop.f32.mrb[0].mxu0
  %1835 = vmatprep.mubr.f32.mxu0 0.0
  %1836 = vmatmul.mubr.f32.gmra.mrb[0].mxu0 %v1752
  %v1837 = vpop.f32.mrb[0].mxu0
  %v1838 = vadd.f32 0.0, %v1837
  %v1839 = vpop.f32.mrb[0].mxu0
  %1840 = vmatprep.mubr.f32.mxu0 0.0
  %1841 = vmatmul.mubr.f32.gmra.mrb[0].mxu0 %v1755
  %v1842 = vpop.f32.mrb[0].mxu0
  %v1843 = vadd.f32 0.0, %v1842
  %v1844 = vpop.f32.mrb[0].mxu0
  %1845 = vmatprep.mubr.f32.mxu0 0.0
  %1846 = vmatmul.mubr.f32.gmra.mrb[0].mxu0 %v1758
  %v1847 = vpop.f32.mrb[0].mxu0
  %v1848 = vadd.f32 0.0, %v1847
  %v1849 = vpop.f32.mrb[0].mxu0
  %1850 = vmatprep.mubr.f32.mxu0 0.0
  %1851 = vmatmul.mubr.f32.gmra.mrb[0].mxu0 %v1761
  %v1852 = vpop.f32.mrb[0].mxu0
  %v1853 = vadd.f32 0.0, %v1852
  %v1854 = vpop.f32.mrb[0].mxu0
  %1855 = vmatprep.mubr.f32.mxu0 0.0
  %1856 = vmatmul.mubr.f32.gmra.mrb[0].mxu0 %v1764
  %v1857 = vpop.f32.mrb[0].mxu0
  %v1858 = vadd.f32 0.0, %v1857
  %v1859 = vpop.f32.mrb[0].mxu0
  %1860 = vdwg.mxu0
  %1867 = vrot.lane.b32.xlu0 %v1119, 2
  %v1868 = vpop.permute.xlu0 %1867
  %1869 = vrot.lane.b32.xlu0 %v1124, 2
  %v1870 = vpop.permute.xlu0 %1869
  %1871 = vrot.lane.b32.xlu0 %v1129, 2
  %v1872 = vpop.permute.xlu0 %1871
  %1873 = vrot.lane.b32.xlu0 %v1134, 2
  %v1874 = vpop.permute.xlu0 %1873
  %1875 = vrot.lane.b32.xlu0 %v1139, 2
  %v1876 = vpop.permute.xlu0 %1875
  %1877 = vrot.lane.b32.xlu0 %v1144, 2
  %v1878 = vpop.permute.xlu0 %1877
  %1891 = vrot.lane.b32.xlu0 %v1238, 4
  %v1892 = vpop.permute.xlu0 %1891
  %1893 = vrot.lane.b32.xlu0 %v1243, 4
  %v1894 = vpop.permute.xlu0 %1893
  %1895 = vrot.lane.b32.xlu0 %v1248, 4
  %v1896 = vpop.permute.xlu0 %1895
  %1897 = vrot.lane.b32.xlu0 %v1253, 4
  %v1898 = vpop.permute.xlu0 %1897
  %1899 = vrot.lane.b32.xlu0 %v1258, 4
  %v1900 = vpop.permute.xlu0 %1899
  %1901 = vrot.lane.b32.xlu0 %v1263, 4
  %v1902 = vpop.permute.xlu0 %1901
  %1915 = vrot.lane.b32.xlu0 %v1357, 6
  %v1916 = vpop.permute.xlu0 %1915
  %1917 = vrot.lane.b32.xlu0 %v1362, 6
  %v1918 = vpop.permute.xlu0 %1917
  %1919 = vrot.lane.b32.xlu0 %v1367, 6
  %v1920 = vpop.permute.xlu0 %1919
  %1921 = vrot.lane.b32.xlu0 %v1372, 6
  %v1922 = vpop.permute.xlu0 %1921
  %1923 = vrot.lane.b32.xlu0 %v1377, 6
  %v1924 = vpop.permute.xlu0 %1923
  %1925 = vrot.lane.b32.xlu0 %v1382, 6
  %v1926 = vpop.permute.xlu0 %1925
  %1939 = vrot.lane.b32.xlu0 %v1476, 8
  %v1940 = vpop.permute.xlu0 %1939
  %1941 = vrot.lane.b32.xlu0 %v1481, 8
  %v1942 = vpop.permute.xlu0 %1941
  %1943 = vrot.lane.b32.xlu0 %v1486, 8
  %v1944 = vpop.permute.xlu0 %1943
  %1945 = vrot.lane.b32.xlu0 %v1491, 8
  %v1946 = vpop.permute.xlu0 %1945
  %1947 = vrot.lane.b32.xlu0 %v1496, 8
  %v1948 = vpop.permute.xlu0 %1947
  %1949 = vrot.lane.b32.xlu0 %v1501, 8
  %v1950 = vpop.permute.xlu0 %1949
  %1963 = vrot.lane.b32.xlu0 %v1595, 10
  %v1964 = vpop.permute.xlu0 %1963
  %1965 = vrot.lane.b32.xlu0 %v1600, 10
  %v1966 = vpop.permute.xlu0 %1965
  %1967 = vrot.lane.b32.xlu0 %v1605, 10
  %v1968 = vpop.permute.xlu0 %1967
  %1969 = vrot.lane.b32.xlu0 %v1610, 10
  %v1970 = vpop.permute.xlu0 %1969
  %1971 = vrot.lane.b32.xlu0 %v1615, 10
  %v1972 = vpop.permute.xlu0 %1971
  %1973 = vrot.lane.b32.xlu0 %v1620, 10
  %v1974 = vpop.permute.xlu0 %1973
  %1987 = vrot.lane.b32.xlu0 %v1714, 12
  %v1988 = vpop.permute.xlu0 %1987
  %1989 = vrot.lane.b32.xlu0 %v1719, 12
  %v1990 = vpop.permute.xlu0 %1989
  %1991 = vrot.lane.b32.xlu0 %v1724, 12
  %v1992 = vpop.permute.xlu0 %1991
  %1993 = vrot.lane.b32.xlu0 %v1729, 12
  %v1994 = vpop.permute.xlu0 %1993
  %1995 = vrot.lane.b32.xlu0 %v1734, 12
  %v1996 = vpop.permute.xlu0 %1995
  %1997 = vrot.lane.b32.xlu0 %v1739, 12
  %v1998 = vpop.permute.xlu0 %1997
  %2011 = vrot.lane.b32.xlu0 %v1833, 14
  %v2012 = vpop.permute.xlu0 %2011
  %2013 = vrot.lane.b32.xlu0 %v1838, 14
  %v2014 = vpop.permute.xlu0 %2013
  %2015 = vrot.lane.b32.xlu0 %v1843, 14
  %v2016 = vpop.permute.xlu0 %2015
  %2017 = vrot.lane.b32.xlu0 %v1848, 14
  %v2018 = vpop.permute.xlu0 %2017
  %2019 = vrot.lane.b32.xlu0 %v1853, 14
  %v2020 = vpop.permute.xlu0 %2019
  %2021 = vrot.lane.b32.xlu0 %v1858, 14
  %v2022 = vpop.permute.xlu0 %2021
  %vm2029 = vcmask 15360
  %v2030 = vsel %vm2029, %v1000, %v1868
  %v2031 = vsel %vm2029, %v1005, %v1870
  %v2032 = vsel %vm2029, %v1010, %v1872
  %v2033 = vsel %vm2029, %v1015, %v1874
  %v2034 = vsel %vm2029, %v1020, %v1876
  %v2035 = vsel %vm2029, %v1025, %v1878
  %vm2036 = vcmask 31744
  %v2037 = vsel %vm2036, %v2030, %v1892
  %v2038 = vsel %vm2036, %v2031, %v1894
  %v2039 = vsel %vm2036, %v2032, %v1896
  %v2040 = vsel %vm2036, %v2033, %v1898
  %v2041 = vsel %vm2036, %v2034, %v1900
  %v2042 = vsel %vm2036, %v2035, %v1902
  %vm2043 = vcmask 48128
  %v2044 = vsel %vm2043, %v2037, %v1916
  %v2045 = vsel %vm2043, %v2038, %v1918
  %v2046 = vsel %vm2043, %v2039, %v1920
  %v2047 = vsel %vm2043, %v2040, %v1922
  %v2048 = vsel %vm2043, %v2041, %v1924
  %v2049 = vsel %vm2043, %v2042, %v1926
  %vm2050 = vcmask 64512
  %v2051 = vsel %vm2050, %v2044, %v1940
  %v2052 = vsel %vm2050, %v2045, %v1942
  %v2053 = vsel %vm2050, %v2046, %v1944
  %v2054 = vsel %vm2050, %v2047, %v1946
  %v2055 = vsel %vm2050, %v2048, %v1948
  %v2056 = vsel %vm2050, %v2049, %v1950
  %vm2057 = vcmask 80896
  %v2058 = vsel %vm2057, %v2051, %v1964
  %v2059 = vsel %vm2057, %v2052, %v1966
  %v2060 = vsel %vm2057, %v2053, %v1968
  %v2061 = vsel %vm2057, %v2054, %v1970
  %v2062 = vsel %vm2057, %v2055, %v1972
  %v2063 = vsel %vm2057, %v2056, %v1974
  %vm2064 = vcmask 97280
  %v2065 = vsel %vm2064, %v2058, %v1988
  %v2066 = vsel %vm2064, %v2059, %v1990
  %v2067 = vsel %vm2064, %v2060, %v1992
  %v2068 = vsel %vm2064, %v2061, %v1994
  %v2069 = vsel %vm2064, %v2062, %v1996
  %v2070 = vsel %vm2064, %v2063, %v1998
  %vm2071 = vcmask 113664
  %v2072 = vsel %vm2071, %v2065, %v2012
  %v2073 = vsel %vm2071, %v2066, %v2014
  %v2074 = vsel %vm2071, %v2067, %v2016
  %v2075 = vsel %vm2071, %v2068, %v2018
  %v2076 = vsel %vm2071, %v2069, %v2020
  %v2077 = vsel %vm2071, %v2070, %v2022
  %v2078 = vld [vmem:[%s1 + $0x2e0] sm:$0xff]
  %v2079 = vld [vmem:[%s1 + $0x2e8] sm:$0xff]
  %v2080 = vld [vmem:[%s1 + $0x2f0] sm:$0xff]
  %v2081 = vld [vmem:[%s1 + $0x2f8] sm:$0xff]
  %v2082 = vld [vmem:[%s1 + $0x300] sm:$0xff]
  %v2083 = vld [vmem:[%s1 + $0x308] sm:$0xff]
  %v2084 = vld [vmem:[%s1 + $0x310] sm:$0xff]
  %v2085 = vld [vmem:[%s1 + $0x318] sm:$0xff]
  %v2087 = vsel %vm249, %v2078, 0
  %v2090 = vsel %vm249, %v2079, 0
  %v2093 = vsel %vm249, %v2080, 0
  %v2096 = vsel %vm249, %v2081, 0
  %v2099 = vsel %vm249, %v2082, 0
  %v2102 = vsel %vm249, %v2083, 0
  %v2105 = vsel %vm249, %v2084, 0
  %v2108 = vsel %vm249, %v2085, 0
  %2110 = vmatprep.subr.mxu0 0.0
  %2111 = vmatpush1.msra.mxu0 %v2072
  %2112 = vmatprep.subr.mxu0 0.0
  %2113 = vmatpush1.msra.mxu0 %v2073
  %2114 = vmatprep.subr.mxu0 0.0
  %2115 = vmatpush1.msra.mxu0 %v2074
  %2116 = vmatprep.subr.mxu0 0.0
  %2117 = vmatpush1.msra.mxu0 %v2075
  %2118 = vmatprep.subr.mxu0 0.0
  %2119 = vmatpush1.msra.mxu0 %v2076
  %2120 = vmatprep.subr.mxu0 0.0
  %2121 = vmatpush1.msra.mxu0 %v2077
  %2122 = vmatprep.subr.mxu0 0.0
  %2123 = vmatpush1.msra.mxu0 0.0
  %2124 = vmatprep.subr.mxu0 0.0
  %2125 = vmatpush1.msra.mxu0 0.0
  %2126 = vmatprep.subr.mxu0 0.0
  %2127 = vmatpush1.msra.mxu0 0.0
  %2128 = vmatprep.subr.mxu0 0.0
  %2129 = vmatpush1.msra.mxu0 0.0
  %2130 = vmatprep.subr.mxu0 0.0
  %2131 = vmatpush1.msra.mxu0 0.0
  %2132 = vmatprep.subr.mxu0 0.0
  %2133 = vmatpush1.msra.mxu0 0.0
  %2134 = vmatprep.subr.mxu0 0.0
  %2135 = vmatpush1.msra.mxu0 0.0
  %2136 = vmatprep.subr.mxu0 0.0
  %2137 = vmatpush1.msra.mxu0 0.0
  %2138 = vmatprep.subr.mxu0 0.0
  %2139 = vmatpush1.msra.mxu0 0.0
  %2140 = vmatprep.subr.mxu0 0.0
  %2141 = vmatpush1.msra.mxu0 0.0
  %2142 = vmatprep.subr.mxu0 0.0
  %2143 = vmatpush1.msra.mxu0 0.0
  %2144 = vmatprep.subr.mxu0 0.0
  %2145 = vmatpush1.msra.mxu0 0.0
  %2146 = vmatprep.subr.mxu0 0.0
  %2147 = vmatpush1.msra.mxu0 0.0
  %2148 = vmatprep.subr.mxu0 0.0
  %2149 = vmatpush1.msra.mxu0 0.0
  %2150 = vmatprep.subr.mxu0 0.0
  %2151 = vmatpush1.msra.mxu0 0.0
  %2152 = vmatprep.subr.mxu0 0.0
  %2153 = vmatpush1.msra.mxu0 0.0
  %2154 = vmatprep.subr.mxu0 0.0
  %2155 = vmatpush1.msra.mxu0 0.0
  %2156 = vmatprep.subr.mxu0 0.0
  %2157 = vmatpush1.msra.mxu0 0.0
  %2158 = vmatprep.subr.mxu0 0.0
  %2159 = vmatpush1.msra.mxu0 0.0
  %2160 = vmatprep.subr.mxu0 0.0
  %2161 = vmatpush1.msra.mxu0 0.0
  %2162 = vmatprep.subr.mxu0 0.0
  %2163 = vmatpush1.msra.mxu0 0.0
  %2164 = vmatprep.subr.mxu0 0.0
  %2165 = vmatpush1.msra.mxu0 0.0
  %2166 = vmatprep.subr.mxu0 0.0
  %2167 = vmatpush1.msra.mxu0 0.0
  %2168 = vmatprep.subr.mxu0 0.0
  %2169 = vmatpush1.msra.mxu0 0.0
  %2170 = vmatprep.subr.mxu0 0.0
  %2171 = vmatpush1.msra.mxu0 0.0
  %2172 = vmatprep.subr.mxu0 0.0
  %2173 = vmatpush1.msra.mxu0 0.0
  %2174 = vmatprep.mubr.f32.mxu0 0.0
  %2175 = vmatmul.mubr.f32.gmra.mrb[0].mxu0 %v2087
  %v2176 = vpop.f32.mrb[0].mxu0
  %v2177 = vadd.f32 0.0, %v2176
  %v2178 = vpop.f32.mrb[0].mxu0
  %2179 = vmatprep.mubr.f32.mxu0 0.0
  %2180 = vmatmul.mubr.f32.gmra.mrb[0].mxu0 %v2090
  %v2181 = vpop.f32.mrb[0].mxu0
  %v2182 = vadd.f32 0.0, %v2181
  %v2183 = vpop.f32.mrb[0].mxu0
  %2184 = vmatprep.mubr.f32.mxu0 0.0
  %2185 = vmatmul.mubr.f32.gmra.mrb[0].mxu0 %v2093
  %v2186 = vpop.f32.mrb[0].mxu0
  %v2187 = vadd.f32 0.0, %v2186
  %v2188 = vpop.f32.mrb[0].mxu0
  %2189 = vmatprep.mubr.f32.mxu0 0.0
  %2190 = vmatmul.mubr.f32.gmra.mrb[0].mxu0 %v2096
  %v2191 = vpop.f32.mrb[0].mxu0
  %v2192 = vadd.f32 0.0, %v2191
  %v2193 = vpop.f32.mrb[0].mxu0
  %2194 = vmatprep.mubr.f32.mxu0 0.0
  %2195 = vmatmul.mubr.f32.gmra.mrb[0].mxu0 %v2099
  %v2196 = vpop.f32.mrb[0].mxu0
  %v2197 = vadd.f32 0.0, %v2196
  %v2198 = vpop.f32.mrb[0].mxu0
  %2199 = vmatprep.mubr.f32.mxu0 0.0
  %2200 = vmatmul.mubr.f32.gmra.mrb[0].mxu0 %v2102
  %v2201 = vpop.f32.mrb[0].mxu0
  %v2202 = vadd.f32 0.0, %v2201
  %v2203 = vpop.f32.mrb[0].mxu0
  %2204 = vmatprep.mubr.f32.mxu0 0.0
  %2205 = vmatmul.mubr.f32.gmra.mrb[0].mxu0 %v2105
  %v2206 = vpop.f32.mrb[0].mxu0
  %v2207 = vadd.f32 0.0, %v2206
  %v2208 = vpop.f32.mrb[0].mxu0
  %2209 = vmatprep.mubr.f32.mxu0 0.0
  %2210 = vmatmul.mubr.f32.gmra.mrb[0].mxu0 %v2108
  %v2211 = vpop.f32.mrb[0].mxu0
  %v2212 = vadd.f32 0.0, %v2211
  %v2213 = vpop.f32.mrb[0].mxu0
  %2214 = vdwg.mxu0
  %v2215 = vld [vmem:[%s1 + $0x320] sm:$0xff]
  %v2216 = vld [vmem:[%s1 + $0x328] sm:$0xff]
  %v2217 = vld [vmem:[%s1 + $0x330] sm:$0xff]
  %v2218 = vld [vmem:[%s1 + $0x338] sm:$0xff]
  %v2219 = vld [vmem:[%s1 + $0x340] sm:$0xff]
  %v2220 = vld [vmem:[%s1 + $0x348] sm:$0xff]
  %v2221 = vld [vmem:[%s1 + $0x350] sm:$0xff]
  %v2222 = vld [vmem:[%s1 + $0x358] sm:$0xff]
  %v2223 = vld [vmem:[%s1 + $0x360] sm:$0xff]
  %v2224 = vld [vmem:[%s1 + $0x368] sm:$0xff]
  %v2225 = vld [vmem:[%s1 + $0x370] sm:$0xff]
  %v2226 = vld [vmem:[%s1 + $0x378] sm:$0xff]
  %v2227 = vld [vmem:[%s1 + $0x380] sm:$0xff]
  %v2228 = vld [vmem:[%s1 + $0x388] sm:$0xff]
  %v2229 = vld [vmem:[%s1 + $0x390] sm:$0xff]
  %v2230 = vld [vmem:[%s1 + $0x398] sm:$0xff]
  %v2232 = vsel %vm249, %v2215, 0
  %v2235 = vsel %vm249, %v2216, 0
  %v2238 = vsel %vm249, %v2217, 0
  %v2241 = vsel %vm249, %v2218, 0
  %v2244 = vsel %vm249, %v2219, 0
  %v2247 = vsel %vm249, %v2220, 0
  %v2250 = vsel %vm249, %v2221, 0
  %v2253 = vsel %vm249, %v2222, 0
  %v2256 = vsel %vm249, %v2223, 0
  %v2259 = vsel %vm249, %v2224, 0
  %v2262 = vsel %vm249, %v2225, 0
  %v2265 = vsel %vm249, %v2226, 0
  %v2268 = vsel %vm249, %v2227, 0
  %v2271 = vsel %vm249, %v2228, 0
  %v2274 = vsel %vm249, %v2229, 0
  %v2277 = vsel %vm249, %v2230, 0
  %2279 = vmatprep.subr.mxu0 0.0
  %2280 = vmatpush1.msra.mxu0 %v777
  %2281 = vmatprep.subr.mxu0 0.0
  %2282 = vmatpush1.msra.mxu0 %v778
  %2283 = vmatprep.subr.mxu0 0.0
  %2284 = vmatpush1.msra.mxu0 %v783
  %2285 = vmatprep.subr.mxu0 0.0
  %2286 = vmatpush1.msra.mxu0 %v784
  %2287 = vmatprep.subr.mxu0 0.0
  %2288 = vmatpush1.msra.mxu0 %v789
  %2289 = vmatprep.subr.mxu0 0.0
  %2290 = vmatpush1.msra.mxu0 %v790
  %2291 = vmatprep.subr.mxu0 0.0
  %2292 = vmatpush1.msra.mxu0 0.0
  %2293 = vmatprep.subr.mxu0 0.0
  %2294 = vmatpush1.msra.mxu0 0.0
  %2295 = vmatprep.subr.mxu0 0.0
  %2296 = vmatpush1.msra.mxu0 0.0
  %2297 = vmatprep.subr.mxu0 0.0
  %2298 = vmatpush1.msra.mxu0 0.0
  %2299 = vmatprep.subr.mxu0 0.0
  %2300 = vmatpush1.msra.mxu0 0.0
  %2301 = vmatprep.subr.mxu0 0.0
  %2302 = vmatpush1.msra.mxu0 0.0
  %2303 = vmatprep.subr.mxu0 0.0
  %2304 = vmatpush1.msra.mxu0 0.0
  %2305 = vmatprep.subr.mxu0 0.0
  %2306 = vmatpush1.msra.mxu0 0.0
  %2307 = vmatprep.subr.mxu0 0.0
  %2308 = vmatpush1.msra.mxu0 0.0
  %2309 = vmatprep.subr.mxu0 0.0
  %2310 = vmatpush1.msra.mxu0 0.0
  %2311 = vmatprep.subr.mxu0 0.0
  %2312 = vmatpush1.msra.mxu0 0.0
  %2313 = vmatprep.subr.mxu0 0.0
  %2314 = vmatpush1.msra.mxu0 0.0
  %2315 = vmatprep.subr.mxu0 0.0
  %2316 = vmatpush1.msra.mxu0 0.0
  %2317 = vmatprep.subr.mxu0 0.0
  %2318 = vmatpush1.msra.mxu0 0.0
  %2319 = vmatprep.subr.mxu0 0.0
  %2320 = vmatpush1.msra.mxu0 0.0
  %2321 = vmatprep.subr.mxu0 0.0
  %2322 = vmatpush1.msra.mxu0 0.0
  %2323 = vmatprep.subr.mxu0 0.0
  %2324 = vmatpush1.msra.mxu0 0.0
  %2325 = vmatprep.subr.mxu0 0.0
  %2326 = vmatpush1.msra.mxu0 0.0
  %2327 = vmatprep.subr.mxu0 0.0
  %2328 = vmatpush1.msra.mxu0 0.0
  %2329 = vmatprep.subr.mxu0 0.0
  %2330 = vmatpush1.msra.mxu0 0.0
  %2331 = vmatprep.subr.mxu0 0.0
  %2332 = vmatpush1.msra.mxu0 0.0
  %2333 = vmatprep.subr.mxu0 0.0
  %2334 = vmatpush1.msra.mxu0 0.0
  %2335 = vmatprep.subr.mxu0 0.0
  %2336 = vmatpush1.msra.mxu0 0.0
  %2337 = vmatprep.subr.mxu0 0.0
  %2338 = vmatpush1.msra.mxu0 0.0
  %2339 = vmatprep.subr.mxu0 0.0
  %2340 = vmatpush1.msra.mxu0 0.0
  %2341 = vmatprep.subr.mxu0 0.0
  %2342 = vmatpush1.msra.mxu0 0.0
  %2343 = vmatprep.mubr.f32.mxu0 0.0
  %2344 = vmatmul.mubr.f32.gmra.mrb[0].mxu0 %v2232
  %v2345 = vpop.f32.mrb[0].mxu0
  %v2346 = vadd.f32 0.0, %v2345
  %v2347 = vpop.f32.mrb[0].mxu0
  %2348 = vmatprep.mubr.f32.mxu0 0.0
  %2349 = vmatmul.mubr.f32.gmra.mrb[0].mxu0 %v2235
  %v2350 = vpop.f32.mrb[0].mxu0
  %v2351 = vadd.f32 0.0, %v2350
  %v2352 = vpop.f32.mrb[0].mxu0
  %2353 = vmatprep.mubr.f32.mxu0 0.0
  %2354 = vmatmul.mubr.f32.gmra.mrb[0].mxu0 %v2238
  %v2355 = vpop.f32.mrb[0].mxu0
  %v2356 = vadd.f32 0.0, %v2355
  %v2357 = vpop.f32.mrb[0].mxu0
  %2358 = vmatprep.mubr.f32.mxu0 0.0
  %2359 = vmatmul.mubr.f32.gmra.mrb[0].mxu0 %v2241
  %v2360 = vpop.f32.mrb[0].mxu0
  %v2361 = vadd.f32 0.0, %v2360
  %v2362 = vpop.f32.mrb[0].mxu0
  %2363 = vmatprep.mubr.f32.mxu0 0.0
  %2364 = vmatmul.mubr.f32.gmra.mrb[0].mxu0 %v2244
  %v2365 = vpop.f32.mrb[0].mxu0
  %v2366 = vadd.f32 0.0, %v2365
  %v2367 = vpop.f32.mrb[0].mxu0
  %2368 = vmatprep.mubr.f32.mxu0 0.0
  %2369 = vmatmul.mubr.f32.gmra.mrb[0].mxu0 %v2247
  %v2370 = vpop.f32.mrb[0].mxu0
  %v2371 = vadd.f32 0.0, %v2370
  %v2372 = vpop.f32.mrb[0].mxu0
  %2373 = vmatprep.mubr.f32.mxu0 0.0
  %2374 = vmatmul.mubr.f32.gmra.mrb[0].mxu0 %v2250
  %v2375 = vpop.f32.mrb[0].mxu0
  %v2376 = vadd.f32 0.0, %v2375
  %v2377 = vpop.f32.mrb[0].mxu0
  %2378 = vmatprep.mubr.f32.mxu0 0.0
  %2379 = vmatmul.mubr.f32.gmra.mrb[0].mxu0 %v2253
  %v2380 = vpop.f32.mrb[0].mxu0
  %v2381 = vadd.f32 0.0, %v2380
  %v2382 = vpop.f32.mrb[0].mxu0
  %2383 = vmatprep.mubr.f32.mxu0 0.0
  %2384 = vmatmul.mubr.f32.gmra.mrb[0].mxu0 %v2256
  %v2385 = vpop.f32.mrb[0].mxu0
  %v2386 = vadd.f32 0.0, %v2385
  %v2387 = vpop.f32.mrb[0].mxu0
  %2388 = vmatprep.mubr.f32.mxu0 0.0
  %2389 = vmatmul.mubr.f32.gmra.mrb[0].mxu0 %v2259
  %v2390 = vpop.f32.mrb[0].mxu0
  %v2391 = vadd.f32 0.0, %v2390
  %v2392 = vpop.f32.mrb[0].mxu0
  %2393 = vmatprep.mubr.f32.mxu0 0.0
  %2394 = vmatmul.mubr.f32.gmra.mrb[0].mxu0 %v2262
  %v2395 = vpop.f32.mrb[0].mxu0
  %v2396 = vadd.f32 0.0, %v2395
  %v2397 = vpop.f32.mrb[0].mxu0
  %2398 = vmatprep.mubr.f32.mxu0 0.0
  %2399 = vmatmul.mubr.f32.gmra.mrb[0].mxu0 %v2265
  %v2400 = vpop.f32.mrb[0].mxu0
  %v2401 = vadd.f32 0.0, %v2400
  %v2402 = vpop.f32.mrb[0].mxu0
  %2403 = vmatprep.mubr.f32.mxu0 0.0
  %2404 = vmatmul.mubr.f32.gmra.mrb[0].mxu0 %v2268
  %v2405 = vpop.f32.mrb[0].mxu0
  %v2406 = vadd.f32 0.0, %v2405
  %v2407 = vpop.f32.mrb[0].mxu0
  %2408 = vmatprep.mubr.f32.mxu0 0.0
  %2409 = vmatmul.mubr.f32.gmra.mrb[0].mxu0 %v2271
  %v2410 = vpop.f32.mrb[0].mxu0
  %v2411 = vadd.f32 0.0, %v2410
  %v2412 = vpop.f32.mrb[0].mxu0
  %2413 = vmatprep.mubr.f32.mxu0 0.0
  %2414 = vmatmul.mubr.f32.gmra.mrb[0].mxu0 %v2274
  %v2415 = vpop.f32.mrb[0].mxu0
  %v2416 = vadd.f32 0.0, %v2415
  %v2417 = vpop.f32.mrb[0].mxu0
  %2418 = vmatprep.mubr.f32.mxu0 0.0
  %2419 = vmatmul.mubr.f32.gmra.mrb[0].mxu0 %v2277
  %v2420 = vpop.f32.mrb[0].mxu0
  %v2421 = vadd.f32 0.0, %v2420
  %v2422 = vpop.f32.mrb[0].mxu0
  %2423 = vdwg.mxu0
  %v2424 = vld [vmem:[%s4] sm:$0xff]
  %v2425 = vld [vmem:[%s4 + $0x8] sm:$0xff]
  %2426 = vxpose.xlu0.b32.start [1/16] %v2177, 128
  %2427 = vxpose.xlu0.b32.cont [2/16] %v2182, 128
  %2428 = vxpose.xlu0.b32.cont [3/16] 0.0, 128
  %2429 = vxpose.xlu0.b32.cont [4/16] 0.0, 128
  %2430 = vxpose.xlu0.b32.cont [5/16] 0.0, 128
  %2431 = vxpose.xlu0.b32.cont [6/16] 0.0, 128
  %2432 = vxpose.xlu0.b32.cont [7/16] 0.0, 128
  %2433 = vxpose.xlu0.b32.cont [8/16] 0.0, 128
  %2434 = vxpose.xlu0.b32.cont [9/16] 0.0, 128
  %2435 = vxpose.xlu0.b32.cont [10/16] 0.0, 128
  %2436 = vxpose.xlu0.b32.cont [11/16] 0.0, 128
  %2437 = vxpose.xlu0.b32.cont [12/16] 0.0, 128
  %2438 = vxpose.xlu0.b32.cont [13/16] 0.0, 128
  %2439 = vxpose.xlu0.b32.cont [14/16] 0.0, 128
  %2440 = vxpose.xlu0.b32.cont [15/16] 0.0, 128
  %2441 = vxpose.xlu0.b32.end [16/16] 0.0, 128
  %v2442 = vpop.trf.xlu0
  %v2443 = vpop.trf.xlu0
  %v2444 = vpop.trf.xlu0
  %v2445 = vpop.trf.xlu0
  %v2446 = vpop.trf.xlu0
  %v2447 = vpop.trf.xlu0
  %v2448 = vpop.trf.xlu0
  %v2449 = vpop.trf.xlu0
  %v2450 = vpop.trf.xlu0
  %v2451 = vpop.trf.xlu0
  %v2452 = vpop.trf.xlu0
  %v2453 = vpop.trf.xlu0
  %v2454 = vpop.trf.xlu0
  %v2455 = vpop.trf.xlu0
  %v2456 = vpop.trf.xlu0
  %v2457 = vpop.trf.xlu0
  %vm2458 = vcmask 130048
  %v2460 = vsel %vm2458, %v2442, 0
  %v2463 = vsel %vm2458, %v2443, 0
  %2465 = vmatprep.subr.mxu0 0.0
  %2466 = vmatpush1.msra.mxu0 %v2346
  %2467 = vmatprep.subr.mxu0 0.0
  %2468 = vmatpush1.msra.mxu0 %v2351
  %2469 = vmatprep.subr.mxu0 0.0
  %2470 = vmatpush1.msra.mxu0 0.0
  %2471 = vmatprep.subr.mxu0 0.0
  %2472 = vmatpush1.msra.mxu0 0.0
  %2473 = vmatprep.subr.mxu0 0.0
  %2474 = vmatpush1.msra.mxu0 0.0
  %2475 = vmatprep.subr.mxu0 0.0
  %2476 = vmatpush1.msra.mxu0 0.0
  %2477 = vmatprep.subr.mxu0 0.0
  %2478 = vmatpush1.msra.mxu0 0.0
  %2479 = vmatprep.subr.mxu0 0.0
  %2480 = vmatpush1.msra.mxu0 0.0
  %2481 = vmatprep.subr.mxu0 0.0
  %2482 = vmatpush1.msra.mxu0 0.0
  %2483 = vmatprep.subr.mxu0 0.0
  %2484 = vmatpush1.msra.mxu0 0.0
  %2485 = vmatprep.subr.mxu0 0.0
  %2486 = vmatpush1.msra.mxu0 0.0
  %2487 = vmatprep.subr.mxu0 0.0
  %2488 = vmatpush1.msra.mxu0 0.0
  %2489 = vmatprep.subr.mxu0 0.0
  %2490 = vmatpush1.msra.mxu0 0.0
  %2491 = vmatprep.subr.mxu0 0.0
  %2492 = vmatpush1.msra.mxu0 0.0
  %2493 = vmatprep.subr.mxu0 0.0
  %2494 = vmatpush1.msra.mxu0 0.0
  %2495 = vmatprep.subr.mxu0 0.0
  %2496 = vmatpush1.msra.mxu0 0.0
  %2497 = vmatprep.subr.mxu0 0.0
  %2498 = vmatpush1.msra.mxu0 0.0
  %2499 = vmatprep.subr.mxu0 0.0
  %2500 = vmatpush1.msra.mxu0 0.0
  %2501 = vmatprep.subr.mxu0 0.0
  %2502 = vmatpush1.msra.mxu0 0.0
  %2503 = vmatprep.subr.mxu0 0.0
  %2504 = vmatpush1.msra.mxu0 0.0
  %2505 = vmatprep.subr.mxu0 0.0
  %2506 = vmatpush1.msra.mxu0 0.0
  %2507 = vmatprep.subr.mxu0 0.0
  %2508 = vmatpush1.msra.mxu0 0.0
  %2509 = vmatprep.subr.mxu0 0.0
  %2510 = vmatpush1.msra.mxu0 0.0
  %2511 = vmatprep.subr.mxu0 0.0
  %2512 = vmatpush1.msra.mxu0 0.0
  %2513 = vmatprep.subr.mxu0 0.0
  %2514 = vmatpush1.msra.mxu0 0.0
  %2515 = vmatprep.subr.mxu0 0.0
  %2516 = vmatpush1.msra.mxu0 0.0
  %2517 = vmatprep.subr.mxu0 0.0
  %2518 = vmatpush1.msra.mxu0 0.0
  %2519 = vmatprep.subr.mxu0 0.0
  %2520 = vmatpush1.msra.mxu0 0.0
  %2521 = vmatprep.subr.mxu0 0.0
  %2522 = vmatpush1.msra.mxu0 0.0
  %2523 = vmatprep.subr.mxu0 0.0
  %2524 = vmatpush1.msra.mxu0 0.0
  %2525 = vmatprep.subr.mxu0 0.0
  %2526 = vmatpush1.msra.mxu0 0.0
  %2527 = vmatprep.subr.mxu0 0.0
  %2528 = vmatpush1.msra.mxu0 0.0
  %2529 = vmatprep.mubr.f32.mxu0 0.0
  %2530 = vmatmul.mubr.f32.gmra.mrb[0].mxu0 %v2460
  %v2531 = vpop.f32.mrb[0].mxu0
  %v2532 = vadd.f32 %v2424, %v2531
  %v2533 = vpop.f32.mrb[0].mxu0
  %2534 = vmatprep.mubr.f32.mxu0 0.0
  %2535 = vmatmul.mubr.f32.gmra.mrb[0].mxu0 %v2463
  %v2536 = vpop.f32.mrb[0].mxu0
  %v2537 = vadd.f32 %v2425, %v2536
  %v2538 = vpop.f32.mrb[0].mxu0
  %2539 = vdwg.mxu0
  %v2540 = vsel %vm795, %v2532, -inf
  %2541 = vmax.xlane.f32.xlu0 %v2540
  %v2542 = vpop.xlane.xlu0 %2541
  %v2543 = vsel %vm795, %v2537, -inf
  %2544 = vmax.xlane.f32.xlu0 %v2543
  %v2545 = vpop.xlane.xlu0 %2544
  %v2546 = vsub.f32 %v2532, %v2542
  %v2547 = vsub.f32 %v2537, %v2545
  %v2548 = vmul.f32 %v2546, 1.442695
  %v2549 = vpow.pop %v2548
  %v2550 = vmul.f32 %v2547, 1.442695
  %v2551 = vpow.pop %v2550
  %v2552 = vsel %vm795, %v2549, 0.0
  %2553 = vadd.xlane.f32.xlu0 %v2552
  %v2554 = vpop.xlane.xlu0 %2553
  %v2555 = vsel %vm795, %v2551, 0.0
  %2556 = vadd.xlane.f32.xlu0 %v2555
  %v2557 = vpop.xlane.xlu0 %2556
  %v2558 = vrcp.pop %v2554
  %v2559 = vrcp.pop %v2557
  %v2560 = vmul.f32 %v2549, %v2558
  %v2561 = vmul.f32 %v2551, %v2559
  %v2563 = vsel %vm795, %v2386, 0
  %v2566 = vsel %vm795, %v2391, 0
  %v2569 = vsel %vm795, %v2560, 0
  %v2572 = vsel %vm795, %v2561, 0
  %2574 = vmatprep.subr.mxu0 0.0
  %2575 = vmatpush1.xpose.msra.mxu0 %v2569
  %2576 = vmatprep.subr.mxu0 0.0
  %2577 = vmatpush1.xpose.msra.mxu0 %v2572
  %2578 = vmatprep.subr.mxu0 0.0
  %2579 = vmatpush1.xpose.msra.mxu0 0.0
  %2580 = vmatprep.subr.mxu0 0.0
  %2581 = vmatpush1.xpose.msra.mxu0 0.0
  %2582 = vmatprep.subr.mxu0 0.0
  %2583 = vmatpush1.xpose.msra.mxu0 0.0
  %2584 = vmatprep.subr.mxu0 0.0
  %2585 = vmatpush1.xpose.msra.mxu0 0.0
  %2586 = vmatprep.subr.mxu0 0.0
  %2587 = vmatpush1.xpose.msra.mxu0 0.0
  %2588 = vmatprep.subr.mxu0 0.0
  %2589 = vmatpush1.xpose.msra.mxu0 0.0
  %2590 = vmatprep.subr.mxu0 0.0
  %2591 = vmatpush1.xpose.msra.mxu0 0.0
  %2592 = vmatprep.subr.mxu0 0.0
  %2593 = vmatpush1.xpose.msra.mxu0 0.0
  %2594 = vmatprep.subr.mxu0 0.0
  %2595 = vmatpush1.xpose.msra.mxu0 0.0
  %2596 = vmatprep.subr.mxu0 0.0
  %2597 = vmatpush1.xpose.msra.mxu0 0.0
  %2598 = vmatprep.subr.mxu0 0.0
  %2599 = vmatpush1.xpose.msra.mxu0 0.0
  %2600 = vmatprep.subr.mxu0 0.0
  %2601 = vmatpush1.xpose.msra.mxu0 0.0
  %2602 = vmatprep.subr.mxu0 0.0
  %2603 = vmatpush1.xpose.msra.mxu0 0.0
  %2604 = vmatprep.subr.mxu0 0.0
  %2605 = vmatpush1.xpose.msra.mxu0 0.0
  %2606 = vmatprep.subr.mxu0 0.0
  %2607 = vmatpush1.xpose.msra.mxu0 0.0
  %2608 = vmatprep.subr.mxu0 0.0
  %2609 = vmatpush1.xpose.msra.mxu0 0.0
  %2610 = vmatprep.subr.mxu0 0.0
  %2611 = vmatpush1.xpose.msra.mxu0 0.0
  %2612 = vmatprep.subr.mxu0 0.0
  %2613 = vmatpush1.xpose.msra.mxu0 0.0
  %2614 = vmatprep.subr.mxu0 0.0
  %2615 = vmatpush1.xpose.msra.mxu0 0.0
  %2616 = vmatprep.subr.mxu0 0.0
  %2617 = vmatpush1.xpose.msra.mxu0 0.0
  %2618 = vmatprep.subr.mxu0 0.0
  %2619 = vmatpush1.xpose.msra.mxu0 0.0
  %2620 = vmatprep.subr.mxu0 0.0
  %2621 = vmatpush1.xpose.msra.mxu0 0.0
  %2622 = vmatprep.subr.mxu0 0.0
  %2623 = vmatpush1.xpose.msra.mxu0 0.0
  %2624 = vmatprep.subr.mxu0 0.0
  %2625 = vmatpush1.xpose.msra.mxu0 0.0
  %2626 = vmatprep.subr.mxu0 0.0
  %2627 = vmatpush1.xpose.msra.mxu0 0.0
  %2628 = vmatprep.subr.mxu0 0.0
  %2629 = vmatpush1.xpose.msra.mxu0 0.0
  %2630 = vmatprep.subr.mxu0 0.0
  %2631 = vmatpush1.xpose.msra.mxu0 0.0
  %2632 = vmatprep.subr.mxu0 0.0
  %2633 = vmatpush1.xpose.msra.mxu0 0.0
  %2634 = vmatprep.subr.mxu0 0.0
  %2635 = vmatpush1.xpose.msra.mxu0 0.0
  %2636 = vmatprep.subr.mxu0 0.0
  %2637 = vmatpush1.xpose.msra.mxu0 0.0
  %2638 = vmatprep.mubr.f32.mxu0 0.0
  %2639 = vmatmul.mubr.f32.gmra.mrb[0].mxu0 %v2563
  %v2640 = vpop.f32.mrb[0].mxu0
  %v2641 = vadd.f32 0.0, %v2640
  %v2642 = vpop.f32.mrb[0].mxu0
  %2643 = vmatprep.mubr.f32.mxu0 0.0
  %2644 = vmatmul.mubr.f32.gmra.mrb[0].mxu0 %v2566
  %v2645 = vpop.f32.mrb[0].mxu0
  %v2646 = vadd.f32 0.0, %v2645
  %v2647 = vpop.f32.mrb[0].mxu0
  %2648 = vdwg.mxu0
  %2649 = vxpose.xlu0.b32.start [1/16] %v2187, 128
  %2650 = vxpose.xlu0.b32.cont [2/16] %v2192, 128
  %2651 = vxpose.xlu0.b32.cont [3/16] 0.0, 128
  %2652 = vxpose.xlu0.b32.cont [4/16] 0.0, 128
  %2653 = vxpose.xlu0.b32.cont [5/16] 0.0, 128
  %2654 = vxpose.xlu0.b32.cont [6/16] 0.0, 128
  %2655 = vxpose.xlu0.b32.cont [7/16] 0.0, 128
  %2656 = vxpose.xlu0.b32.cont [8/16] 0.0, 128
  %2657 = vxpose.xlu0.b32.cont [9/16] 0.0, 128
  %2658 = vxpose.xlu0.b32.cont [10/16] 0.0, 128
  %2659 = vxpose.xlu0.b32.cont [11/16] 0.0, 128
  %2660 = vxpose.xlu0.b32.cont [12/16] 0.0, 128
  %2661 = vxpose.xlu0.b32.cont [13/16] 0.0, 128
  %2662 = vxpose.xlu0.b32.cont [14/16] 0.0, 128
  %2663 = vxpose.xlu0.b32.cont [15/16] 0.0, 128
  %2664 = vxpose.xlu0.b32.end [16/16] 0.0, 128
  %v2665 = vpop.trf.xlu0
  %v2666 = vpop.trf.xlu0
  %v2667 = vpop.trf.xlu0
  %v2668 = vpop.trf.xlu0
  %v2669 = vpop.trf.xlu0
  %v2670 = vpop.trf.xlu0
  %v2671 = vpop.trf.xlu0
  %v2672 = vpop.trf.xlu0
  %v2673 = vpop.trf.xlu0
  %v2674 = vpop.trf.xlu0
  %v2675 = vpop.trf.xlu0
  %v2676 = vpop.trf.xlu0
  %v2677 = vpop.trf.xlu0
  %v2678 = vpop.trf.xlu0
  %v2679 = vpop.trf.xlu0
  %v2680 = vpop.trf.xlu0
  %v2682 = vsel %vm2458, %v2665, 0
  %v2685 = vsel %vm2458, %v2666, 0
  %2687 = vmatprep.subr.mxu0 0.0
  %2688 = vmatpush1.msra.mxu0 %v2356
  %2689 = vmatprep.subr.mxu0 0.0
  %2690 = vmatpush1.msra.mxu0 %v2361
  %2691 = vmatprep.subr.mxu0 0.0
  %2692 = vmatpush1.msra.mxu0 0.0
  %2693 = vmatprep.subr.mxu0 0.0
  %2694 = vmatpush1.msra.mxu0 0.0
  %2695 = vmatprep.subr.mxu0 0.0
  %2696 = vmatpush1.msra.mxu0 0.0
  %2697 = vmatprep.subr.mxu0 0.0
  %2698 = vmatpush1.msra.mxu0 0.0
  %2699 = vmatprep.subr.mxu0 0.0
  %2700 = vmatpush1.msra.mxu0 0.0
  %2701 = vmatprep.subr.mxu0 0.0
  %2702 = vmatpush1.msra.mxu0 0.0
  %2703 = vmatprep.subr.mxu0 0.0
  %2704 = vmatpush1.msra.mxu0 0.0
  %2705 = vmatprep.subr.mxu0 0.0
  %2706 = vmatpush1.msra.mxu0 0.0
  %2707 = vmatprep.subr.mxu0 0.0
  %2708 = vmatpush1.msra.mxu0 0.0
  %2709 = vmatprep.subr.mxu0 0.0
  %2710 = vmatpush1.msra.mxu0 0.0
  %2711 = vmatprep.subr.mxu0 0.0
  %2712 = vmatpush1.msra.mxu0 0.0
  %2713 = vmatprep.subr.mxu0 0.0
  %2714 = vmatpush1.msra.mxu0 0.0
  %2715 = vmatprep.subr.mxu0 0.0
  %2716 = vmatpush1.msra.mxu0 0.0
  %2717 = vmatprep.subr.mxu0 0.0
  %2718 = vmatpush1.msra.mxu0 0.0
  %2719 = vmatprep.subr.mxu0 0.0
  %2720 = vmatpush1.msra.mxu0 0.0
  %2721 = vmatprep.subr.mxu0 0.0
  %2722 = vmatpush1.msra.mxu0 0.0
  %2723 = vmatprep.subr.mxu0 0.0
  %2724 = vmatpush1.msra.mxu0 0.0
  %2725 = vmatprep.subr.mxu0 0.0
  %2726 = vmatpush1.msra.mxu0 0.0
  %2727 = vmatprep.subr.mxu0 0.0
  %2728 = vmatpush1.msra.mxu0 0.0
  %2729 = vmatprep.subr.mxu0 0.0
  %2730 = vmatpush1.msra.mxu0 0.0
  %2731 = vmatprep.subr.mxu0 0.0
  %2732 = vmatpush1.msra.mxu0 0.0
  %2733 = vmatprep.subr.mxu0 0.0
  %2734 = vmatpush1.msra.mxu0 0.0
  %2735 = vmatprep.subr.mxu0 0.0
  %2736 = vmatpush1.msra.mxu0 0.0
  %2737 = vmatprep.subr.mxu0 0.0
  %2738 = vmatpush1.msra.mxu0 0.0
  %2739 = vmatprep.subr.mxu0 0.0
  %2740 = vmatpush1.msra.mxu0 0.0
  %2741 = vmatprep.subr.mxu0 0.0
  %2742 = vmatpush1.msra.mxu0 0.0
  %2743 = vmatprep.subr.mxu0 0.0
  %2744 = vmatpush1.msra.mxu0 0.0
  %2745 = vmatprep.subr.mxu0 0.0
  %2746 = vmatpush1.msra.mxu0 0.0
  %2747 = vmatprep.subr.mxu0 0.0
  %2748 = vmatpush1.msra.mxu0 0.0
  %2749 = vmatprep.subr.mxu0 0.0
  %2750 = vmatpush1.msra.mxu0 0.0
  %2751 = vmatprep.mubr.f32.mxu0 0.0
  %2752 = vmatmul.mubr.f32.gmra.mrb[0].mxu0 %v2682
  %v2753 = vpop.f32.mrb[0].mxu0
  %v2754 = vadd.f32 %v2424, %v2753
  %v2755 = vpop.f32.mrb[0].mxu0
  %2756 = vmatprep.mubr.f32.mxu0 0.0
  %2757 = vmatmul.mubr.f32.gmra.mrb[0].mxu0 %v2685
  %v2758 = vpop.f32.mrb[0].mxu0
  %v2759 = vadd.f32 %v2425, %v2758
  %v2760 = vpop.f32.mrb[0].mxu0
  %2761 = vdwg.mxu0
  %v2762 = vsel %vm795, %v2754, -inf
  %2763 = vmax.xlane.f32.xlu0 %v2762
  %v2764 = vpop.xlane.xlu0 %2763
  %v2765 = vsel %vm795, %v2759, -inf
  %2766 = vmax.xlane.f32.xlu0 %v2765
  %v2767 = vpop.xlane.xlu0 %2766
  %v2768 = vsub.f32 %v2754, %v2764
  %v2769 = vsub.f32 %v2759, %v2767
  %v2770 = vmul.f32 %v2768, 1.442695
  %v2771 = vpow.pop %v2770
  %v2772 = vmul.f32 %v2769, 1.442695
  %v2773 = vpow.pop %v2772
  %v2774 = vsel %vm795, %v2771, 0.0
  %2775 = vadd.xlane.f32.xlu0 %v2774
  %v2776 = vpop.xlane.xlu0 %2775
  %v2777 = vsel %vm795, %v2773, 0.0
  %2778 = vadd.xlane.f32.xlu0 %v2777
  %v2779 = vpop.xlane.xlu0 %2778
  %v2780 = vrcp.pop %v2776
  %v2781 = vrcp.pop %v2779
  %v2782 = vmul.f32 %v2771, %v2780
  %v2783 = vmul.f32 %v2773, %v2781
  %v2785 = vsel %vm795, %v2396, 0
  %v2788 = vsel %vm795, %v2401, 0
  %v2791 = vsel %vm795, %v2782, 0
  %v2794 = vsel %vm795, %v2783, 0
  %2796 = vmatprep.subr.mxu0 0.0
  %2797 = vmatpush1.xpose.msra.mxu0 %v2791
  %2798 = vmatprep.subr.mxu0 0.0
  %2799 = vmatpush1.xpose.msra.mxu0 %v2794
  %2800 = vmatprep.subr.mxu0 0.0
  %2801 = vmatpush1.xpose.msra.mxu0 0.0
  %2802 = vmatprep.subr.mxu0 0.0
  %2803 = vmatpush1.xpose.msra.mxu0 0.0
  %2804 = vmatprep.subr.mxu0 0.0
  %2805 = vmatpush1.xpose.msra.mxu0 0.0
  %2806 = vmatprep.subr.mxu0 0.0
  %2807 = vmatpush1.xpose.msra.mxu0 0.0
  %2808 = vmatprep.subr.mxu0 0.0
  %2809 = vmatpush1.xpose.msra.mxu0 0.0
  %2810 = vmatprep.subr.mxu0 0.0
  %2811 = vmatpush1.xpose.msra.mxu0 0.0
  %2812 = vmatprep.subr.mxu0 0.0
  %2813 = vmatpush1.xpose.msra.mxu0 0.0
  %2814 = vmatprep.subr.mxu0 0.0
  %2815 = vmatpush1.xpose.msra.mxu0 0.0
  %2816 = vmatprep.subr.mxu0 0.0
  %2817 = vmatpush1.xpose.msra.mxu0 0.0
  %2818 = vmatprep.subr.mxu0 0.0
  %2819 = vmatpush1.xpose.msra.mxu0 0.0
  %2820 = vmatprep.subr.mxu0 0.0
  %2821 = vmatpush1.xpose.msra.mxu0 0.0
  %2822 = vmatprep.subr.mxu0 0.0
  %2823 = vmatpush1.xpose.msra.mxu0 0.0
  %2824 = vmatprep.subr.mxu0 0.0
  %2825 = vmatpush1.xpose.msra.mxu0 0.0
  %2826 = vmatprep.subr.mxu0 0.0
  %2827 = vmatpush1.xpose.msra.mxu0 0.0
  %2828 = vmatprep.subr.mxu0 0.0
  %2829 = vmatpush1.xpose.msra.mxu0 0.0
  %2830 = vmatprep.subr.mxu0 0.0
  %2831 = vmatpush1.xpose.msra.mxu0 0.0
  %2832 = vmatprep.subr.mxu0 0.0
  %2833 = vmatpush1.xpose.msra.mxu0 0.0
  %2834 = vmatprep.subr.mxu0 0.0
  %2835 = vmatpush1.xpose.msra.mxu0 0.0
  %2836 = vmatprep.subr.mxu0 0.0
  %2837 = vmatpush1.xpose.msra.mxu0 0.0
  %2838 = vmatprep.subr.mxu0 0.0
  %2839 = vmatpush1.xpose.msra.mxu0 0.0
  %2840 = vmatprep.subr.mxu0 0.0
  %2841 = vmatpush1.xpose.msra.mxu0 0.0
  %2842 = vmatprep.subr.mxu0 0.0
  %2843 = vmatpush1.xpose.msra.mxu0 0.0
  %2844 = vmatprep.subr.mxu0 0.0
  %2845 = vmatpush1.xpose.msra.mxu0 0.0
  %2846 = vmatprep.subr.mxu0 0.0
  %2847 = vmatpush1.xpose.msra.mxu0 0.0
  %2848 = vmatprep.subr.mxu0 0.0
  %2849 = vmatpush1.xpose.msra.mxu0 0.0
  %2850 = vmatprep.subr.mxu0 0.0
  %2851 = vmatpush1.xpose.msra.mxu0 0.0
  %2852 = vmatprep.subr.mxu0 0.0
  %2853 = vmatpush1.xpose.msra.mxu0 0.0
  %2854 = vmatprep.subr.mxu0 0.0
  %2855 = vmatpush1.xpose.msra.mxu0 0.0
  %2856 = vmatprep.subr.mxu0 0.0
  %2857 = vmatpush1.xpose.msra.mxu0 0.0
  %2858 = vmatprep.subr.mxu0 0.0
  %2859 = vmatpush1.xpose.msra.mxu0 0.0
  %2860 = vmatprep.mubr.f32.mxu0 0.0
  %2861 = vmatmul.mubr.f32.gmra.mrb[0].mxu0 %v2785
  %v2862 = vpop.f32.mrb[0].mxu0
  %v2863 = vadd.f32 0.0, %v2862
  %v2864 = vpop.f32.mrb[0].mxu0
  %2865 = vmatprep.mubr.f32.mxu0 0.0
  %2866 = vmatmul.mubr.f32.gmra.mrb[0].mxu0 %v2788
  %v2867 = vpop.f32.mrb[0].mxu0
  %v2868 = vadd.f32 0.0, %v2867
  %v2869 = vpop.f32.mrb[0].mxu0
  %2870 = vdwg.mxu0
  %2871 = vxpose.xlu0.b32.start [1/16] %v2197, 128
  %2872 = vxpose.xlu0.b32.cont [2/16] %v2202, 128
  %2873 = vxpose.xlu0.b32.cont [3/16] 0.0, 128
  %2874 = vxpose.xlu0.b32.cont [4/16] 0.0, 128
  %2875 = vxpose.xlu0.b32.cont [5/16] 0.0, 128
  %2876 = vxpose.xlu0.b32.cont [6/16] 0.0, 128
  %2877 = vxpose.xlu0.b32.cont [7/16] 0.0, 128
  %2878 = vxpose.xlu0.b32.cont [8/16] 0.0, 128
  %2879 = vxpose.xlu0.b32.cont [9/16] 0.0, 128
  %2880 = vxpose.xlu0.b32.cont [10/16] 0.0, 128
  %2881 = vxpose.xlu0.b32.cont [11/16] 0.0, 128
  %2882 = vxpose.xlu0.b32.cont [12/16] 0.0, 128
  %2883 = vxpose.xlu0.b32.cont [13/16] 0.0, 128
  %2884 = vxpose.xlu0.b32.cont [14/16] 0.0, 128
  %2885 = vxpose.xlu0.b32.cont [15/16] 0.0, 128
  %2886 = vxpose.xlu0.b32.end [16/16] 0.0, 128
  %v2887 = vpop.trf.xlu0
  %v2888 = vpop.trf.xlu0
  %v2889 = vpop.trf.xlu0
  %v2890 = vpop.trf.xlu0
  %v2891 = vpop.trf.xlu0
  %v2892 = vpop.trf.xlu0
  %v2893 = vpop.trf.xlu0
  %v2894 = vpop.trf.xlu0
  %v2895 = vpop.trf.xlu0
  %v2896 = vpop.trf.xlu0
  %v2897 = vpop.trf.xlu0
  %v2898 = vpop.trf.xlu0
  %v2899 = vpop.trf.xlu0
  %v2900 = vpop.trf.xlu0
  %v2901 = vpop.trf.xlu0
  %v2902 = vpop.trf.xlu0
  %v2904 = vsel %vm2458, %v2887, 0
  %v2907 = vsel %vm2458, %v2888, 0
  %2909 = vmatprep.subr.mxu0 0.0
  %2910 = vmatpush1.msra.mxu0 %v2366
  %2911 = vmatprep.subr.mxu0 0.0
  %2912 = vmatpush1.msra.mxu0 %v2371
  %2913 = vmatprep.subr.mxu0 0.0
  %2914 = vmatpush1.msra.mxu0 0.0
  %2915 = vmatprep.subr.mxu0 0.0
  %2916 = vmatpush1.msra.mxu0 0.0
  %2917 = vmatprep.subr.mxu0 0.0
  %2918 = vmatpush1.msra.mxu0 0.0
  %2919 = vmatprep.subr.mxu0 0.0
  %2920 = vmatpush1.msra.mxu0 0.0
  %2921 = vmatprep.subr.mxu0 0.0
  %2922 = vmatpush1.msra.mxu0 0.0
  %2923 = vmatprep.subr.mxu0 0.0
  %2924 = vmatpush1.msra.mxu0 0.0
  %2925 = vmatprep.subr.mxu0 0.0
  %2926 = vmatpush1.msra.mxu0 0.0
  %2927 = vmatprep.subr.mxu0 0.0
  %2928 = vmatpush1.msra.mxu0 0.0
  %2929 = vmatprep.subr.mxu0 0.0
  %2930 = vmatpush1.msra.mxu0 0.0
  %2931 = vmatprep.subr.mxu0 0.0
  %2932 = vmatpush1.msra.mxu0 0.0
  %2933 = vmatprep.subr.mxu0 0.0
  %2934 = vmatpush1.msra.mxu0 0.0
  %2935 = vmatprep.subr.mxu0 0.0
  %2936 = vmatpush1.msra.mxu0 0.0
  %2937 = vmatprep.subr.mxu0 0.0
  %2938 = vmatpush1.msra.mxu0 0.0
  %2939 = vmatprep.subr.mxu0 0.0
  %2940 = vmatpush1.msra.mxu0 0.0
  %2941 = vmatprep.subr.mxu0 0.0
  %2942 = vmatpush1.msra.mxu0 0.0
  %2943 = vmatprep.subr.mxu0 0.0
  %2944 = vmatpush1.msra.mxu0 0.0
  %2945 = vmatprep.subr.mxu0 0.0
  %2946 = vmatpush1.msra.mxu0 0.0
  %2947 = vmatprep.subr.mxu0 0.0
  %2948 = vmatpush1.msra.mxu0 0.0
  %2949 = vmatprep.subr.mxu0 0.0
  %2950 = vmatpush1.msra.mxu0 0.0
  %2951 = vmatprep.subr.mxu0 0.0
  %2952 = vmatpush1.msra.mxu0 0.0
  %2953 = vmatprep.subr.mxu0 0.0
  %2954 = vmatpush1.msra.mxu0 0.0
  %2955 = vmatprep.subr.mxu0 0.0
  %2956 = vmatpush1.msra.mxu0 0.0
  %2957 = vmatprep.subr.mxu0 0.0
  %2958 = vmatpush1.msra.mxu0 0.0
  %2959 = vmatprep.subr.mxu0 0.0
  %2960 = vmatpush1.msra.mxu0 0.0
  %2961 = vmatprep.subr.mxu0 0.0
  %2962 = vmatpush1.msra.mxu0 0.0
  %2963 = vmatprep.subr.mxu0 0.0
  %2964 = vmatpush1.msra.mxu0 0.0
  %2965 = vmatprep.subr.mxu0 0.0
  %2966 = vmatpush1.msra.mxu0 0.0
  %2967 = vmatprep.subr.mxu0 0.0
  %2968 = vmatpush1.msra.mxu0 0.0
  %2969 = vmatprep.subr.mxu0 0.0
  %2970 = vmatpush1.msra.mxu0 0.0
  %2971 = vmatprep.subr.mxu0 0.0
  %2972 = vmatpush1.msra.mxu0 0.0
  %2973 = vmatprep.mubr.f32.mxu0 0.0
  %2974 = vmatmul.mubr.f32.gmra.mrb[0].mxu0 %v2904
  %v2975 = vpop.f32.mrb[0].mxu0
  %v2976 = vadd.f32 %v2424, %v2975
  %v2977 = vpop.f32.mrb[0].mxu0
  %2978 = vmatprep.mubr.f32.mxu0 0.0
  %2979 = vmatmul.mubr.f32.gmra.mrb[0].mxu0 %v2907
  %v2980 = vpop.f32.mrb[0].mxu0
  %v2981 = vadd.f32 %v2425, %v2980
  %v2982 = vpop.f32.mrb[0].mxu0
  %2983 = vdwg.mxu0
  %v2984 = vsel %vm795, %v2976, -inf
  %2985 = vmax.xlane.f32.xlu0 %v2984
  %v2986 = vpop.xlane.xlu0 %2985
  %v2987 = vsel %vm795, %v2981, -inf
  %2988 = vmax.xlane.f32.xlu0 %v2987
  %v2989 = vpop.xlane.xlu0 %2988
  %v2990 = vsub.f32 %v2976, %v2986
  %v2991 = vsub.f32 %v2981, %v2989
  %v2992 = vmul.f32 %v2990, 1.442695
  %v2993 = vpow.pop %v2992
  %v2994 = vmul.f32 %v2991, 1.442695
  %v2995 = vpow.pop %v2994
  %v2996 = vsel %vm795, %v2993, 0.0
  %2997 = vadd.xlane.f32.xlu0 %v2996
  %v2998 = vpop.xlane.xlu0 %2997
  %v2999 = vsel %vm795, %v2995, 0.0
  %3000 = vadd.xlane.f32.xlu0 %v2999
  %v3001 = vpop.xlane.xlu0 %3000
  %v3002 = vrcp.pop %v2998
  %v3003 = vrcp.pop %v3001
  %v3004 = vmul.f32 %v2993, %v3002
  %v3005 = vmul.f32 %v2995, %v3003
  %v3007 = vsel %vm795, %v2406, 0
  %v3010 = vsel %vm795, %v2411, 0
  %v3013 = vsel %vm795, %v3004, 0
  %v3016 = vsel %vm795, %v3005, 0
  %3018 = vmatprep.subr.mxu0 0.0
  %3019 = vmatpush1.xpose.msra.mxu0 %v3013
  %3020 = vmatprep.subr.mxu0 0.0
  %3021 = vmatpush1.xpose.msra.mxu0 %v3016
  %3022 = vmatprep.subr.mxu0 0.0
  %3023 = vmatpush1.xpose.msra.mxu0 0.0
  %3024 = vmatprep.subr.mxu0 0.0
  %3025 = vmatpush1.xpose.msra.mxu0 0.0
  %3026 = vmatprep.subr.mxu0 0.0
  %3027 = vmatpush1.xpose.msra.mxu0 0.0
  %3028 = vmatprep.subr.mxu0 0.0
  %3029 = vmatpush1.xpose.msra.mxu0 0.0
  %3030 = vmatprep.subr.mxu0 0.0
  %3031 = vmatpush1.xpose.msra.mxu0 0.0
  %3032 = vmatprep.subr.mxu0 0.0
  %3033 = vmatpush1.xpose.msra.mxu0 0.0
  %3034 = vmatprep.subr.mxu0 0.0
  %3035 = vmatpush1.xpose.msra.mxu0 0.0
  %3036 = vmatprep.subr.mxu0 0.0
  %3037 = vmatpush1.xpose.msra.mxu0 0.0
  %3038 = vmatprep.subr.mxu0 0.0
  %3039 = vmatpush1.xpose.msra.mxu0 0.0
  %3040 = vmatprep.subr.mxu0 0.0
  %3041 = vmatpush1.xpose.msra.mxu0 0.0
  %3042 = vmatprep.subr.mxu0 0.0
  %3043 = vmatpush1.xpose.msra.mxu0 0.0
  %3044 = vmatprep.subr.mxu0 0.0
  %3045 = vmatpush1.xpose.msra.mxu0 0.0
  %3046 = vmatprep.subr.mxu0 0.0
  %3047 = vmatpush1.xpose.msra.mxu0 0.0
  %3048 = vmatprep.subr.mxu0 0.0
  %3049 = vmatpush1.xpose.msra.mxu0 0.0
  %3050 = vmatprep.subr.mxu0 0.0
  %3051 = vmatpush1.xpose.msra.mxu0 0.0
  %3052 = vmatprep.subr.mxu0 0.0
  %3053 = vmatpush1.xpose.msra.mxu0 0.0
  %3054 = vmatprep.subr.mxu0 0.0
  %3055 = vmatpush1.xpose.msra.mxu0 0.0
  %3056 = vmatprep.subr.mxu0 0.0
  %3057 = vmatpush1.xpose.msra.mxu0 0.0
  %3058 = vmatprep.subr.mxu0 0.0
  %3059 = vmatpush1.xpose.msra.mxu0 0.0
  %3060 = vmatprep.subr.mxu0 0.0
  %3061 = vmatpush1.xpose.msra.mxu0 0.0
  %3062 = vmatprep.subr.mxu0 0.0
  %3063 = vmatpush1.xpose.msra.mxu0 0.0
  %3064 = vmatprep.subr.mxu0 0.0
  %3065 = vmatpush1.xpose.msra.mxu0 0.0
  %3066 = vmatprep.subr.mxu0 0.0
  %3067 = vmatpush1.xpose.msra.mxu0 0.0
  %3068 = vmatprep.subr.mxu0 0.0
  %3069 = vmatpush1.xpose.msra.mxu0 0.0
  %3070 = vmatprep.subr.mxu0 0.0
  %3071 = vmatpush1.xpose.msra.mxu0 0.0
  %3072 = vmatprep.subr.mxu0 0.0
  %3073 = vmatpush1.xpose.msra.mxu0 0.0
  %3074 = vmatprep.subr.mxu0 0.0
  %3075 = vmatpush1.xpose.msra.mxu0 0.0
  %3076 = vmatprep.subr.mxu0 0.0
  %3077 = vmatpush1.xpose.msra.mxu0 0.0
  %3078 = vmatprep.subr.mxu0 0.0
  %3079 = vmatpush1.xpose.msra.mxu0 0.0
  %3080 = vmatprep.subr.mxu0 0.0
  %3081 = vmatpush1.xpose.msra.mxu0 0.0
  %3082 = vmatprep.mubr.f32.mxu0 0.0
  %3083 = vmatmul.mubr.f32.gmra.mrb[0].mxu0 %v3007
  %v3084 = vpop.f32.mrb[0].mxu0
  %v3085 = vadd.f32 0.0, %v3084
  %v3086 = vpop.f32.mrb[0].mxu0
  %3087 = vmatprep.mubr.f32.mxu0 0.0
  %3088 = vmatmul.mubr.f32.gmra.mrb[0].mxu0 %v3010
  %v3089 = vpop.f32.mrb[0].mxu0
  %v3090 = vadd.f32 0.0, %v3089
  %v3091 = vpop.f32.mrb[0].mxu0
  %3092 = vdwg.mxu0
  %3093 = vxpose.xlu0.b32.start [1/16] %v2207, 128
  %3094 = vxpose.xlu0.b32.cont [2/16] %v2212, 128
  %3095 = vxpose.xlu0.b32.cont [3/16] 0.0, 128
  %3096 = vxpose.xlu0.b32.cont [4/16] 0.0, 128
  %3097 = vxpose.xlu0.b32.cont [5/16] 0.0, 128
  %3098 = vxpose.xlu0.b32.cont [6/16] 0.0, 128
  %3099 = vxpose.xlu0.b32.cont [7/16] 0.0, 128
  %3100 = vxpose.xlu0.b32.cont [8/16] 0.0, 128
  %3101 = vxpose.xlu0.b32.cont [9/16] 0.0, 128
  %3102 = vxpose.xlu0.b32.cont [10/16] 0.0, 128
  %3103 = vxpose.xlu0.b32.cont [11/16] 0.0, 128
  %3104 = vxpose.xlu0.b32.cont [12/16] 0.0, 128
  %3105 = vxpose.xlu0.b32.cont [13/16] 0.0, 128
  %3106 = vxpose.xlu0.b32.cont [14/16] 0.0, 128
  %3107 = vxpose.xlu0.b32.cont [15/16] 0.0, 128
  %3108 = vxpose.xlu0.b32.end [16/16] 0.0, 128
  %v3109 = vpop.trf.xlu0
  %v3110 = vpop.trf.xlu0
  %v3111 = vpop.trf.xlu0
  %v3112 = vpop.trf.xlu0
  %v3113 = vpop.trf.xlu0
  %v3114 = vpop.trf.xlu0
  %v3115 = vpop.trf.xlu0
  %v3116 = vpop.trf.xlu0
  %v3117 = vpop.trf.xlu0
  %v3118 = vpop.trf.xlu0
  %v3119 = vpop.trf.xlu0
  %v3120 = vpop.trf.xlu0
  %v3121 = vpop.trf.xlu0
  %v3122 = vpop.trf.xlu0
  %v3123 = vpop.trf.xlu0
  %v3124 = vpop.trf.xlu0
  %v3126 = vsel %vm2458, %v3109, 0
  %v3129 = vsel %vm2458, %v3110, 0
  %3131 = vmatprep.subr.mxu0 0.0
  %3132 = vmatpush1.msra.mxu0 %v2376
  %3133 = vmatprep.subr.mxu0 0.0
  %3134 = vmatpush1.msra.mxu0 %v2381
  %3135 = vmatprep.subr.mxu0 0.0
  %3136 = vmatpush1.msra.mxu0 0.0
  %3137 = vmatprep.subr.mxu0 0.0
  %3138 = vmatpush1.msra.mxu0 0.0
  %3139 = vmatprep.subr.mxu0 0.0
  %3140 = vmatpush1.msra.mxu0 0.0
  %3141 = vmatprep.subr.mxu0 0.0
  %3142 = vmatpush1.msra.mxu0 0.0
  %3143 = vmatprep.subr.mxu0 0.0
  %3144 = vmatpush1.msra.mxu0 0.0
  %3145 = vmatprep.subr.mxu0 0.0
  %3146 = vmatpush1.msra.mxu0 0.0
  %3147 = vmatprep.subr.mxu0 0.0
  %3148 = vmatpush1.msra.mxu0 0.0
  %3149 = vmatprep.subr.mxu0 0.0
  %3150 = vmatpush1.msra.mxu0 0.0
  %3151 = vmatprep.subr.mxu0 0.0
  %3152 = vmatpush1.msra.mxu0 0.0
  %3153 = vmatprep.subr.mxu0 0.0
  %3154 = vmatpush1.msra.mxu0 0.0
  %3155 = vmatprep.subr.mxu0 0.0
  %3156 = vmatpush1.msra.mxu0 0.0
  %3157 = vmatprep.subr.mxu0 0.0
  %3158 = vmatpush1.msra.mxu0 0.0
  %3159 = vmatprep.subr.mxu0 0.0
  %3160 = vmatpush1.msra.mxu0 0.0
  %3161 = vmatprep.subr.mxu0 0.0
  %3162 = vmatpush1.msra.mxu0 0.0
  %3163 = vmatprep.subr.mxu0 0.0
  %3164 = vmatpush1.msra.mxu0 0.0
  %3165 = vmatprep.subr.mxu0 0.0
  %3166 = vmatpush1.msra.mxu0 0.0
  %3167 = vmatprep.subr.mxu0 0.0
  %3168 = vmatpush1.msra.mxu0 0.0
  %3169 = vmatprep.subr.mxu0 0.0
  %3170 = vmatpush1.msra.mxu0 0.0
  %3171 = vmatprep.subr.mxu0 0.0
  %3172 = vmatpush1.msra.mxu0 0.0
  %3173 = vmatprep.subr.mxu0 0.0
  %3174 = vmatpush1.msra.mxu0 0.0
  %3175 = vmatprep.subr.mxu0 0.0
  %3176 = vmatpush1.msra.mxu0 0.0
  %3177 = vmatprep.subr.mxu0 0.0
  %3178 = vmatpush1.msra.mxu0 0.0
  %3179 = vmatprep.subr.mxu0 0.0
  %3180 = vmatpush1.msra.mxu0 0.0
  %3181 = vmatprep.subr.mxu0 0.0
  %3182 = vmatpush1.msra.mxu0 0.0
  %3183 = vmatprep.subr.mxu0 0.0
  %3184 = vmatpush1.msra.mxu0 0.0
  %3185 = vmatprep.subr.mxu0 0.0
  %3186 = vmatpush1.msra.mxu0 0.0
  %3187 = vmatprep.subr.mxu0 0.0
  %3188 = vmatpush1.msra.mxu0 0.0
  %3189 = vmatprep.subr.mxu0 0.0
  %3190 = vmatpush1.msra.mxu0 0.0
  %3191 = vmatprep.subr.mxu0 0.0
  %3192 = vmatpush1.msra.mxu0 0.0
  %3193 = vmatprep.subr.mxu0 0.0
  %3194 = vmatpush1.msra.mxu0 0.0
  %3195 = vmatprep.mubr.f32.mxu0 0.0
  %3196 = vmatmul.mubr.f32.gmra.mrb[0].mxu0 %v3126
  %v3197 = vpop.f32.mrb[0].mxu0
  %v3198 = vadd.f32 %v2424, %v3197
  %v3199 = vpop.f32.mrb[0].mxu0
  %3200 = vmatprep.mubr.f32.mxu0 0.0
  %3201 = vmatmul.mubr.f32.gmra.mrb[0].mxu0 %v3129
  %v3202 = vpop.f32.mrb[0].mxu0
  %v3203 = vadd.f32 %v2425, %v3202
  %v3204 = vpop.f32.mrb[0].mxu0
  %3205 = vdwg.mxu0
  %v3206 = vsel %vm795, %v3198, -inf
  %3207 = vmax.xlane.f32.xlu0 %v3206
  %v3208 = vpop.xlane.xlu0 %3207
  %v3209 = vsel %vm795, %v3203, -inf
  %3210 = vmax.xlane.f32.xlu0 %v3209
  %v3211 = vpop.xlane.xlu0 %3210
  %v3212 = vsub.f32 %v3198, %v3208
  %v3213 = vsub.f32 %v3203, %v3211
  %v3214 = vmul.f32 %v3212, 1.442695
  %v3215 = vpow.pop %v3214
  %v3216 = vmul.f32 %v3213, 1.442695
  %v3217 = vpow.pop %v3216
  %v3218 = vsel %vm795, %v3215, 0.0
  %3219 = vadd.xlane.f32.xlu0 %v3218
  %v3220 = vpop.xlane.xlu0 %3219
  %v3221 = vsel %vm795, %v3217, 0.0
  %3222 = vadd.xlane.f32.xlu0 %v3221
  %v3223 = vpop.xlane.xlu0 %3222
  %v3224 = vrcp.pop %v3220
  %v3225 = vrcp.pop %v3223
  %v3226 = vmul.f32 %v3215, %v3224
  %v3227 = vmul.f32 %v3217, %v3225
  %v3229 = vsel %vm795, %v2416, 0
  %v3232 = vsel %vm795, %v2421, 0
  %v3235 = vsel %vm795, %v3226, 0
  %v3238 = vsel %vm795, %v3227, 0
  %3240 = vmatprep.subr.mxu0 0.0
  %3241 = vmatpush1.xpose.msra.mxu0 %v3235
  %3242 = vmatprep.subr.mxu0 0.0
  %3243 = vmatpush1.xpose.msra.mxu0 %v3238
  %3244 = vmatprep.subr.mxu0 0.0
  %3245 = vmatpush1.xpose.msra.mxu0 0.0
  %3246 = vmatprep.subr.mxu0 0.0
  %3247 = vmatpush1.xpose.msra.mxu0 0.0
  %3248 = vmatprep.subr.mxu0 0.0
  %3249 = vmatpush1.xpose.msra.mxu0 0.0
  %3250 = vmatprep.subr.mxu0 0.0
  %3251 = vmatpush1.xpose.msra.mxu0 0.0
  %3252 = vmatprep.subr.mxu0 0.0
  %3253 = vmatpush1.xpose.msra.mxu0 0.0
  %3254 = vmatprep.subr.mxu0 0.0
  %3255 = vmatpush1.xpose.msra.mxu0 0.0
  %3256 = vmatprep.subr.mxu0 0.0
  %3257 = vmatpush1.xpose.msra.mxu0 0.0
  %3258 = vmatprep.subr.mxu0 0.0
  %3259 = vmatpush1.xpose.msra.mxu0 0.0
  %3260 = vmatprep.subr.mxu0 0.0
  %3261 = vmatpush1.xpose.msra.mxu0 0.0
  %3262 = vmatprep.subr.mxu0 0.0
  %3263 = vmatpush1.xpose.msra.mxu0 0.0
  %3264 = vmatprep.subr.mxu0 0.0
  %3265 = vmatpush1.xpose.msra.mxu0 0.0
  %3266 = vmatprep.subr.mxu0 0.0
  %3267 = vmatpush1.xpose.msra.mxu0 0.0
  %3268 = vmatprep.subr.mxu0 0.0
  %3269 = vmatpush1.xpose.msra.mxu0 0.0
  %3270 = vmatprep.subr.mxu0 0.0
  %3271 = vmatpush1.xpose.msra.mxu0 0.0
  %3272 = vmatprep.subr.mxu0 0.0
  %3273 = vmatpush1.xpose.msra.mxu0 0.0
  %3274 = vmatprep.subr.mxu0 0.0
  %3275 = vmatpush1.xpose.msra.mxu0 0.0
  %3276 = vmatprep.subr.mxu0 0.0
  %3277 = vmatpush1.xpose.msra.mxu0 0.0
  %3278 = vmatprep.subr.mxu0 0.0
  %3279 = vmatpush1.xpose.msra.mxu0 0.0
  %3280 = vmatprep.subr.mxu0 0.0
  %3281 = vmatpush1.xpose.msra.mxu0 0.0
  %3282 = vmatprep.subr.mxu0 0.0
  %3283 = vmatpush1.xpose.msra.mxu0 0.0
  %3284 = vmatprep.subr.mxu0 0.0
  %3285 = vmatpush1.xpose.msra.mxu0 0.0
  %3286 = vmatprep.subr.mxu0 0.0
  %3287 = vmatpush1.xpose.msra.mxu0 0.0
  %3288 = vmatprep.subr.mxu0 0.0
  %3289 = vmatpush1.xpose.msra.mxu0 0.0
  %3290 = vmatprep.subr.mxu0 0.0
  %3291 = vmatpush1.xpose.msra.mxu0 0.0
  %3292 = vmatprep.subr.mxu0 0.0
  %3293 = vmatpush1.xpose.msra.mxu0 0.0
  %3294 = vmatprep.subr.mxu0 0.0
  %3295 = vmatpush1.xpose.msra.mxu0 0.0
  %3296 = vmatprep.subr.mxu0 0.0
  %3297 = vmatpush1.xpose.msra.mxu0 0.0
  %3298 = vmatprep.subr.mxu0 0.0
  %3299 = vmatpush1.xpose.msra.mxu0 0.0
  %3300 = vmatprep.subr.mxu0 0.0
  %3301 = vmatpush1.xpose.msra.mxu0 0.0
  %3302 = vmatprep.subr.mxu0 0.0
  %3303 = vmatpush1.xpose.msra.mxu0 0.0
  %3304 = vmatprep.mubr.f32.mxu0 0.0
  %3305 = vmatmul.mubr.f32.gmra.mrb[0].mxu0 %v3229
  %v3306 = vpop.f32.mrb[0].mxu0
  %v3307 = vadd.f32 0.0, %v3306
  %v3308 = vpop.f32.mrb[0].mxu0
  %3309 = vmatprep.mubr.f32.mxu0 0.0
  %3310 = vmatmul.mubr.f32.gmra.mrb[0].mxu0 %v3232
  %v3311 = vpop.f32.mrb[0].mxu0
  %v3312 = vadd.f32 0.0, %v3311
  %v3313 = vpop.f32.mrb[0].mxu0
  %3314 = vdwg.mxu0
  %v3315 = vld [vmem:[%s1 + $0x3a0] sm:$0xff]
  %v3316 = vld [vmem:[%s1 + $0x3a8] sm:$0xff]
  %v3317 = vld [vmem:[%s1 + $0x3b0] sm:$0xff]
  %v3318 = vld [vmem:[%s1 + $0x3b8] sm:$0xff]
  %v3319 = vld [vmem:[%s1 + $0x3c0] sm:$0xff]
  %v3320 = vld [vmem:[%s1 + $0x3c8] sm:$0xff]
  %v3321 = vld [vmem:[%s1 + $0x3d0] sm:$0xff]
  %v3322 = vld [vmem:[%s1 + $0x3d8] sm:$0xff]
  %3323 = vxpose.xlu0.b32.start [1/16] %v3315, 128
  %3324 = vxpose.xlu0.b32.cont [2/16] %v3316, 128
  %3325 = vxpose.xlu0.b32.cont [3/16] %v3317, 128
  %3326 = vxpose.xlu0.b32.cont [4/16] %v3318, 128
  %3327 = vxpose.xlu0.b32.cont [5/16] %v3319, 128
  %3328 = vxpose.xlu0.b32.cont [6/16] %v3320, 128
  %3329 = vxpose.xlu0.b32.cont [7/16] %v3321, 128
  %3330 = vxpose.xlu0.b32.cont [8/16] %v3322, 128
  %3331 = vxpose.xlu0.b32.cont [9/16] 0.0, 128
  %3332 = vxpose.xlu0.b32.cont [10/16] 0.0, 128
  %3333 = vxpose.xlu0.b32.cont [11/16] 0.0, 128
  %3334 = vxpose.xlu0.b32.cont [12/16] 0.0, 128
  %3335 = vxpose.xlu0.b32.cont [13/16] 0.0, 128
  %3336 = vxpose.xlu0.b32.cont [14/16] 0.0, 128
  %3337 = vxpose.xlu0.b32.cont [15/16] 0.0, 128
  %3338 = vxpose.xlu0.b32.end [16/16] 0.0, 128
  %v3339 = vpop.trf.xlu0
  %v3340 = vpop.trf.xlu0
  %v3341 = vpop.trf.xlu0
  %v3342 = vpop.trf.xlu0
  %v3343 = vpop.trf.xlu0
  %v3344 = vpop.trf.xlu0
  %v3345 = vpop.trf.xlu0
  %v3346 = vpop.trf.xlu0
  %v3347 = vpop.trf.xlu0
  %v3348 = vpop.trf.xlu0
  %v3349 = vpop.trf.xlu0
  %v3350 = vpop.trf.xlu0
  %v3351 = vpop.trf.xlu0
  %v3352 = vpop.trf.xlu0
  %v3353 = vpop.trf.xlu0
  %v3354 = vpop.trf.xlu0
  %vm3355 = vcmask 523264
  %v3357 = vsel %vm3355, %v3339, 0
  %v3360 = vsel %vm3355, %v3340, 0
  %v3363 = vsel %vm3355, %v3341, 0
  %v3366 = vsel %vm3355, %v3342, 0
  %v3369 = vsel %vm3355, %v3343, 0
  %v3372 = vsel %vm3355, %v3344, 0
  %3374 = vmatprep.subr.mxu0 0.0
  %3375 = vmatpush1.msra.mxu0 %v2641
  %3376 = vmatprep.subr.mxu0 0.0
  %3377 = vmatpush1.msra.mxu0 %v2646
  %3378 = vmatprep.subr.mxu0 0.0
  %3379 = vmatpush1.msra.mxu0 %v2863
  %3380 = vmatprep.subr.mxu0 0.0
  %3381 = vmatpush1.msra.mxu0 %v2868
  %3382 = vmatprep.subr.mxu0 0.0
  %3383 = vmatpush1.msra.mxu0 %v3085
  %3384 = vmatprep.subr.mxu0 0.0
  %3385 = vmatpush1.msra.mxu0 %v3090
  %3386 = vmatprep.subr.mxu0 0.0
  %3387 = vmatpush1.msra.mxu0 %v3307
  %3388 = vmatprep.subr.mxu0 0.0
  %3389 = vmatpush1.msra.mxu0 %v3312
  %3390 = vmatprep.subr.mxu0 0.0
  %3391 = vmatpush1.msra.mxu0 0.0
  %3392 = vmatprep.subr.mxu0 0.0
  %3393 = vmatpush1.msra.mxu0 0.0
  %3394 = vmatprep.subr.mxu0 0.0
  %3395 = vmatpush1.msra.mxu0 0.0
  %3396 = vmatprep.subr.mxu0 0.0
  %3397 = vmatpush1.msra.mxu0 0.0
  %3398 = vmatprep.subr.mxu0 0.0
  %3399 = vmatpush1.msra.mxu0 0.0
  %3400 = vmatprep.subr.mxu0 0.0
  %3401 = vmatpush1.msra.mxu0 0.0
  %3402 = vmatprep.subr.mxu0 0.0
  %3403 = vmatpush1.msra.mxu0 0.0
  %3404 = vmatprep.subr.mxu0 0.0
  %3405 = vmatpush1.msra.mxu0 0.0
  %3406 = vmatprep.subr.mxu0 0.0
  %3407 = vmatpush1.msra.mxu0 0.0
  %3408 = vmatprep.subr.mxu0 0.0
  %3409 = vmatpush1.msra.mxu0 0.0
  %3410 = vmatprep.subr.mxu0 0.0
  %3411 = vmatpush1.msra.mxu0 0.0
  %3412 = vmatprep.subr.mxu0 0.0
  %3413 = vmatpush1.msra.mxu0 0.0
  %3414 = vmatprep.subr.mxu0 0.0
  %3415 = vmatpush1.msra.mxu0 0.0
  %3416 = vmatprep.subr.mxu0 0.0
  %3417 = vmatpush1.msra.mxu0 0.0
  %3418 = vmatprep.subr.mxu0 0.0
  %3419 = vmatpush1.msra.mxu0 0.0
  %3420 = vmatprep.subr.mxu0 0.0
  %3421 = vmatpush1.msra.mxu0 0.0
  %3422 = vmatprep.subr.mxu0 0.0
  %3423 = vmatpush1.msra.mxu0 0.0
  %3424 = vmatprep.subr.mxu0 0.0
  %3425 = vmatpush1.msra.mxu0 0.0
  %3426 = vmatprep.subr.mxu0 0.0
  %3427 = vmatpush1.msra.mxu0 0.0
  %3428 = vmatprep.subr.mxu0 0.0
  %3429 = vmatpush1.msra.mxu0 0.0
  %3430 = vmatprep.subr.mxu0 0.0
  %3431 = vmatpush1.msra.mxu0 0.0
  %3432 = vmatprep.subr.mxu0 0.0
  %3433 = vmatpush1.msra.mxu0 0.0
  %3434 = vmatprep.subr.mxu0 0.0
  %3435 = vmatpush1.msra.mxu0 0.0
  %3436 = vmatprep.subr.mxu0 0.0
  %3437 = vmatpush1.msra.mxu0 0.0
  %3438 = vmatprep.mubr.f32.mxu0 0.0
  %3439 = vmatmul.mubr.f32.gmra.mrb[0].mxu0 %v3357
  %v3440 = vpop.f32.mrb[0].mxu0
  %v3441 = vadd.f32 0.0, %v3440
  %v3442 = vpop.f32.mrb[0].mxu0
  %3443 = vmatprep.mubr.f32.mxu0 0.0
  %3444 = vmatmul.mubr.f32.gmra.mrb[0].mxu0 %v3360
  %v3445 = vpop.f32.mrb[0].mxu0
  %v3446 = vadd.f32 0.0, %v3445
  %v3447 = vpop.f32.mrb[0].mxu0
  %3448 = vmatprep.mubr.f32.mxu0 0.0
  %3449 = vmatmul.mubr.f32.gmra.mrb[0].mxu0 %v3363
  %v3450 = vpop.f32.mrb[0].mxu0
  %v3451 = vadd.f32 0.0, %v3450
  %v3452 = vpop.f32.mrb[0].mxu0
  %3453 = vmatprep.mubr.f32.mxu0 0.0
  %3454 = vmatmul.mubr.f32.gmra.mrb[0].mxu0 %v3366
  %v3455 = vpop.f32.mrb[0].mxu0
  %v3456 = vadd.f32 0.0, %v3455
  %v3457 = vpop.f32.mrb[0].mxu0
  %3458 = vmatprep.mubr.f32.mxu0 0.0
  %3459 = vmatmul.mubr.f32.gmra.mrb[0].mxu0 %v3369
  %v3460 = vpop.f32.mrb[0].mxu0
  %v3461 = vadd.f32 0.0, %v3460
  %v3462 = vpop.f32.mrb[0].mxu0
  %3463 = vmatprep.mubr.f32.mxu0 0.0
  %3464 = vmatmul.mubr.f32.gmra.mrb[0].mxu0 %v3372
  %v3465 = vpop.f32.mrb[0].mxu0
  %v3466 = vadd.f32 0.0, %v3465
  %v3467 = vpop.f32.mrb[0].mxu0
  %3468 = vdwg.mxu0
  %v3469 = vadd.f32 %v2072, %v3441
  %v3470 = vadd.f32 %v2073, %v3446
  %v3471 = vadd.f32 %v2074, %v3451
  %v3472 = vadd.f32 %v2075, %v3456
  %v3473 = vadd.f32 %v2076, %v3461
  %v3474 = vadd.f32 %v2077, %v3466
  %v3475 = vld [vmem:[%s1 + $0x3e0] sm:$0xff]
  %v3476 = vld [vmem:[%s1 + $0x3e8] sm:$0xff]
  %v3477 = vld [vmem:[%s1 + $0x3f0] sm:$0xff]
  %v3478 = vld [vmem:[%s1 + $0x3f8] sm:$0xff]
  %v3479 = vld [vmem:[%s1 + $0x400] sm:$0xff]
  %v3480 = vld [vmem:[%s1 + $0x408] sm:$0xff]
  %v3482 = vsel %vm249, %v3475, 0
  %v3485 = vsel %vm249, %v3476, 0
  %v3488 = vsel %vm249, %v3477, 0
  %v3491 = vsel %vm249, %v3478, 0
  %v3494 = vsel %vm249, %v3479, 0
  %v3497 = vsel %vm249, %v3480, 0
  %3499 = vmatprep.subr.mxu0 0.0
  %3500 = vmatpush1.msra.mxu0 %v3469
  %3501 = vmatprep.subr.mxu0 0.0
  %3502 = vmatpush1.msra.mxu0 %v3470
  %3503 = vmatprep.subr.mxu0 0.0
  %3504 = vmatpush1.msra.mxu0 %v3471
  %3505 = vmatprep.subr.mxu0 0.0
  %3506 = vmatpush1.msra.mxu0 %v3472
  %3507 = vmatprep.subr.mxu0 0.0
  %3508 = vmatpush1.msra.mxu0 %v3473
  %3509 = vmatprep.subr.mxu0 0.0
  %3510 = vmatpush1.msra.mxu0 %v3474
  %3511 = vmatprep.subr.mxu0 0.0
  %3512 = vmatpush1.msra.mxu0 0.0
  %3513 = vmatprep.subr.mxu0 0.0
  %3514 = vmatpush1.msra.mxu0 0.0
  %3515 = vmatprep.subr.mxu0 0.0
  %3516 = vmatpush1.msra.mxu0 0.0
  %3517 = vmatprep.subr.mxu0 0.0
  %3518 = vmatpush1.msra.mxu0 0.0
  %3519 = vmatprep.subr.mxu0 0.0
  %3520 = vmatpush1.msra.mxu0 0.0
  %3521 = vmatprep.subr.mxu0 0.0
  %3522 = vmatpush1.msra.mxu0 0.0
  %3523 = vmatprep.subr.mxu0 0.0
  %3524 = vmatpush1.msra.mxu0 0.0
  %3525 = vmatprep.subr.mxu0 0.0
  %3526 = vmatpush1.msra.mxu0 0.0
  %3527 = vmatprep.subr.mxu0 0.0
  %3528 = vmatpush1.msra.mxu0 0.0
  %3529 = vmatprep.subr.mxu0 0.0
  %3530 = vmatpush1.msra.mxu0 0.0
  %3531 = vmatprep.subr.mxu0 0.0
  %3532 = vmatpush1.msra.mxu0 0.0
  %3533 = vmatprep.subr.mxu0 0.0
  %3534 = vmatpush1.msra.mxu0 0.0
  %3535 = vmatprep.subr.mxu0 0.0
  %3536 = vmatpush1.msra.mxu0 0.0
  %3537 = vmatprep.subr.mxu0 0.0
  %3538 = vmatpush1.msra.mxu0 0.0
  %3539 = vmatprep.subr.mxu0 0.0
  %3540 = vmatpush1.msra.mxu0 0.0
  %3541 = vmatprep.subr.mxu0 0.0
  %3542 = vmatpush1.msra.mxu0 0.0
  %3543 = vmatprep.subr.mxu0 0.0
  %3544 = vmatpush1.msra.mxu0 0.0
  %3545 = vmatprep.subr.mxu0 0.0
  %3546 = vmatpush1.msra.mxu0 0.0
  %3547 = vmatprep.subr.mxu0 0.0
  %3548 = vmatpush1.msra.mxu0 0.0
  %3549 = vmatprep.subr.mxu0 0.0
  %3550 = vmatpush1.msra.mxu0 0.0
  %3551 = vmatprep.subr.mxu0 0.0
  %3552 = vmatpush1.msra.mxu0 0.0
  %3553 = vmatprep.subr.mxu0 0.0
  %3554 = vmatpush1.msra.mxu0 0.0
  %3555 = vmatprep.subr.mxu0 0.0
  %3556 = vmatpush1.msra.mxu0 0.0
  %3557 = vmatprep.subr.mxu0 0.0
  %3558 = vmatpush1.msra.mxu0 0.0
  %3559 = vmatprep.subr.mxu0 0.0
  %3560 = vmatpush1.msra.mxu0 0.0
  %3561 = vmatprep.subr.mxu0 0.0
  %3562 = vmatpush1.msra.mxu0 0.0
  %3563 = vmatprep.mubr.f32.mxu0 0.0
  %3564 = vmatmul.mubr.f32.gmra.mrb[0].mxu0 %v3482
  %v3565 = vpop.f32.mrb[0].mxu0
  %v3566 = vadd.f32 0.0, %v3565
  %v3567 = vpop.f32.mrb[0].mxu0
  %3568 = vmatprep.mubr.f32.mxu0 0.0
  %3569 = vmatmul.mubr.f32.gmra.mrb[0].mxu0 %v3485
  %v3570 = vpop.f32.mrb[0].mxu0
  %v3571 = vadd.f32 0.0, %v3570
  %v3572 = vpop.f32.mrb[0].mxu0
  %3573 = vmatprep.mubr.f32.mxu0 0.0
  %3574 = vmatmul.mubr.f32.gmra.mrb[0].mxu0 %v3488
  %v3575 = vpop.f32.mrb[0].mxu0
  %v3576 = vadd.f32 0.0, %v3575
  %v3577 = vpop.f32.mrb[0].mxu0
  %3578 = vmatprep.mubr.f32.mxu0 0.0
  %3579 = vmatmul.mubr.f32.gmra.mrb[0].mxu0 %v3491
  %v3580 = vpop.f32.mrb[0].mxu0
  %v3581 = vadd.f32 0.0, %v3580
  %v3582 = vpop.f32.mrb[0].mxu0
  %3583 = vmatprep.mubr.f32.mxu0 0.0
  %3584 = vmatmul.mubr.f32.gmra.mrb[0].mxu0 %v3494
  %v3585 = vpop.f32.mrb[0].mxu0
  %v3586 = vadd.f32 0.0, %v3585
  %v3587 = vpop.f32.mrb[0].mxu0
  %3588 = vmatprep.mubr.f32.mxu0 0.0
  %3589 = vmatmul.mubr.f32.gmra.mrb[0].mxu0 %v3497
  %v3590 = vpop.f32.mrb[0].mxu0
  %v3591 = vadd.f32 0.0, %v3590
  %v3592 = vpop.f32.mrb[0].mxu0
  %3593 = vdwg.mxu0
  %v3594 = vld [vmem:[%s1 + $0x410] sm:$0xff]
  %v3595 = vld [vmem:[%s1 + $0x418] sm:$0xff]
  %v3596 = vld [vmem:[%s1 + $0x420] sm:$0xff]
  %v3597 = vld [vmem:[%s1 + $0x428] sm:$0xff]
  %v3598 = vld [vmem:[%s1 + $0x430] sm:$0xff]
  %v3599 = vld [vmem:[%s1 + $0x438] sm:$0xff]
  %v3601 = vsel %vm249, %v3594, 0
  %v3604 = vsel %vm249, %v3595, 0
  %v3607 = vsel %vm249, %v3596, 0
  %v3610 = vsel %vm249, %v3597, 0
  %v3613 = vsel %vm249, %v3598, 0
  %v3616 = vsel %vm249, %v3599, 0
  %3618 = vmatprep.subr.mxu0 0.0
  %3619 = vmatpush1.msra.mxu0 %v3566
  %3620 = vmatprep.subr.mxu0 0.0
  %3621 = vmatpush1.msra.mxu0 %v3571
  %3622 = vmatprep.subr.mxu0 0.0
  %3623 = vmatpush1.msra.mxu0 %v3576
  %3624 = vmatprep.subr.mxu0 0.0
  %3625 = vmatpush1.msra.mxu0 %v3581
  %3626 = vmatprep.subr.mxu0 0.0
  %3627 = vmatpush1.msra.mxu0 %v3586
  %3628 = vmatprep.subr.mxu0 0.0
  %3629 = vmatpush1.msra.mxu0 %v3591
  %3630 = vmatprep.subr.mxu0 0.0
  %3631 = vmatpush1.msra.mxu0 0.0
  %3632 = vmatprep.subr.mxu0 0.0
  %3633 = vmatpush1.msra.mxu0 0.0
  %3634 = vmatprep.subr.mxu0 0.0
  %3635 = vmatpush1.msra.mxu0 0.0
  %3636 = vmatprep.subr.mxu0 0.0
  %3637 = vmatpush1.msra.mxu0 0.0
  %3638 = vmatprep.subr.mxu0 0.0
  %3639 = vmatpush1.msra.mxu0 0.0
  %3640 = vmatprep.subr.mxu0 0.0
  %3641 = vmatpush1.msra.mxu0 0.0
  %3642 = vmatprep.subr.mxu0 0.0
  %3643 = vmatpush1.msra.mxu0 0.0
  %3644 = vmatprep.subr.mxu0 0.0
  %3645 = vmatpush1.msra.mxu0 0.0
  %3646 = vmatprep.subr.mxu0 0.0
  %3647 = vmatpush1.msra.mxu0 0.0
  %3648 = vmatprep.subr.mxu0 0.0
  %3649 = vmatpush1.msra.mxu0 0.0
  %3650 = vmatprep.subr.mxu0 0.0
  %3651 = vmatpush1.msra.mxu0 0.0
  %3652 = vmatprep.subr.mxu0 0.0
  %3653 = vmatpush1.msra.mxu0 0.0
  %3654 = vmatprep.subr.mxu0 0.0
  %3655 = vmatpush1.msra.mxu0 0.0
  %3656 = vmatprep.subr.mxu0 0.0
  %3657 = vmatpush1.msra.mxu0 0.0
  %3658 = vmatprep.subr.mxu0 0.0
  %3659 = vmatpush1.msra.mxu0 0.0
  %3660 = vmatprep.subr.mxu0 0.0
  %3661 = vmatpush1.msra.mxu0 0.0
  %3662 = vmatprep.subr.mxu0 0.0
  %3663 = vmatpush1.msra.mxu0 0.0
  %3664 = vmatprep.subr.mxu0 0.0
  %3665 = vmatpush1.msra.mxu0 0.0
  %3666 = vmatprep.subr.mxu0 0.0
  %3667 = vmatpush1.msra.mxu0 0.0
  %3668 = vmatprep.subr.mxu0 0.0
  %3669 = vmatpush1.msra.mxu0 0.0
  %3670 = vmatprep.subr.mxu0 0.0
  %3671 = vmatpush1.msra.mxu0 0.0
  %3672 = vmatprep.subr.mxu0 0.0
  %3673 = vmatpush1.msra.mxu0 0.0
  %3674 = vmatprep.subr.mxu0 0.0
  %3675 = vmatpush1.msra.mxu0 0.0
  %3676 = vmatprep.subr.mxu0 0.0
  %3677 = vmatpush1.msra.mxu0 0.0
  %3678 = vmatprep.subr.mxu0 0.0
  %3679 = vmatpush1.msra.mxu0 0.0
  %3680 = vmatprep.subr.mxu0 0.0
  %3681 = vmatpush1.msra.mxu0 0.0
  %3682 = vmatprep.mubr.f32.mxu0 0.0
  %3683 = vmatmul.mubr.f32.gmra.mrb[0].mxu0 %v3601
  %v3684 = vpop.f32.mrb[0].mxu0
  %v3685 = vadd.f32 0.0, %v3684
  %v3686 = vpop.f32.mrb[0].mxu0
  %3687 = vmatprep.mubr.f32.mxu0 0.0
  %3688 = vmatmul.mubr.f32.gmra.mrb[0].mxu0 %v3604
  %v3689 = vpop.f32.mrb[0].mxu0
  %v3690 = vadd.f32 0.0, %v3689
  %v3691 = vpop.f32.mrb[0].mxu0
  %3692 = vmatprep.mubr.f32.mxu0 0.0
  %3693 = vmatmul.mubr.f32.gmra.mrb[0].mxu0 %v3607
  %v3694 = vpop.f32.mrb[0].mxu0
  %v3695 = vadd.f32 0.0, %v3694
  %v3696 = vpop.f32.mrb[0].mxu0
  %3697 = vmatprep.mubr.f32.mxu0 0.0
  %3698 = vmatmul.mubr.f32.gmra.mrb[0].mxu0 %v3610
  %v3699 = vpop.f32.mrb[0].mxu0
  %v3700 = vadd.f32 0.0, %v3699
  %v3701 = vpop.f32.mrb[0].mxu0
  %3702 = vmatprep.mubr.f32.mxu0 0.0
  %3703 = vmatmul.mubr.f32.gmra.mrb[0].mxu0 %v3613
  %v3704 = vpop.f32.mrb[0].mxu0
  %v3705 = vadd.f32 0.0, %v3704
  %v3706 = vpop.f32.mrb[0].mxu0
  %3707 = vmatprep.mubr.f32.mxu0 0.0
  %3708 = vmatmul.mubr.f32.gmra.mrb[0].mxu0 %v3616
  %v3709 = vpop.f32.mrb[0].mxu0
  %v3710 = vadd.f32 0.0, %v3709
  %v3711 = vpop.f32.mrb[0].mxu0
  %3712 = vdwg.mxu0
  %v3713 = vmul.f32 %v3566, %v3685
  %v3714 = vmul.f32 %v3571, %v3690
  %v3715 = vmul.f32 %v3576, %v3695
  %v3716 = vmul.f32 %v3581, %v3700
  %v3717 = vadd.f32 %v3713, %v3715
  %v3718 = vadd.f32 %v3714, %v3716
  %v3719 = vmul.f32 %v3586, %v3705
  %v3720 = vmul.f32 %v3591, %v3710
  %v3721 = vadd.f32 %v3717, %v3719
  %v3722 = vadd.f32 %v3718, %v3720
  %v3723 = vmul.f32 %v3685, %v3685
  %v3724 = vmul.f32 %v3690, %v3690
  %v3725 = vmul.f32 %v3695, %v3695
  %v3726 = vmul.f32 %v3700, %v3700
  %v3727 = vadd.f32 %v3723, %v3725
  %v3728 = vadd.f32 %v3724, %v3726
  %v3729 = vmul.f32 %v3705, %v3705
  %v3730 = vmul.f32 %v3710, %v3710
  %v3731 = vadd.f32 %v3727, %v3729
  %v3732 = vadd.f32 %v3728, %v3730
  %v3733 = vadd.f32 %v3731, 1e-06
  %v3734 = vadd.f32 %v3732, 1e-06
  %v3735 = vrcp.pop %v3733
  %v3736 = vrcp.pop %v3734
  %v3737 = vmul.f32 %v3721, %v3735
  %v3738 = vmul.f32 %v3722, %v3736
  %vm3739 = vcmp.ge.f32.partialorder %v3721, 0.0
  %vm3740 = vcmp.ge.f32.partialorder %v3722, 0.0
  %v3741 = vmul.f32 %v3737, %v3685
  %v3742 = vmul.f32 %v3738, %v3690
  %v3743 = vsub.f32 %v3566, %v3741
  %v3744 = vsub.f32 %v3571, %v3742
  %v3745 = vsel %vm3739, %v3566, %v3743
  %v3746 = vsel %vm3740, %v3571, %v3744
  %v3747 = vmul.f32 %v3737, %v3695
  %v3748 = vmul.f32 %v3738, %v3700
  %v3749 = vsub.f32 %v3576, %v3747
  %v3750 = vsub.f32 %v3581, %v3748
  %v3751 = vsel %vm3739, %v3576, %v3749
  %v3752 = vsel %vm3740, %v3581, %v3750
  %v3753 = vmul.f32 %v3737, %v3705
  %v3754 = vmul.f32 %v3738, %v3710
  %v3755 = vsub.f32 %v3586, %v3753
  %v3756 = vsub.f32 %v3591, %v3754
  %v3757 = vsel %vm3739, %v3586, %v3755
  %v3758 = vsel %vm3740, %v3591, %v3756
  %v3759 = vld [vmem:[%s1 + $0x440] sm:$0xff]
  %v3760 = vld [vmem:[%s1 + $0x448] sm:$0xff]
  %v3761 = vld [vmem:[%s1 + $0x450] sm:$0xff]
  %v3762 = vld [vmem:[%s1 + $0x458] sm:$0xff]
  %v3763 = vld [vmem:[%s1 + $0x460] sm:$0xff]
  %v3764 = vld [vmem:[%s1 + $0x468] sm:$0xff]
  %v3766 = vsel %vm249, %v3759, 0
  %v3769 = vsel %vm249, %v3760, 0
  %v3772 = vsel %vm249, %v3761, 0
  %v3775 = vsel %vm249, %v3762, 0
  %v3778 = vsel %vm249, %v3763, 0
  %v3781 = vsel %vm249, %v3764, 0
  %3783 = vmatprep.subr.mxu0 0.0
  %3784 = vmatpush1.msra.mxu0 %v3745
  %3785 = vmatprep.subr.mxu0 0.0
  %3786 = vmatpush1.msra.mxu0 %v3746
  %3787 = vmatprep.subr.mxu0 0.0
  %3788 = vmatpush1.msra.mxu0 %v3751
  %3789 = vmatprep.subr.mxu0 0.0
  %3790 = vmatpush1.msra.mxu0 %v3752
  %3791 = vmatprep.subr.mxu0 0.0
  %3792 = vmatpush1.msra.mxu0 %v3757
  %3793 = vmatprep.subr.mxu0 0.0
  %3794 = vmatpush1.msra.mxu0 %v3758
  %3795 = vmatprep.subr.mxu0 0.0
  %3796 = vmatpush1.msra.mxu0 0.0
  %3797 = vmatprep.subr.mxu0 0.0
  %3798 = vmatpush1.msra.mxu0 0.0
  %3799 = vmatprep.subr.mxu0 0.0
  %3800 = vmatpush1.msra.mxu0 0.0
  %3801 = vmatprep.subr.mxu0 0.0
  %3802 = vmatpush1.msra.mxu0 0.0
  %3803 = vmatprep.subr.mxu0 0.0
  %3804 = vmatpush1.msra.mxu0 0.0
  %3805 = vmatprep.subr.mxu0 0.0
  %3806 = vmatpush1.msra.mxu0 0.0
  %3807 = vmatprep.subr.mxu0 0.0
  %3808 = vmatpush1.msra.mxu0 0.0
  %3809 = vmatprep.subr.mxu0 0.0
  %3810 = vmatpush1.msra.mxu0 0.0
  %3811 = vmatprep.subr.mxu0 0.0
  %3812 = vmatpush1.msra.mxu0 0.0
  %3813 = vmatprep.subr.mxu0 0.0
  %3814 = vmatpush1.msra.mxu0 0.0
  %3815 = vmatprep.subr.mxu0 0.0
  %3816 = vmatpush1.msra.mxu0 0.0
  %3817 = vmatprep.subr.mxu0 0.0
  %3818 = vmatpush1.msra.mxu0 0.0
  %3819 = vmatprep.subr.mxu0 0.0
  %3820 = vmatpush1.msra.mxu0 0.0
  %3821 = vmatprep.subr.mxu0 0.0
  %3822 = vmatpush1.msra.mxu0 0.0
  %3823 = vmatprep.subr.mxu0 0.0
  %3824 = vmatpush1.msra.mxu0 0.0
  %3825 = vmatprep.subr.mxu0 0.0
  %3826 = vmatpush1.msra.mxu0 0.0
  %3827 = vmatprep.subr.mxu0 0.0
  %3828 = vmatpush1.msra.mxu0 0.0
  %3829 = vmatprep.subr.mxu0 0.0
  %3830 = vmatpush1.msra.mxu0 0.0
  %3831 = vmatprep.subr.mxu0 0.0
  %3832 = vmatpush1.msra.mxu0 0.0
  %3833 = vmatprep.subr.mxu0 0.0
  %3834 = vmatpush1.msra.mxu0 0.0
  %3835 = vmatprep.subr.mxu0 0.0
  %3836 = vmatpush1.msra.mxu0 0.0
  %3837 = vmatprep.subr.mxu0 0.0
  %3838 = vmatpush1.msra.mxu0 0.0
  %3839 = vmatprep.subr.mxu0 0.0
  %3840 = vmatpush1.msra.mxu0 0.0
  %3841 = vmatprep.subr.mxu0 0.0
  %3842 = vmatpush1.msra.mxu0 0.0
  %3843 = vmatprep.subr.mxu0 0.0
  %3844 = vmatpush1.msra.mxu0 0.0
  %3845 = vmatprep.subr.mxu0 0.0
  %3846 = vmatpush1.msra.mxu0 0.0
  %3847 = vmatprep.mubr.f32.mxu0 0.0
  %3848 = vmatmul.mubr.f32.gmra.mrb[0].mxu0 %v3766
  %v3849 = vpop.f32.mrb[0].mxu0
  %v3850 = vadd.f32 0.0, %v3849
  %v3851 = vpop.f32.mrb[0].mxu0
  %3852 = vmatprep.mubr.f32.mxu0 0.0
  %3853 = vmatmul.mubr.f32.gmra.mrb[0].mxu0 %v3769
  %v3854 = vpop.f32.mrb[0].mxu0
  %v3855 = vadd.f32 0.0, %v3854
  %v3856 = vpop.f32.mrb[0].mxu0
  %3857 = vmatprep.mubr.f32.mxu0 0.0
  %3858 = vmatmul.mubr.f32.gmra.mrb[0].mxu0 %v3772
  %v3859 = vpop.f32.mrb[0].mxu0
  %v3860 = vadd.f32 0.0, %v3859
  %v3861 = vpop.f32.mrb[0].mxu0
  %3862 = vmatprep.mubr.f32.mxu0 0.0
  %3863 = vmatmul.mubr.f32.gmra.mrb[0].mxu0 %v3775
  %v3864 = vpop.f32.mrb[0].mxu0
  %v3865 = vadd.f32 0.0, %v3864
  %v3866 = vpop.f32.mrb[0].mxu0
  %3867 = vmatprep.mubr.f32.mxu0 0.0
  %3868 = vmatmul.mubr.f32.gmra.mrb[0].mxu0 %v3778
  %v3869 = vpop.f32.mrb[0].mxu0
  %v3870 = vadd.f32 0.0, %v3869
  %v3871 = vpop.f32.mrb[0].mxu0
  %3872 = vmatprep.mubr.f32.mxu0 0.0
  %3873 = vmatmul.mubr.f32.gmra.mrb[0].mxu0 %v3781
  %v3874 = vpop.f32.mrb[0].mxu0
  %v3875 = vadd.f32 0.0, %v3874
  %v3876 = vpop.f32.mrb[0].mxu0
  %3877 = vdwg.mxu0
  %v3878 = vadd.f32 %v3469, %v3850
  %v3879 = vadd.f32 %v3470, %v3855
  %v3880 = vadd.f32 %v3471, %v3860
  %v3881 = vadd.f32 %v3472, %v3865
  %v3882 = vadd.f32 %v3473, %v3870
  %v3883 = vadd.f32 %v3474, %v3875
  %v3884 = vld [vmem:[%s3] sm:$0x3]
  %v3886 = vsel %vm2458, %v3884, 0
  %v3889 = vsel %vm2458, %v3878, 0
  %v3892 = vsel %vm2458, %v3879, 0
  %v3895 = vsel %vm2458, %v3880, 0
  %v3898 = vsel %vm2458, %v3881, 0
  %v3901 = vsel %vm2458, %v3882, 0
  %v3904 = vsel %vm2458, %v3883, 0
  %3906 = vmatprep.subr.mxu0 0.0
  %3907 = vmatpush1.xpose.msra.mxu0 %v3889
  %3908 = vmatprep.subr.mxu0 0.0
  %3909 = vmatpush1.xpose.msra.mxu0 %v3892
  %3910 = vmatprep.subr.mxu0 0.0
  %3911 = vmatpush1.xpose.msra.mxu0 %v3895
  %3912 = vmatprep.subr.mxu0 0.0
  %3913 = vmatpush1.xpose.msra.mxu0 %v3898
  %3914 = vmatprep.subr.mxu0 0.0
  %3915 = vmatpush1.xpose.msra.mxu0 %v3901
  %3916 = vmatprep.subr.mxu0 0.0
  %3917 = vmatpush1.xpose.msra.mxu0 %v3904
  %3918 = vmatprep.subr.mxu0 0.0
  %3919 = vmatpush1.xpose.msra.mxu0 0.0
  %3920 = vmatprep.subr.mxu0 0.0
  %3921 = vmatpush1.xpose.msra.mxu0 0.0
  %3922 = vmatprep.subr.mxu0 0.0
  %3923 = vmatpush1.xpose.msra.mxu0 0.0
  %3924 = vmatprep.subr.mxu0 0.0
  %3925 = vmatpush1.xpose.msra.mxu0 0.0
  %3926 = vmatprep.subr.mxu0 0.0
  %3927 = vmatpush1.xpose.msra.mxu0 0.0
  %3928 = vmatprep.subr.mxu0 0.0
  %3929 = vmatpush1.xpose.msra.mxu0 0.0
  %3930 = vmatprep.subr.mxu0 0.0
  %3931 = vmatpush1.xpose.msra.mxu0 0.0
  %3932 = vmatprep.subr.mxu0 0.0
  %3933 = vmatpush1.xpose.msra.mxu0 0.0
  %3934 = vmatprep.subr.mxu0 0.0
  %3935 = vmatpush1.xpose.msra.mxu0 0.0
  %3936 = vmatprep.subr.mxu0 0.0
  %3937 = vmatpush1.xpose.msra.mxu0 0.0
  %3938 = vmatprep.subr.mxu0 0.0
  %3939 = vmatpush1.xpose.msra.mxu0 0.0
  %3940 = vmatprep.subr.mxu0 0.0
  %3941 = vmatpush1.xpose.msra.mxu0 0.0
  %3942 = vmatprep.subr.mxu0 0.0
  %3943 = vmatpush1.xpose.msra.mxu0 0.0
  %3944 = vmatprep.subr.mxu0 0.0
  %3945 = vmatpush1.xpose.msra.mxu0 0.0
  %3946 = vmatprep.subr.mxu0 0.0
  %3947 = vmatpush1.xpose.msra.mxu0 0.0
  %3948 = vmatprep.subr.mxu0 0.0
  %3949 = vmatpush1.xpose.msra.mxu0 0.0
  %3950 = vmatprep.subr.mxu0 0.0
  %3951 = vmatpush1.xpose.msra.mxu0 0.0
  %3952 = vmatprep.subr.mxu0 0.0
  %3953 = vmatpush1.xpose.msra.mxu0 0.0
  %3954 = vmatprep.subr.mxu0 0.0
  %3955 = vmatpush1.xpose.msra.mxu0 0.0
  %3956 = vmatprep.subr.mxu0 0.0
  %3957 = vmatpush1.xpose.msra.mxu0 0.0
  %3958 = vmatprep.subr.mxu0 0.0
  %3959 = vmatpush1.xpose.msra.mxu0 0.0
  %3960 = vmatprep.subr.mxu0 0.0
  %3961 = vmatpush1.xpose.msra.mxu0 0.0
  %3962 = vmatprep.subr.mxu0 0.0
  %3963 = vmatpush1.xpose.msra.mxu0 0.0
  %3964 = vmatprep.subr.mxu0 0.0
  %3965 = vmatpush1.xpose.msra.mxu0 0.0
  %3966 = vmatprep.subr.mxu0 0.0
  %3967 = vmatpush1.xpose.msra.mxu0 0.0
  %3968 = vmatprep.subr.mxu0 0.0
  %3969 = vmatpush1.xpose.msra.mxu0 0.0
  %3970 = vmatprep.mubr.f32.mxu0 0.0
  %3971 = vmatmul.mubr.f32.gmra.mrb[0].mxu0 %v3886
  %v3972 = vpop.f32.mrb[0].mxu0
  %v3973 = vadd.f32 0.0, %v3972
  %v3974 = vpop.f32.mrb[0].mxu0
  %3975 = vdwg.mxu0
  %v3976 = vld [vmem:[%s1 + $0x470] sm:$0xff]
  %v3977 = vld [vmem:[%s1 + $0x478] sm:$0xff]
  %v3978 = vld [vmem:[%s1 + $0x480] sm:$0xff]
  %v3979 = vld [vmem:[%s1 + $0x488] sm:$0xff]
  %v3980 = vld [vmem:[%s1 + $0x490] sm:$0xff]
  %v3981 = vld [vmem:[%s1 + $0x498] sm:$0xff]
  %v3982 = vld [vmem:[%s1 + $0x4a0] sm:$0xff]
  %v3983 = vld [vmem:[%s1 + $0x4a8] sm:$0xff]
  %v3984 = vld [vmem:[%s1 + $0x4b0] sm:$0xff]
  %v3985 = vld [vmem:[%s1 + $0x4b8] sm:$0xff]
  %v3986 = vld [vmem:[%s1 + $0x4c0] sm:$0xff]
  %v3987 = vld [vmem:[%s1 + $0x4c8] sm:$0xff]
  %v3988 = vld [vmem:[%s1 + $0x4d0] sm:$0xff]
  %v3989 = vld [vmem:[%s1 + $0x4d8] sm:$0xff]
  %v3990 = vld [vmem:[%s1 + $0x4e0] sm:$0xff]
  %v3991 = vld [vmem:[%s1 + $0x4e8] sm:$0xff]
  %v3992 = vld [vmem:[%s1 + $0x4f0] sm:$0xff]
  %v3993 = vld [vmem:[%s1 + $0x4f8] sm:$0xff]
  %v3995 = vsel %vm249, %v3973, 0
  %v3998 = vsel %vm249, %v3976, 0
  %v4001 = vsel %vm249, %v3977, 0
  %v4004 = vsel %vm249, %v3978, 0
  %v4007 = vsel %vm249, %v3979, 0
  %v4010 = vsel %vm249, %v3980, 0
  %v4013 = vsel %vm249, %v3981, 0
  %v4016 = vsel %vm249, %v3982, 0
  %v4019 = vsel %vm249, %v3983, 0
  %v4022 = vsel %vm249, %v3984, 0
  %v4025 = vsel %vm249, %v3985, 0
  %v4028 = vsel %vm249, %v3986, 0
  %v4031 = vsel %vm249, %v3987, 0
  %v4034 = vsel %vm249, %v3988, 0
  %v4037 = vsel %vm249, %v3989, 0
  %v4040 = vsel %vm249, %v3990, 0
  %v4043 = vsel %vm249, %v3991, 0
  %v4046 = vsel %vm249, %v3992, 0
  %v4049 = vsel %vm249, %v3993, 0
  %4051 = vmatprep.subr.mxu0 0.0
  %4052 = vmatpush1.xpose.msra.mxu0 %v3998
  %4053 = vmatprep.subr.mxu0 0.0
  %4054 = vmatpush1.xpose.msra.mxu0 %v4001
  %4055 = vmatprep.subr.mxu0 0.0
  %4056 = vmatpush1.xpose.msra.mxu0 %v4004
  %4057 = vmatprep.subr.mxu0 0.0
  %4058 = vmatpush1.xpose.msra.mxu0 %v4007
  %4059 = vmatprep.subr.mxu0 0.0
  %4060 = vmatpush1.xpose.msra.mxu0 %v4010
  %4061 = vmatprep.subr.mxu0 0.0
  %4062 = vmatpush1.xpose.msra.mxu0 %v4013
  %4063 = vmatprep.subr.mxu0 0.0
  %4064 = vmatpush1.xpose.msra.mxu0 %v4016
  %4065 = vmatprep.subr.mxu0 0.0
  %4066 = vmatpush1.xpose.msra.mxu0 %v4019
  %4067 = vmatprep.subr.mxu0 0.0
  %4068 = vmatpush1.xpose.msra.mxu0 %v4022
  %4069 = vmatprep.subr.mxu0 0.0
  %4070 = vmatpush1.xpose.msra.mxu0 %v4025
  %4071 = vmatprep.subr.mxu0 0.0
  %4072 = vmatpush1.xpose.msra.mxu0 %v4028
  %4073 = vmatprep.subr.mxu0 0.0
  %4074 = vmatpush1.xpose.msra.mxu0 %v4031
  %4075 = vmatprep.subr.mxu0 0.0
  %4076 = vmatpush1.xpose.msra.mxu0 %v4034
  %4077 = vmatprep.subr.mxu0 0.0
  %4078 = vmatpush1.xpose.msra.mxu0 %v4037
  %4079 = vmatprep.subr.mxu0 0.0
  %4080 = vmatpush1.xpose.msra.mxu0 %v4040
  %4081 = vmatprep.subr.mxu0 0.0
  %4082 = vmatpush1.xpose.msra.mxu0 %v4043
  %4083 = vmatprep.subr.mxu0 0.0
  %4084 = vmatpush1.xpose.msra.mxu0 %v4046
  %4085 = vmatprep.subr.mxu0 0.0
  %4086 = vmatpush1.xpose.msra.mxu0 %v4049
  %4087 = vmatprep.subr.mxu0 0.0
  %4088 = vmatpush1.xpose.msra.mxu0 0.0
  %4089 = vmatprep.subr.mxu0 0.0
  %4090 = vmatpush1.xpose.msra.mxu0 0.0
  %4091 = vmatprep.subr.mxu0 0.0
  %4092 = vmatpush1.xpose.msra.mxu0 0.0
  %4093 = vmatprep.subr.mxu0 0.0
  %4094 = vmatpush1.xpose.msra.mxu0 0.0
  %4095 = vmatprep.subr.mxu0 0.0
  %4096 = vmatpush1.xpose.msra.mxu0 0.0
  %4097 = vmatprep.subr.mxu0 0.0
  %4098 = vmatpush1.xpose.msra.mxu0 0.0
  %4099 = vmatprep.subr.mxu0 0.0
  %4100 = vmatpush1.xpose.msra.mxu0 0.0
  %4101 = vmatprep.subr.mxu0 0.0
  %4102 = vmatpush1.xpose.msra.mxu0 0.0
  %4103 = vmatprep.subr.mxu0 0.0
  %4104 = vmatpush1.xpose.msra.mxu0 0.0
  %4105 = vmatprep.subr.mxu0 0.0
  %4106 = vmatpush1.xpose.msra.mxu0 0.0
  %4107 = vmatprep.subr.mxu0 0.0
  %4108 = vmatpush1.xpose.msra.mxu0 0.0
  %4109 = vmatprep.subr.mxu0 0.0
  %4110 = vmatpush1.xpose.msra.mxu0 0.0
  %4111 = vmatprep.subr.mxu0 0.0
  %4112 = vmatpush1.xpose.msra.mxu0 0.0
  %4113 = vmatprep.subr.mxu0 0.0
  %4114 = vmatpush1.xpose.msra.mxu0 0.0
  %4115 = vmatprep.mubr.f32.mxu0 0.0
  %4116 = vmatmul.mubr.f32.gmra.mrb[0].mxu0 %v3995
  %v4117 = vpop.f32.mrb[0].mxu0
  %v4118 = vadd.f32 0.0, %v4117
  %v4119 = vpop.f32.mrb[0].mxu0
  %v4120 = vadd.f32 0.0, %v4119
  %4121 = vdwg.mxu0
  %v4122 = vmul.f32 %v4118, %v4118
  %4124 = vrot.lane.b32.xlu0 %v4122, 112
  %v4125 = vpop.permute.xlu0 %4124
  %v4127 = vadd.f32 %v4122, %v4125
  %4128 = vrot.lane.b32.xlu0 %v4122, 96
  %v4129 = vpop.permute.xlu0 %4128
  %v4131 = vadd.f32 %v4127, %v4129
  %v4132 = vrsqrt.pop %v4131
  %v4133 = vmul.f32 %v4131, %v4132
  %vm4134 = vcmp.eq.f32.partialorder %v4131, inf
  %v4135 = vsel %vm4134, %v4131, %v4133
  %vm4136 = vcmp.eq.f32.partialorder %v4131, 0.0
  %v4137 = vand.u32 %v4131, 2147483648
  %v4138 = vsel %vm4136, %v4137, %v4135
  %v4139 = vadd.f32 %v4138, 1e-06
  %v4140 = vrcp.pop %v4139
  %v4141 = vmul.f32 %v4118, %v4140
  %4143 = vrot.lane.b32.xlu0 %v4139, 16
  %v4144 = vpop.permute.xlu0 %4143
  %v4146 = vrcp.pop %v4144
  %v4147 = vmul.f32 %v4118, %v4146
  %4148 = vrot.lane.b32.xlu0 %v4139, 32
  %v4149 = vpop.permute.xlu0 %4148
  %v4151 = vrcp.pop %v4149
  %v4152 = vmul.f32 %v4118, %v4151
  %4154 = vrot.lane.b32.xlu0 %v4118, 80
  %v4155 = vpop.permute.xlu0 %4154
  %v4157 = vmul.f32 %v4141, %v4155
  %v4158 = vmul.f32 %v4147, %v4155
  %4160 = vrot.lane.b32.xlu0 %v4158, 112
  %v4161 = vpop.permute.xlu0 %4160
  %v4163 = vadd.f32 %v4157, %v4161
  %4165 = vrot.lane.b32.xlu0 %v4120, 80
  %v4166 = vpop.permute.xlu0 %4165
  %v4168 = vmul.f32 %v4152, %v4166
  %4170 = vrot.lane.b32.xlu0 %v4168, 96
  %v4171 = vpop.permute.xlu0 %4170
  %v4173 = vadd.f32 %v4163, %v4171
  %v4174 = vmul.f32 %v4173, %v4141
  %4176 = vrot.lane.b32.xlu0 %v4174, 48
  %v4177 = vpop.permute.xlu0 %4176
  %v4179 = vsub.f32 %v4118, %v4177
  %4181 = vrot.lane.b32.xlu0 %v4147, 112
  %v4182 = vpop.permute.xlu0 %4181
  %v4184 = vmul.f32 %v4173, %v4182
  %4186 = vrot.lane.b32.xlu0 %v4184, 64
  %v4187 = vpop.permute.xlu0 %4186
  %v4189 = vsub.f32 %v4118, %v4187
  %4191 = vrot.lane.b32.xlu0 %v4152, 96
  %v4192 = vpop.permute.xlu0 %4191
  %v4194 = vmul.f32 %v4173, %v4192
  %4196 = vrot.lane.b32.xlu0 %v4194, 80
  %v4197 = vpop.permute.xlu0 %4196
  %v4199 = vsub.f32 %v4120, %v4197
  %v4200 = vmul.f32 %v4179, %v4179
  %v4201 = vmul.f32 %v4189, %v4189
  %4203 = vrot.lane.b32.xlu0 %v4201, 112
  %v4204 = vpop.permute.xlu0 %4203
  %v4206 = vadd.f32 %v4200, %v4204
  %v4207 = vmul.f32 %v4199, %v4199
  %4209 = vrot.lane.b32.xlu0 %v4207, 96
  %v4210 = vpop.permute.xlu0 %4209
  %v4212 = vadd.f32 %v4206, %v4210
  %v4213 = vrsqrt.pop %v4212
  %v4214 = vmul.f32 %v4212, %v4213
  %vm4215 = vcmp.eq.f32.partialorder %v4212, inf
  %v4216 = vsel %vm4215, %v4212, %v4214
  %vm4217 = vcmp.eq.f32.partialorder %v4212, 0.0
  %v4218 = vand.u32 %v4212, 2147483648
  %v4219 = vsel %vm4217, %v4218, %v4216
  %v4220 = vadd.f32 %v4219, 1e-06
  %v4221 = vrcp.pop %v4220
  %v4222 = vmul.f32 %v4179, %v4221
  %4224 = vrot.lane.b32.xlu0 %v4220, 16
  %v4225 = vpop.permute.xlu0 %4224
  %v4227 = vrcp.pop %v4225
  %v4228 = vmul.f32 %v4189, %v4227
  %4229 = vrot.lane.b32.xlu0 %v4220, 32
  %v4230 = vpop.permute.xlu0 %4229
  %v4232 = vrcp.pop %v4230
  %v4233 = vmul.f32 %v4199, %v4232
  %4235 = vrot.lane.b32.xlu0 %v4233, 64
  %v4236 = vpop.permute.xlu0 %4235
  %v4238 = vmul.f32 %v4147, %v4236
  %4240 = vrot.lane.b32.xlu0 %v4228, 96
  %v4241 = vpop.permute.xlu0 %4240
  %v4243 = vmul.f32 %v4152, %v4241
  %4245 = vrot.lane.b32.xlu0 %v4243, 112
  %v4246 = vpop.permute.xlu0 %4245
  %v4248 = vsub.f32 %v4238, %v4246
  %4250 = vrot.lane.b32.xlu0 %v4222, 112
  %v4251 = vpop.permute.xlu0 %4250
  %v4253 = vmul.f32 %v4152, %v4251
  %4254 = vrot.lane.b32.xlu0 %v4233, 48
  %v4255 = vpop.permute.xlu0 %4254
  %v4257 = vmul.f32 %v4141, %v4255
  %4259 = vrot.lane.b32.xlu0 %v4257, 32
  %v4260 = vpop.permute.xlu0 %4259
  %v4262 = vsub.f32 %v4253, %v4260
  %4263 = vrot.lane.b32.xlu0 %v4228, 64
  %v4264 = vpop.permute.xlu0 %4263
  %v4266 = vmul.f32 %v4141, %v4264
  %4267 = vrot.lane.b32.xlu0 %v4222, 96
  %v4268 = vpop.permute.xlu0 %4267
  %v4270 = vmul.f32 %v4147, %v4268
  %4272 = vrot.lane.b32.xlu0 %v4270, 112
  %v4273 = vpop.permute.xlu0 %4272
  %v4275 = vsub.f32 %v4266, %v4273
  %4277 = vrot.lane.b32.xlu0 %v4141, 80
  %v4278 = vpop.permute.xlu0 %4277
  %v4280 = vmul.f32 %v4118, %v4278
  %4281 = vrot.lane.b32.xlu0 %v4222, 48
  %v4282 = vpop.permute.xlu0 %4281
  %v4284 = vmul.f32 %v4118, %v4282
  %4286 = vrot.lane.b32.xlu0 %v4284, 112
  %v4287 = vpop.permute.xlu0 %4286
  %v4289 = vadd.f32 %v4280, %v4287
  %4291 = vrot.lane.b32.xlu0 %v4248, 96
  %v4292 = vpop.permute.xlu0 %4291
  %v4294 = vmul.f32 %v4118, %v4292
  %4296 = vrot.lane.b32.xlu0 %v4294, 96
  %v4297 = vpop.permute.xlu0 %4296
  %v4299 = vadd.f32 %v4289, %v4297
  %4300 = vrot.lane.b32.xlu0 %v4147, 64
  %v4301 = vpop.permute.xlu0 %4300
  %v4303 = vmul.f32 %v4118, %v4301
  %4304 = vrot.lane.b32.xlu0 %v4228, 32
  %v4305 = vpop.permute.xlu0 %4304
  %v4307 = vmul.f32 %v4118, %v4305
  %4309 = vrot.lane.b32.xlu0 %v4307, 112
  %v4310 = vpop.permute.xlu0 %4309
  %v4312 = vadd.f32 %v4303, %v4310
  %4314 = vrot.lane.b32.xlu0 %v4262, 80
  %v4315 = vpop.permute.xlu0 %4314
  %v4317 = vmul.f32 %v4118, %v4315
  %4319 = vrot.lane.b32.xlu0 %v4317, 96
  %v4320 = vpop.permute.xlu0 %4319
  %v4322 = vadd.f32 %v4312, %v4320
  %4323 = vrot.lane.b32.xlu0 %v4152, 48
  %v4324 = vpop.permute.xlu0 %4323
  %v4326 = vmul.f32 %v4118, %v4324
  %4327 = vrot.lane.b32.xlu0 %v4233, 16
  %v4328 = vpop.permute.xlu0 %4327
  %v4330 = vmul.f32 %v4118, %v4328
  %4332 = vrot.lane.b32.xlu0 %v4330, 112
  %v4333 = vpop.permute.xlu0 %4332
  %v4335 = vadd.f32 %v4326, %v4333
  %4337 = vrot.lane.b32.xlu0 %v4275, 112
  %v4338 = vpop.permute.xlu0 %4337
  %v4340 = vmul.f32 %v4118, %v4338
  %4342 = vrot.lane.b32.xlu0 %v4340, 96
  %v4343 = vpop.permute.xlu0 %4342
  %v4345 = vadd.f32 %v4335, %v4343
  %4347 = vrot.lane.b32.xlu0 %v4322, 16
  %v4348 = vpop.permute.xlu0 %4347
  %4351 = vrot.lane.b32.xlu0 %v4345, 32
  %v4352 = vpop.permute.xlu0 %4351
  %v4354 = vsel %vm2458, %v4299, %v4348
  %v4355 = vsel %vm795, %v4354, %v4352
  %v4356 = vld [vmem:[%s1 + $0x500] sm:$0xff]
  %v4357 = vld [vmem:[%s1 + $0x508] sm:$0xff]
  %v4358 = vld [vmem:[%s1 + $0x510] sm:$0xff]
  %v4359 = vld [vmem:[%s1 + $0x518] sm:$0xff]
  %v4360 = vld [vmem:[%s1 + $0x520] sm:$0xff]
  %v4361 = vld [vmem:[%s1 + $0x528] sm:$0xff]
  %v4363 = vsel %vm249, %v4355, 0
  %v4366 = vsel %vm249, %v4356, 0
  %v4369 = vsel %vm249, %v4357, 0
  %v4372 = vsel %vm249, %v4358, 0
  %v4375 = vsel %vm249, %v4359, 0
  %v4378 = vsel %vm249, %v4360, 0
  %v4381 = vsel %vm249, %v4361, 0
  %4383 = vmatprep.subr.mxu0 0.0
  %4384 = vmatpush1.xpose.msra.mxu0 %v4366
  %4385 = vmatprep.subr.mxu0 0.0
  %4386 = vmatpush1.xpose.msra.mxu0 %v4369
  %4387 = vmatprep.subr.mxu0 0.0
  %4388 = vmatpush1.xpose.msra.mxu0 %v4372
  %4389 = vmatprep.subr.mxu0 0.0
  %4390 = vmatpush1.xpose.msra.mxu0 %v4375
  %4391 = vmatprep.subr.mxu0 0.0
  %4392 = vmatpush1.xpose.msra.mxu0 %v4378
  %4393 = vmatprep.subr.mxu0 0.0
  %4394 = vmatpush1.xpose.msra.mxu0 %v4381
  %4395 = vmatprep.subr.mxu0 0.0
  %4396 = vmatpush1.xpose.msra.mxu0 0.0
  %4397 = vmatprep.subr.mxu0 0.0
  %4398 = vmatpush1.xpose.msra.mxu0 0.0
  %4399 = vmatprep.subr.mxu0 0.0
  %4400 = vmatpush1.xpose.msra.mxu0 0.0
  %4401 = vmatprep.subr.mxu0 0.0
  %4402 = vmatpush1.xpose.msra.mxu0 0.0
  %4403 = vmatprep.subr.mxu0 0.0
  %4404 = vmatpush1.xpose.msra.mxu0 0.0
  %4405 = vmatprep.subr.mxu0 0.0
  %4406 = vmatpush1.xpose.msra.mxu0 0.0
  %4407 = vmatprep.subr.mxu0 0.0
  %4408 = vmatpush1.xpose.msra.mxu0 0.0
  %4409 = vmatprep.subr.mxu0 0.0
  %4410 = vmatpush1.xpose.msra.mxu0 0.0
  %4411 = vmatprep.subr.mxu0 0.0
  %4412 = vmatpush1.xpose.msra.mxu0 0.0
  %4413 = vmatprep.subr.mxu0 0.0
  %4414 = vmatpush1.xpose.msra.mxu0 0.0
  %4415 = vmatprep.subr.mxu0 0.0
  %4416 = vmatpush1.xpose.msra.mxu0 0.0
  %4417 = vmatprep.subr.mxu0 0.0
  %4418 = vmatpush1.xpose.msra.mxu0 0.0
  %4419 = vmatprep.subr.mxu0 0.0
  %4420 = vmatpush1.xpose.msra.mxu0 0.0
  %4421 = vmatprep.subr.mxu0 0.0
  %4422 = vmatpush1.xpose.msra.mxu0 0.0
  %4423 = vmatprep.subr.mxu0 0.0
  %4424 = vmatpush1.xpose.msra.mxu0 0.0
  %4425 = vmatprep.subr.mxu0 0.0
  %4426 = vmatpush1.xpose.msra.mxu0 0.0
  %4427 = vmatprep.subr.mxu0 0.0
  %4428 = vmatpush1.xpose.msra.mxu0 0.0
  %4429 = vmatprep.subr.mxu0 0.0
  %4430 = vmatpush1.xpose.msra.mxu0 0.0
  %4431 = vmatprep.subr.mxu0 0.0
  %4432 = vmatpush1.xpose.msra.mxu0 0.0
  %4433 = vmatprep.subr.mxu0 0.0
  %4434 = vmatpush1.xpose.msra.mxu0 0.0
  %4435 = vmatprep.subr.mxu0 0.0
  %4436 = vmatpush1.xpose.msra.mxu0 0.0
  %4437 = vmatprep.subr.mxu0 0.0
  %4438 = vmatpush1.xpose.msra.mxu0 0.0
  %4439 = vmatprep.subr.mxu0 0.0
  %4440 = vmatpush1.xpose.msra.mxu0 0.0
  %4441 = vmatprep.subr.mxu0 0.0
  %4442 = vmatpush1.xpose.msra.mxu0 0.0
  %4443 = vmatprep.subr.mxu0 0.0
  %4444 = vmatpush1.xpose.msra.mxu0 0.0
  %4445 = vmatprep.subr.mxu0 0.0
  %4446 = vmatpush1.xpose.msra.mxu0 0.0
  %4447 = vmatprep.mubr.f32.mxu0 0.0
  %4448 = vmatmul.mubr.f32.gmra.mrb[0].mxu0 %v4363
  %v4449 = vpop.f32.mrb[0].mxu0
  %v4450 = vadd.f32 0.0, %v4449
  %v4451 = vpop.f32.mrb[0].mxu0
  %4452 = vdwg.mxu0
  %4454 = vrot.lane.b32.xlu0 %v4450, 48
  %v4455 = vpop.permute.xlu0 %4454
  %v4457 = vsel %vm249, %v4118, %v4455
  %vm4458 = vcmask 785408
  %v4459 = vsel %vm4458, %v4457, 0.0
  %4460 = vst [vmem:[%s5] sm:$0x3] %v4459
  // Predicated region
  $region22: #{vn_transformer_forward.1} parent=0 // pred_check
    _
  $region23: #{vn_transformer_forward.1} parent=0 // pred_check_branch
    %4462 = sbr.rel (0) target = $region25
  $region24: #{vn_transformer_forward.1} parent=0 // pred_region
    _
  $region25: #{vn_transformer_forward.1} parent=0 // pred_fallthru
    _
  // Predicated region
  $region26: #{vn_transformer_forward.1} parent=0 // pred_check
    _
  $region27: #{vn_transformer_forward.1} parent=0 // pred_check_branch
    %4464 = sbr.rel (0) target = $region29
  $region28: #{vn_transformer_forward.1} parent=0 // pred_region
    _
  $region29: #{vn_transformer_forward.1} parent=0 // pred_fallthru
    _

</llo_original>
